<compile_context>
chip_gen: v7x
topology: tpu7x:2x2x1
jax: 0.10.0
libtpu: 0.0.40
codegen_flags: <defaults>
</compile_context>

<pallas_src>
import functools

import jax
import jax.numpy as jnp
from jax.experimental import pallas as pl
from jax.experimental.pallas import tpu as pltpu

F32 = jnp.float32
BF16 = jnp.bfloat16
EPS = 1e-5
OFF = 128          # lane-aligned halo offset for in-kernel conv-padding scratch


# ------------------------------ pallas glue ---------------------------------

def _vmem():
    return pl.BlockSpec(memory_space=pltpu.MemorySpace.VMEM)


def _smem():
    return pl.BlockSpec(memory_space=pltpu.MemorySpace.SMEM)


# --------------------------- in-kernel helpers -------------------------------

def _prelu(x, a):
    return jnp.where(x >= 0.0, x, a * x)


def _moments(x, axis, n):
    """Single-pass mean / rsqrt(var+eps) reusing sum and sum-of-squares."""
    s1 = jnp.sum(x, axis=axis, keepdims=True)
    s2 = jnp.sum(x * x, axis=axis, keepdims=True)
    mean = s1 / n
    var = jnp.maximum(s2 / n - mean * mean, 0.0)
    return mean, jax.lax.rsqrt(var + EPS)


def _conv3_mxu(xw_bf, w_ref, b, T):
    """3-tap conv from a [Ci, T+2] bf16 window whose halo columns are zero.
    w_ref: [3, Co, Ci] bf16, b: [Co, 1] f32.  Accumulator starts from the bias."""
    acc = b + jnp.dot(w_ref[0], xw_bf[:, 0:T], preferred_element_type=F32)
    acc = acc + jnp.dot(w_ref[1], xw_bf[:, 1:T + 1], preferred_element_type=F32)
    acc = acc + jnp.dot(w_ref[2], xw_bf[:, 2:T + 2], preferred_element_type=F32)
    return acc


# ------------------------------ fused kernels --------------------------------

def _make_encoder_kernel(N, T):
    """Frame matmul + 3x(conv3 + PReLU) + cLN(channels) + 1x1 bottleneck."""

    def kernel(frames_ref, w0_ref, b0_ref,
               cw1_ref, cb1_ref, cw2_ref, cb2_ref, cw3_ref, cb3_ref,
               alpha_ref, clng_ref, clnb_ref, bw_ref, bb_ref,
               wfeat_ref, e_ref, xpad_ref):
        # zero once per call; halo lanes are never written afterwards
        xpad_ref[...] = jnp.zeros_like(xpad_ref)
        # Conv1D(1, N, L, stride=L//2, padding=20) as one MXU frame matmul
        x = jnp.dot(w0_ref[...], frames_ref[...].astype(BF16),
                    preferred_element_type=F32) + b0_ref[...]
        convs = ((cw1_ref, cb1_ref), (cw2_ref, cb2_ref), (cw3_ref, cb3_ref))
        for i, (w_ref, b_ref) in enumerate(convs):
            xpad_ref[:, OFF:OFF + T] = x                       # lane-aligned store
            xv = xpad_ref[...]
            xw = xv[:, OFF - 1:OFF + T + 1].astype(BF16)       # one cast / layer
            x = _prelu(_conv3_mxu(xw, w_ref, b_ref[...], T), alpha_ref[i])
        wfeat_ref[...] = x
        # cLN == LayerNorm over channels per time step, then 1x1 bottleneck
        mean, rstd = _moments(x, 0, float(N))
        xn = (x - mean) * rstd * clng_ref[...] + clnb_ref[...]
        e_ref[...] = jnp.dot(bw_ref[...], xn.astype(BF16),
                             preferred_element_type=F32) + bb_ref[...]

    return kernel


def _make_acc_kernel(N, T):
    """AccEncoder: conv0(Ci=1) + 3x(conv3+LN(T)+PReLU) + 2x(conv3+PReLU)
    + 1x1 bottleneck + sigmoid gate — all fused."""

    def kernel(z_ref, w0_ref, b0_ref,
               w1_ref, b1_ref, w2_ref, b2_ref, w3_ref, b3_ref,
               w4_ref, b4_ref, w5_ref, b5_ref,
               g1_ref, be1_ref, g2_ref, be2_ref, g3_ref, be3_ref,
               alpha_ref, abw_ref, abb_ref,
               eacc_ref, zpad_ref):
        zpad_ref[...] = jnp.zeros_like(zpad_ref)
        # conv0: single input channel -> broadcast multiply on the VPU (f32)
        zpad_ref[0:1, OFF:OFF + T] = z_ref[...]
        zv = zpad_ref[...]
        zw = zv[0:1, OFF - 1:OFF + T + 1]
        x = (b0_ref[...] + w0_ref[0] * zw[:, 0:T] + w0_ref[1] * zw[:, 1:T + 1]
             + w0_ref[2] * zw[:, 2:T + 2])
        # 3x (conv3 -> LayerNorm over time -> PReLU)
        ln_layers = ((w1_ref, b1_ref, g1_ref, be1_ref),
                     (w2_ref, b2_ref, g2_ref, be2_ref),
                     (w3_ref, b3_ref, g3_ref, be3_ref))
        for i, (w_ref, b_ref, g_ref, beta_ref) in enumerate(ln_layers):
            zpad_ref[:, OFF:OFF + T] = x
            xv = zpad_ref[...]
            xw = xv[:, OFF - 1:OFF + T + 1].astype(BF16)
            y = _conv3_mxu(xw, w_ref, b_ref[...], T)
            mean, rstd = _moments(y, 1, float(T))
            y = (y - mean) * rstd * g_ref[...] + beta_ref[...]
            x = _prelu(y, alpha_ref[i])
        # 2x (conv3 -> PReLU)
        for i, (w_ref, b_ref) in enumerate(((w4_ref, b4_ref), (w5_ref, b5_ref))):
            zpad_ref[:, OFF:OFF + T] = x
            xv = zpad_ref[...]
            xw = xv[:, OFF - 1:OFF + T + 1].astype(BF16)
            x = _prelu(_conv3_mxu(xw, w_ref, b_ref[...], T), alpha_ref[3 + i])
        # acc bottleneck (1x1) + sigmoid gate
        eacc_ref[...] = jax.nn.sigmoid(
            jnp.dot(abw_ref[...], x.astype(BF16), preferred_element_type=F32)
            + abb_ref[...])

    return kernel


def _make_tcn_kernel(H, T, P, dil_set):
    """One grid step == one Conv1D_Block (1x1 -> PReLU -> gLN -> dilated dwconv
    -> PReLU -> gLN -> 1x1 -> residual).  Residual `e` lives in the revisited
    output block (VMEM-resident across the whole grid)."""
    n_gln = float(H * T)

    def kernel(dil_ref, e_ref,
               c1w_ref, c1b_ref, a1_ref, g1g_ref, g1b_ref,
               dww_ref, dwb_ref, a2_ref, g2g_ref, g2b_ref,
               ow_ref, ob_ref,
               o_ref, cpad_ref):
        b = pl.program_id(0)

        @pl.when(b == 0)
        def _():
            o_ref[...] = e_ref[...]
            cpad_ref[...] = jnp.zeros_like(cpad_ref)   # zero halos ONCE, not per block

        e = o_ref[...]
        dil = dil_ref[b]

        # 1x1 conv + PReLU (per-channel alpha vector, all equal)
        c = jnp.dot(c1w_ref[0], e.astype(BF16),
                    preferred_element_type=F32) + c1b_ref[0]
        c = _prelu(c, a1_ref[0])

        # gLN over (C, T)
        mean, rstd = _moments(c, (0, 1), n_gln)
        c = g1g_ref[0] * (c - mean) * rstd + g1b_ref[0]

        # dilated depthwise conv: lane-aligned store into the persistent
        # zero-halo scratch; the runtime dilation picks one of the (few)
        # statically-sliced candidates (dwconv is ~P/Bsep of the block FLOPs,
        # so evaluating X candidates is cheap VPU filler).
        cpad_ref[:, OFF:OFF + T] = c
        cp = cpad_ref[...]
        dww = dww_ref[0]
        dwb = dwb_ref[0]
        acc = None
        for d in dil_set:
            pad = d * (P - 1) // 2
            acc_d = dwb + cp[:, OFF - pad:OFF - pad + T] * dww[:, 0:1]
            for k in range(1, P):
                st = OFF + k * d - pad
                acc_d = acc_d + cp[:, st:st + T] * dww[:, k:k + 1]
            if acc is None:
                acc = acc_d
            else:
                sel = (dil == d).astype(F32)
                acc = sel * acc_d + (1.0 - sel) * acc

        # PReLU + gLN
        c = _prelu(acc, a2_ref[0])
        mean, rstd = _moments(c, (0, 1), n_gln)
        c = g2g_ref[0] * (c - mean) * rstd + g2b_ref[0]

        # 1x1 output conv + residual (skip_con=False path)
        out = jnp.dot(ow_ref[0], c.astype(BF16),
                      preferred_element_type=F32) + ob_ref[0]
        o_ref[...] = e + out

    return kernel


def _make_decoder_kernel(N, T):
    """mask gen (1x1) + ReLU + mask apply + 3x(ConvTranspose k=3 as flipped conv
    + PReLU) + final ConvTranspose(k=L, stride=L/2) as a frame matmul."""

    def kernel(e_ref, wfeat_ref, mw_ref, mb_ref,
               dw1_ref, db1_ref, dw2_ref, db2_ref, dw3_ref, db3_ref,
               alpha_ref, dfw_ref,
               frames_ref, dpad_ref):
        m = jnp.dot(mw_ref[...], e_ref[...].astype(BF16),
                    preferred_element_type=F32) + mb_ref[...]
        d = wfeat_ref[...] * jnp.maximum(m, 0.0)                # [N, T]
        dpad_ref[...] = jnp.zeros_like(dpad_ref)
        # layer 1: N -> 2N
        dpad_ref[0:N, OFF:OFF + T] = d
        xv = dpad_ref[...]
        xw = xv[0:N, OFF - 1:OFF + T + 1].astype(BF16)
        d = _prelu(_conv3_mxu(xw, dw1_ref, db1_ref[...], T), alpha_ref[0])
        # layers 2, 3: 2N -> 2N
        for i, (w_ref, b_ref) in enumerate(((dw2_ref, db2_ref), (dw3_ref, db3_ref))):
            dpad_ref[:, OFF:OFF + T] = d
            xv = dpad_ref[...]
            xw = xv[:, OFF - 1:OFF + T + 1].astype(BF16)
            d = _prelu(_conv3_mxu(xw, w_ref, b_ref[...], T), alpha_ref[1 + i])
        # final ConvTranspose1d(k=L, stride=L/2): frame matmul on the MXU
        # (overlap-add + output bias happen in the jit-fused wrapper)
        frames_ref[...] = jnp.dot(dfw_ref[...], d.astype(BF16),
                                  preferred_element_type=F32)

    return kernel


# ------------------------------ call wrappers --------------------------------

def _encoder_call(pp, frames, N, Bc, T):
    kernel = _make_encoder_kernel(N, T)
    return pl.pallas_call(
        kernel,
        out_shape=(jax.ShapeDtypeStruct((N, T), F32),
                   jax.ShapeDtypeStruct((Bc, T), F32)),
        in_specs=[_vmem()] * 9 + [_smem()] + [_vmem()] * 4,
        out_specs=(_vmem(), _vmem()),
        scratch_shapes=[pltpu.VMEM((N, T + 2 * OFF), F32)],
    )(frames, pp["enc0_w"], pp["enc0_b"], *pp["enc_convs"],
      pp["enc_alpha"], pp["cln_g"], pp["cln_b"],
      pp["bottle_w"], pp["bottle_b"])


def _acc_call(pp, zs, N, Bc, T):
    kernel = _make_acc_kernel(N, T)
    return pl.pallas_call(
        kernel,
        out_shape=jax.ShapeDtypeStruct((Bc, T), F32),
        in_specs=[_vmem()] * 19 + [_smem()] + [_vmem()] * 2,
        out_specs=_vmem(),
        scratch_shapes=[pltpu.VMEM((N, T + 2 * OFF), F32)],
    )(zs, *pp["acc_convs"], *pp["acc_ln_flat"], pp["acc_alpha"],
      pp["acc_bottle_w"], pp["acc_bottle_b"])


def _tcn_call(pp, e, cfg):
    NB = len(cfg["dils"])
    Bsep, T = e.shape
    H, P = cfg["H"], cfg["P"]
    dil_set = tuple(sorted(set(cfg["dils"])))
    kernel = _make_tcn_kernel(H, T, P, dil_set)
    stk = pp["tcn"]

    def wmap(shape):
        return pl.BlockSpec((1,) + shape, lambda b, *_: (b, 0, 0))

    resident = pl.BlockSpec((Bsep, T), lambda b, *_: (0, 0))
    grid_spec = pltpu.PrefetchScalarGridSpec(
        num_scalar_prefetch=1,                       # dilation table -> SMEM
        grid=(NB,),
        in_specs=[
            resident,                                # e (read once at step 0)
            wmap((H, Bsep)), wmap((H, 1)), wmap((H, 1)),    # c1_w, c1_b, a1
            wmap((H, 1)), wmap((H, 1)),                     # g1_g, g1_b
            wmap((H, P)), wmap((H, 1)), wmap((H, 1)),       # dw_w, dw_b, a2
            wmap((H, 1)), wmap((H, 1)),                     # g2_g, g2_b
            wmap((Bsep, H)), wmap((Bsep, 1)),               # out_w, out_b
        ],
        out_specs=pl.BlockSpec((Bsep, T), lambda b, *_: (0, 0)),  # VMEM-resident
        scratch_shapes=[pltpu.VMEM((H, T + 2 * OFF), F32)],
    )
    return pl.pallas_call(
        kernel,
        grid_spec=grid_spec,
        out_shape=jax.ShapeDtypeStruct((Bsep, T), F32),
        compiler_params=pltpu.CompilerParams(
            dimension_semantics=("arbitrary",),       # sequential residual chain
            vmem_limit_bytes=64 * 1024 * 1024),       # tune per generation at prod
    )(pp["dil_tbl"], e,
      stk["c1_w"], stk["c1_b"], stk["a1"], stk["g1_g"], stk["g1_b"],
      stk["dw_w"], stk["dw_b"], stk["a2"], stk["g2_g"], stk["g2_b"],
      stk["out_w"], stk["out_b"])


def _decoder_call(pp, e, w_feat, N, T, L):
    kernel = _make_decoder_kernel(N, T)
    return pl.pallas_call(
        kernel,
        out_shape=jax.ShapeDtypeStruct((L, T), F32),
        in_specs=[_vmem()] * 10 + [_smem()] + [_vmem()],
        out_specs=_vmem(),
        scratch_shapes=[pltpu.VMEM((2 * N, T + 2 * OFF), F32)],
    )(e, w_feat, pp["mask_w"], pp["mask_b"], *pp["dec_convs"],
      pp["dec_alpha"], pp["dec_final_w"])


# --------------------------- parameter creation -----------------------------

class KeyGen:
    def __init__(self, seed):
        self.key = jax.random.PRNGKey(seed)

    def __call__(self):
        self.key, sub = jax.random.split(self.key)
        return sub


def init_conv(kg, co, ci, k):
    bound = 1.0 / (ci * k) ** 0.5
    w = jax.random.uniform(kg(), (co, ci, k), F32, -bound, bound)
    b = jax.random.uniform(kg(), (co,), F32, -bound, bound)
    return w, b


def init_convT(kg, ci, co, k):
    bound = 1.0 / (ci * k) ** 0.5
    w = jax.random.uniform(kg(), (ci, co, k), F32, -bound, bound)
    b = jax.random.uniform(kg(), (co,), F32, -bound, bound)
    return w, b


def _p25():
    return jnp.full((1,), 0.25, F32)   # PyTorch PReLU init


def init_params(kg, N, L, Bc, H, P, X, R, T_acc, num_spks, multimodal=True):
    p = {}
    p["enc"] = [init_conv(kg, N, 1, L)] + [init_conv(kg, N, N, 3) for _ in range(3)]
    p["enc_prelu"] = [_p25() for _ in range(3)]
    p["acc_conv"] = [init_conv(kg, N, 1, 3)] + [init_conv(kg, N, N, 3) for _ in range(5)]
    p["acc_ln"] = [(jnp.ones((T_acc,), F32), jnp.zeros((T_acc,), F32)) for _ in range(3)]
    p["acc_prelu"] = [_p25() for _ in range(5)]
    p["cln_g"] = jnp.ones((N,), F32)
    p["cln_b"] = jnp.zeros((N,), F32)
    p["bottle"] = init_conv(kg, Bc, N, 1)
    p["acc_bottle"] = init_conv(kg, Bc, N, 1)
    Bsep = 2 * Bc if multimodal else Bc
    blocks, dils = [], []
    for _r in range(R):
        for xexp in range(X):
            dils.append(2 ** xexp)
            blocks.append({"c1": init_conv(kg, H, Bsep, 1), "a1": _p25(),
                           "g1": (jnp.ones((H,), F32), jnp.zeros((H,), F32)),
                           "dw": init_conv(kg, H, 1, P), "a2": _p25(),
                           "g2": (jnp.ones((H,), F32), jnp.zeros((H,), F32)),
                           "out": init_conv(kg, Bsep, H, 1)})
            # Sc_conv exists in the torch module but is unused when skip_con=False.
    p["blocks"], p["dils"] = blocks, dils
    p["mask"] = init_conv(kg, num_spks * N, Bsep, 1)
    p["dec"] = [init_convT(kg, N, 2 * N, 3),
                init_convT(kg, 2 * N, 2 * N, 3),
                init_convT(kg, 2 * N, 2 * N, 3),
                init_convT(kg, 2 * N, 1, L)]
    p["dec_prelu"] = [_p25() for _ in range(3)]
    return p


def prepare_params(raw, L, P):
    """Hoist weight re-layouts AND bf16 casts out of the forward so they run once."""
    pp = {}
    w0, b0 = raw["enc"][0]                           # [N, 1, L]
    N = w0.shape[0]
    pp["enc0_w"] = w0.reshape(N, L).astype(BF16)
    pp["enc0_b"] = b0.reshape(N, 1)

    def conv_k(w, b, cast=True):                     # [Co,Ci,K] -> ([K,Co,Ci],[Co,1])
        wk = jnp.transpose(w, (2, 0, 1))
        if cast:
            wk = wk.astype(BF16)
        return wk, b.reshape(-1, 1)

    enc_convs = []
    for i in range(1, 4):
        wk, bk = conv_k(*raw["enc"][i])
        enc_convs += [wk, bk]
    pp["enc_convs"] = tuple(enc_convs)
    pp["enc_alpha"] = jnp.concatenate(raw["enc_prelu"])        # (3,)

    acc_convs = []
    for i, (w, b) in enumerate(raw["acc_conv"]):
        wk, bk = conv_k(w, b, cast=(i > 0))          # conv0 has Ci=1 (VPU), keep f32
        acc_convs += [wk, bk]
    pp["acc_convs"] = tuple(acc_convs)
    acc_ln = []
    for (g, b) in raw["acc_ln"]:
        acc_ln += [g.reshape(1, -1), b.reshape(1, -1)]
    pp["acc_ln_flat"] = tuple(acc_ln)
    pp["acc_alpha"] = jnp.concatenate(raw["acc_prelu"])        # (5,)

    pp["cln_g"] = raw["cln_g"].reshape(-1, 1)
    pp["cln_b"] = raw["cln_b"].reshape(-1, 1)
    bw, bb = raw["bottle"]
    pp["bottle_w"] = bw.reshape(bw.shape[0], -1).astype(BF16)
    pp["bottle_b"] = bb.reshape(-1, 1)
    aw, ab = raw["acc_bottle"]
    pp["acc_bottle_w"] = aw.reshape(aw.shape[0], -1).astype(BF16)
    pp["acc_bottle_b"] = ab.reshape(-1, 1)

    # ---- TCN block weights stacked on a leading block axis (streamed by grid) ----
    c1w, c1b, a1, g1g, g1b = [], [], [], [], []
    dww, dwb, a2, g2g, g2b = [], [], [], [], []
    ow, ob = [], []
    for blk in raw["blocks"]:
        w, b = blk["c1"]
        H, Bsep = w.shape[0], w.shape[1]
        c1w.append(w.reshape(H, Bsep).astype(BF16))
        c1b.append(b.reshape(H, 1))
        a1.append(jnp.full((H, 1), blk["a1"][0], F32))
        g1g.append(blk["g1"][0].reshape(H, 1))
        g1b.append(blk["g1"][1].reshape(H, 1))
        w, b = blk["dw"]
        dww.append(w.reshape(H, P))                   # depthwise is VPU work -> f32
        dwb.append(b.reshape(H, 1))
        a2.append(jnp.full((H, 1), blk["a2"][0], F32))
        g2g.append(blk["g2"][0].reshape(H, 1))
        g2b.append(blk["g2"][1].reshape(H, 1))
        w, b = blk["out"]
        ow.append(w.reshape(Bsep, H).astype(BF16))
        ob.append(b.reshape(Bsep, 1))
    stack = lambda xs: jnp.stack(xs, axis=0)
    pp["tcn"] = dict(c1_w=stack(c1w), c1_b=stack(c1b), a1=stack(a1),
                     g1_g=stack(g1g), g1_b=stack(g1b),
                     dw_w=stack(dww), dw_b=stack(dwb), a2=stack(a2),
                     g2_g=stack(g2g), g2_b=stack(g2b),
                     out_w=stack(ow), out_b=stack(ob))
    pp["dil_tbl"] = jnp.asarray(raw["dils"], dtype=jnp.int32)

    mw, mb = raw["mask"]
    pp["mask_w"] = mw.reshape(mw.shape[0], -1).astype(BF16)
    pp["mask_b"] = mb.reshape(-1, 1)

    dec_convs = []
    for i in range(3):
        wt, bt = raw["dec"][i]                        # ConvTranspose weight [Ci, Co, 3]
        wc = jnp.flip(jnp.transpose(wt, (1, 0, 2)), axis=2)    # conv weight [Co, Ci, 3]
        wk, bk = conv_k(wc, bt)
        dec_convs += [wk, bk]
    pp["dec_convs"] = tuple(dec_convs)
    pp["dec_alpha"] = jnp.concatenate(raw["dec_prelu"])         # (3,)

    wt, bt = raw["dec"][3]                            # [2N, 1, L]
    pp["dec_final_w"] = jnp.transpose(wt[:, 0, :], (1, 0)).astype(BF16)   # [L, 2N]
    pp["dec_final_b"] = bt.reshape(1)
    return pp


# --------------------------------- forward ----------------------------------

def conv_tasnet_forward(cfg, pp, z, x):
    L, pad_io = cfg["L"], cfg["io_pad"]
    hop = L // 2
    N, Bc = cfg["N"], cfg["B"]
    assert x.shape[0] == 1 and z.shape[0] == 1, "wrapper handles batch=1"
    xs = x.reshape(-1)                       # [T_audio]
    zs = z.reshape(1, -1)                    # [1, T_acc]
    T_acc = zs.shape[1]

    # ---- framing for the stride-L/2 encoder conv: two reshaped views only ----
    xp = jnp.pad(xs, (pad_io, pad_io))
    Tp = xp.shape[0]
    T1 = (Tp - L) // hop + 1
    A = xp[: (T1 + 1) * hop].reshape(T1 + 1, hop)
    frames = jnp.concatenate([A[:T1], A[1:T1 + 1]], axis=1).T      # [L, T1]

    # ---- fused encoder / acc-encoder ----
    w_feat, e_audio = _encoder_call(pp, frames, N, Bc, T1)         # [N,T1],[Bc,T1]
    e_acc = _acc_call(pp, zs, N, Bc, T_acc)                        # [Bc, T1]

    # ---- multimodal concat + fused separation stack (grid over blocks) ----
    e = jnp.concatenate([e_audio, e_acc], axis=0)                  # [2Bc, T1]
    e = _tcn_call(pp, e, cfg)

    # ---- fused decoder chain -> per-frame outputs [L, T1] ----
    frames_o = _decoder_call(pp, e, w_feat, N, T1, L)

    # ---- overlap-add of the two half-frame streams (stride = L/2) + bias ----
    top = frames_o[:hop, :].T.reshape(-1)
    bot = frames_o[hop:, :].T.reshape(-1)
    zpad = jnp.zeros((hop,), F32)
    y = (jnp.concatenate([top, zpad]) + jnp.concatenate([zpad, bot])
         + pp["dec_final_b"][0])
    y = y[pad_io: y.shape[0] - pad_io]
    return y.reshape(1, 1, -1)


# ---------------------------------- main -------------------------------------

if __name__ == "__main__":
    # Small, consistent config (original: N=256, L=80, B=128, H=512, P=3, X=4,
    # R=2, acc length 400).
    N, L, Bc, H, P, X, R = 8, 16, 4, 8, 3, 2, 1
    num_spks = 1
    T_ACC = 32                        # acc-encoder time length (orig hardcoded 400)
    T_AUDIO = 224                     # chosen so encoder output length == T_ACC
    IO_PAD = 20
    hop = L // 2

    T1 = (T_AUDIO + 2 * IO_PAD - L) // hop + 1
    assert T1 == T_ACC, (T1, T_ACC)
    assert L == 2 * hop

    kg = KeyGen(1234)
    raw = init_params(kg, N, L, Bc, H, P, X, R, T_ACC, num_spks)
    pp = prepare_params(raw, L, P)
    cfg = {"L": L, "P": P, "io_pad": IO_PAD, "N": N, "B": Bc, "H": H,
           "dils": tuple(raw["dils"])}

    k1, k2 = jax.random.split(jax.random.PRNGKey(0))
    x = jax.random.normal(k1, (1, T_AUDIO), F32)       # audio  [B, T]
    z = jax.random.normal(k2, (1, 1, T_ACC), F32)      # accel  [B, 1, T_acc]

    fwd = jax.jit(functools.partial(conv_tasnet_forward, cfg))
    out = jax.block_until_ready(fwd(pp, z, x))

    expected_T = (T1 + 1) * hop - 2 * IO_PAD
    assert out.shape == (1, 1, expected_T), out.shape
    assert bool(jnp.all(jnp.isfinite(out)))
    print("KERNEL_OK")
</pallas_src>

<mosaic_0001>
module attributes {stable_mosaic.version = 11 : i64} {
  func.func @kernel(%arg0: memref<1x32xf32, #tpu.memory_space<vmem>>, %arg1: memref<3x8x1xf32, #tpu.memory_space<vmem>>, %arg2: memref<8x1xf32, #tpu.memory_space<vmem>>, %arg3: memref<3x8x8xbf16, #tpu.memory_space<vmem>>, %arg4: memref<8x1xf32, #tpu.memory_space<vmem>>, %arg5: memref<3x8x8xbf16, #tpu.memory_space<vmem>>, %arg6: memref<8x1xf32, #tpu.memory_space<vmem>>, %arg7: memref<3x8x8xbf16, #tpu.memory_space<vmem>>, %arg8: memref<8x1xf32, #tpu.memory_space<vmem>>, %arg9: memref<3x8x8xbf16, #tpu.memory_space<vmem>>, %arg10: memref<8x1xf32, #tpu.memory_space<vmem>>, %arg11: memref<3x8x8xbf16, #tpu.memory_space<vmem>>, %arg12: memref<8x1xf32, #tpu.memory_space<vmem>>, %arg13: memref<1x32xf32, #tpu.memory_space<vmem>>, %arg14: memref<1x32xf32, #tpu.memory_space<vmem>>, %arg15: memref<1x32xf32, #tpu.memory_space<vmem>>, %arg16: memref<1x32xf32, #tpu.memory_space<vmem>>, %arg17: memref<1x32xf32, #tpu.memory_space<vmem>>, %arg18: memref<1x32xf32, #tpu.memory_space<vmem>>, %arg19: memref<5xf32, #tpu.memory_space<smem>>, %arg20: memref<4x8xbf16, #tpu.memory_space<vmem>>, %arg21: memref<4x1xf32, #tpu.memory_space<vmem>>, %arg22: memref<4x32xf32, #tpu.memory_space<vmem>>, %arg23: memref<8x288xf32, #tpu.memory_space<vmem>>) attributes {dimension_semantics = [], scalar_prefetch = 0 : i64, scratch_operands = 1 : i64, tpu.core_type = #tpu.core_type<tc>} {
    %cst = arith.constant 0.000000e+00 : f32
    %0 = vector.broadcast %cst : f32 to vector<8x288xf32>
    %c0 = arith.constant 0 : index
    %c0_0 = arith.constant 0 : index
    %1 = vector.load %arg23[%c0, %c0_0] : memref<8x288xf32, #tpu.memory_space<vmem>>, vector<8x288xf32>
    tpu.vector_store %arg23[%c0, %c0_0], %0 {strides = array<i32>} : memref<8x288xf32, #tpu.memory_space<vmem>>, vector<8x288xf32>,
    %c0_1 = arith.constant 0 : index
    %c0_2 = arith.constant 0 : index
    %2 = vector.load %arg0[%c0_1, %c0_2] : memref<1x32xf32, #tpu.memory_space<vmem>>, vector<1x32xf32>
    %c0_3 = arith.constant 0 : index
    %c128 = arith.constant 128 : index
    %3 = vector.load %arg23[%c0_3, %c128] : memref<8x288xf32, #tpu.memory_space<vmem>>, vector<1x32xf32>
    tpu.vector_store %arg23[%c0_3, %c128], %2 {strides = array<i32>} : memref<8x288xf32, #tpu.memory_space<vmem>>, vector<1x32xf32>,
    %c0_4 = arith.constant 0 : index
    %c0_5 = arith.constant 0 : index
    %4 = vector.load %arg23[%c0_4, %c0_5] : memref<8x288xf32, #tpu.memory_space<vmem>>, vector<8x288xf32>
    %5 = vector.extract_strided_slice %4 {offsets = [0, 127], sizes = [1, 34], strides = [1, 1]} : vector<8x288xf32> to vector<1x34xf32>
    %c0_6 = arith.constant 0 : index
    %c0_7 = arith.constant 0 : index
    %6 = vector.load %arg2[%c0_6, %c0_7] : memref<8x1xf32, #tpu.memory_space<vmem>>, vector<8x1xf32>
    %c0_8 = arith.constant 0 : index
    %c0_9 = arith.constant 0 : index
    %c0_10 = arith.constant 0 : index
    %7 = vector.load %arg1[%c0_8, %c0_9, %c0_10] : memref<3x8x1xf32, #tpu.memory_space<vmem>>, vector<1x8x1xf32>
    %8 = vector.shape_cast %7 : vector<1x8x1xf32> to vector<8x1xf32>
    %9 = vector.extract_strided_slice %5 {offsets = [0, 0], sizes = [1, 32], strides = [1, 1]} : vector<1x34xf32> to vector<1x32xf32>
    %10 = vector.broadcast %8 : vector<8x1xf32> to vector<8x32xf32>
    %11 = vector.broadcast %9 : vector<1x32xf32> to vector<8x32xf32>
    %12 = arith.mulf %10, %11 : vector<8x32xf32>
    %13 = vector.broadcast %6 : vector<8x1xf32> to vector<8x32xf32>
    %14 = arith.addf %13, %12 : vector<8x32xf32>
    %c1 = arith.constant 1 : index
    %c0_11 = arith.constant 0 : index
    %c0_12 = arith.constant 0 : index
    %15 = vector.load %arg1[%c1, %c0_11, %c0_12] : memref<3x8x1xf32, #tpu.memory_space<vmem>>, vector<1x8x1xf32>
    %16 = vector.shape_cast %15 : vector<1x8x1xf32> to vector<8x1xf32>
    %17 = vector.extract_strided_slice %5 {offsets = [0, 1], sizes = [1, 32], strides = [1, 1]} : vector<1x34xf32> to vector<1x32xf32>
    %18 = vector.broadcast %16 : vector<8x1xf32> to vector<8x32xf32>
    %19 = vector.broadcast %17 : vector<1x32xf32> to vector<8x32xf32>
    %20 = arith.mulf %18, %19 : vector<8x32xf32>
    %21 = arith.addf %14, %20 : vector<8x32xf32>
    %c2 = arith.constant 2 : index
    %c0_13 = arith.constant 0 : index
    %c0_14 = arith.constant 0 : index
    %22 = vector.load %arg1[%c2, %c0_13, %c0_14] : memref<3x8x1xf32, #tpu.memory_space<vmem>>, vector<1x8x1xf32>
    %23 = vector.shape_cast %22 : vector<1x8x1xf32> to vector<8x1xf32>
    %24 = vector.extract_strided_slice %5 {offsets = [0, 2], sizes = [1, 32], strides = [1, 1]} : vector<1x34xf32> to vector<1x32xf32>
    %25 = vector.broadcast %23 : vector<8x1xf32> to vector<8x32xf32>
    %26 = vector.broadcast %24 : vector<1x32xf32> to vector<8x32xf32>
    %27 = arith.mulf %25, %26 : vector<8x32xf32>
    %28 = arith.addf %21, %27 : vector<8x32xf32>
    %c0_15 = arith.constant 0 : index
    %c128_16 = arith.constant 128 : index
    %29 = vector.load %arg23[%c0_15, %c128_16] : memref<8x288xf32, #tpu.memory_space<vmem>>, vector<8x32xf32>
    tpu.vector_store %arg23[%c0_15, %c128_16], %28 {strides = array<i32>} : memref<8x288xf32, #tpu.memory_space<vmem>>, vector<8x32xf32>,
    %c0_17 = arith.constant 0 : index
    %c0_18 = arith.constant 0 : index
    %30 = vector.load %arg23[%c0_17, %c0_18] : memref<8x288xf32, #tpu.memory_space<vmem>>, vector<8x288xf32>
    %31 = vector.extract_strided_slice %30 {offsets = [0, 127], sizes = [8, 34], strides = [1, 1]} : vector<8x288xf32> to vector<8x34xf32>
    %32 = arith.truncf %31 : vector<8x34xf32> to vector<8x34xbf16>
    %c0_19 = arith.constant 0 : index
    %c0_20 = arith.constant 0 : index
    %33 = vector.load %arg4[%c0_19, %c0_20] : memref<8x1xf32, #tpu.memory_space<vmem>>, vector<8x1xf32>
    %c0_21 = arith.constant 0 : index
    %c0_22 = arith.constant 0 : index
    %c0_23 = arith.constant 0 : index
    %34 = vector.load %arg3[%c0_21, %c0_22, %c0_23] : memref<3x8x8xbf16, #tpu.memory_space<vmem>>, vector<1x8x8xbf16>
    %35 = vector.shape_cast %34 : vector<1x8x8xbf16> to vector<8x8xbf16>
    %36 = vector.extract_strided_slice %32 {offsets = [0, 0], sizes = [8, 32], strides = [1, 1]} : vector<8x34xbf16> to vector<8x32xbf16>
    %cst_24 = arith.constant dense<0.000000e+00> : vector<8x32xf32>
    %37 = tpu.matmul %35, %36, %cst_24 {dimension_numbers = #tpu.dot_dimension_numbers<[1], [0], [0], [1], [0, 0, 1, 1], [], []>} : vector<8x8xbf16>, vector<8x32xbf16>, vector<8x32xf32> -> vector<8x32xf32>
    %38 = vector.broadcast %33 : vector<8x1xf32> to vector<8x32xf32>
    %39 = arith.addf %38, %37 : vector<8x32xf32>
    %c1_25 = arith.constant 1 : index
    %c0_26 = arith.constant 0 : index
    %c0_27 = arith.constant 0 : index
    %40 = vector.load %arg3[%c1_25, %c0_26, %c0_27] : memref<3x8x8xbf16, #tpu.memory_space<vmem>>, vector<1x8x8xbf16>
    %41 = vector.shape_cast %40 : vector<1x8x8xbf16> to vector<8x8xbf16>
    %42 = vector.extract_strided_slice %32 {offsets = [0, 1], sizes = [8, 32], strides = [1, 1]} : vector<8x34xbf16> to vector<8x32xbf16>
    %cst_28 = arith.constant dense<0.000000e+00> : vector<8x32xf32>
    %43 = tpu.matmul %41, %42, %cst_28 {dimension_numbers = #tpu.dot_dimension_numbers<[1], [0], [0], [1], [0, 0, 1, 1], [], []>} : vector<8x8xbf16>, vector<8x32xbf16>, vector<8x32xf32> -> vector<8x32xf32>
    %44 = arith.addf %39, %43 : vector<8x32xf32>
    %c2_29 = arith.constant 2 : index
    %c0_30 = arith.constant 0 : index
    %c0_31 = arith.constant 0 : index
    %45 = vector.load %arg3[%c2_29, %c0_30, %c0_31] : memref<3x8x8xbf16, #tpu.memory_space<vmem>>, vector<1x8x8xbf16>
    %46 = vector.shape_cast %45 : vector<1x8x8xbf16> to vector<8x8xbf16>
    %47 = vector.extract_strided_slice %32 {offsets = [0, 2], sizes = [8, 32], strides = [1, 1]} : vector<8x34xbf16> to vector<8x32xbf16>
    %cst_32 = arith.constant dense<0.000000e+00> : vector<8x32xf32>
    %48 = tpu.matmul %46, %47, %cst_32 {dimension_numbers = #tpu.dot_dimension_numbers<[1], [0], [0], [1], [0, 0, 1, 1], [], []>} : vector<8x8xbf16>, vector<8x32xbf16>, vector<8x32xf32> -> vector<8x32xf32>
    %49 = arith.addf %44, %48 : vector<8x32xf32>
    %cst_33 = arith.constant dense<0.000000e+00> : vector<8xf32>
    %50 = vector.multi_reduction <add>, %49, %cst_33 [1] : vector<8x32xf32> to vector<8xf32>
    %51 = vector.shape_cast %50 : vector<8xf32> to vector<8x1xf32>
    %52 = arith.mulf %49, %49 : vector<8x32xf32>
    %cst_34 = arith.constant dense<0.000000e+00> : vector<8xf32>
    %53 = vector.multi_reduction <add>, %52, %cst_34 [1] : vector<8x32xf32> to vector<8xf32>
    %54 = vector.shape_cast %53 : vector<8xf32> to vector<8x1xf32>
    %cst_35 = arith.constant 3.200000e+01 : f32
    %55 = vector.broadcast %cst_35 : f32 to vector<8x1xf32>
    %56 = arith.divf %51, %55 : vector<8x1xf32>
    %cst_36 = arith.constant 3.200000e+01 : f32
    %57 = vector.broadcast %cst_36 : f32 to vector<8x1xf32>
    %58 = arith.divf %54, %57 : vector<8x1xf32>
    %59 = arith.mulf %56, %56 : vector<8x1xf32>
    %60 = arith.subf %58, %59 : vector<8x1xf32>
    %cst_37 = arith.constant 0.000000e+00 : f32
    %61 = vector.broadcast %cst_37 : f32 to vector<8x1xf32>
    %62 = arith.maximumf %60, %61 : vector<8x1xf32>
    %cst_38 = arith.constant 9.99999974E-6 : f32
    %63 = vector.broadcast %cst_38 : f32 to vector<8x1xf32>
    %64 = arith.addf %62, %63 : vector<8x1xf32>
    %65 = math.rsqrt %64 : vector<8x1xf32>
    %66 = vector.broadcast %56 : vector<8x1xf32> to vector<8x32xf32>
    %67 = arith.subf %49, %66 : vector<8x32xf32>
    %68 = vector.broadcast %65 : vector<8x1xf32> to vector<8x32xf32>
    %69 = arith.mulf %67, %68 : vector<8x32xf32>
    %c0_39 = arith.constant 0 : index
    %c0_40 = arith.constant 0 : index
    %70 = vector.load %arg13[%c0_39, %c0_40] : memref<1x32xf32, #tpu.memory_space<vmem>>, vector<1x32xf32>
    %71 = vector.broadcast %70 : vector<1x32xf32> to vector<8x32xf32>
    %72 = arith.mulf %69, %71 : vector<8x32xf32>
    %c0_41 = arith.constant 0 : index
    %c0_42 = arith.constant 0 : index
    %73 = vector.load %arg14[%c0_41, %c0_42] : memref<1x32xf32, #tpu.memory_space<vmem>>, vector<1x32xf32>
    %74 = vector.broadcast %73 : vector<1x32xf32> to vector<8x32xf32>
    %75 = arith.addf %72, %74 : vector<8x32xf32>
    %c0_43 = arith.constant 0 : index
    %76 = memref.load %arg19[%c0_43] : memref<5xf32, #tpu.memory_space<smem>>
    %cst_44 = arith.constant 0.000000e+00 : f32
    %77 = vector.broadcast %cst_44 : f32 to vector<8x32xf32>
    %78 = arith.cmpf oge, %75, %77 : vector<8x32xf32>
    %79 = vector.broadcast %76 : f32 to vector<8x32xf32>
    %80 = arith.mulf %79, %75 : vector<8x32xf32>
    %81 = arith.select %78, %75, %80 : vector<8x32xi1>, vector<8x32xf32>
    %c0_45 = arith.constant 0 : index
    %c128_46 = arith.constant 128 : index
    %82 = vector.load %arg23[%c0_45, %c128_46] : memref<8x288xf32, #tpu.memory_space<vmem>>, vector<8x32xf32>
    tpu.vector_store %arg23[%c0_45, %c128_46], %81 {strides = array<i32>} : memref<8x288xf32, #tpu.memory_space<vmem>>, vector<8x32xf32>,
    %c0_47 = arith.constant 0 : index
    %c0_48 = arith.constant 0 : index
    %83 = vector.load %arg23[%c0_47, %c0_48] : memref<8x288xf32, #tpu.memory_space<vmem>>, vector<8x288xf32>
    %84 = vector.extract_strided_slice %83 {offsets = [0, 127], sizes = [8, 34], strides = [1, 1]} : vector<8x288xf32> to vector<8x34xf32>
    %85 = arith.truncf %84 : vector<8x34xf32> to vector<8x34xbf16>
    %c0_49 = arith.constant 0 : index
    %c0_50 = arith.constant 0 : index
    %86 = vector.load %arg6[%c0_49, %c0_50] : memref<8x1xf32, #tpu.memory_space<vmem>>, vector<8x1xf32>
    %c0_51 = arith.constant 0 : index
    %c0_52 = arith.constant 0 : index
    %c0_53 = arith.constant 0 : index
    %87 = vector.load %arg5[%c0_51, %c0_52, %c0_53] : memref<3x8x8xbf16, #tpu.memory_space<vmem>>, vector<1x8x8xbf16>
    %88 = vector.shape_cast %87 : vector<1x8x8xbf16> to vector<8x8xbf16>
    %89 = vector.extract_strided_slice %85 {offsets = [0, 0], sizes = [8, 32], strides = [1, 1]} : vector<8x34xbf16> to vector<8x32xbf16>
    %cst_54 = arith.constant dense<0.000000e+00> : vector<8x32xf32>
    %90 = tpu.matmul %88, %89, %cst_54 {dimension_numbers = #tpu.dot_dimension_numbers<[1], [0], [0], [1], [0, 0, 1, 1], [], []>} : vector<8x8xbf16>, vector<8x32xbf16>, vector<8x32xf32> -> vector<8x32xf32>
    %91 = vector.broadcast %86 : vector<8x1xf32> to vector<8x32xf32>
    %92 = arith.addf %91, %90 : vector<8x32xf32>
    %c1_55 = arith.constant 1 : index
    %c0_56 = arith.constant 0 : index
    %c0_57 = arith.constant 0 : index
    %93 = vector.load %arg5[%c1_55, %c0_56, %c0_57] : memref<3x8x8xbf16, #tpu.memory_space<vmem>>, vector<1x8x8xbf16>
    %94 = vector.shape_cast %93 : vector<1x8x8xbf16> to vector<8x8xbf16>
    %95 = vector.extract_strided_slice %85 {offsets = [0, 1], sizes = [8, 32], strides = [1, 1]} : vector<8x34xbf16> to vector<8x32xbf16>
    %cst_58 = arith.constant dense<0.000000e+00> : vector<8x32xf32>
    %96 = tpu.matmul %94, %95, %cst_58 {dimension_numbers = #tpu.dot_dimension_numbers<[1], [0], [0], [1], [0, 0, 1, 1], [], []>} : vector<8x8xbf16>, vector<8x32xbf16>, vector<8x32xf32> -> vector<8x32xf32>
    %97 = arith.addf %92, %96 : vector<8x32xf32>
    %c2_59 = arith.constant 2 : index
    %c0_60 = arith.constant 0 : index
    %c0_61 = arith.constant 0 : index
    %98 = vector.load %arg5[%c2_59, %c0_60, %c0_61] : memref<3x8x8xbf16, #tpu.memory_space<vmem>>, vector<1x8x8xbf16>
    %99 = vector.shape_cast %98 : vector<1x8x8xbf16> to vector<8x8xbf16>
    %100 = vector.extract_strided_slice %85 {offsets = [0, 2], sizes = [8, 32], strides = [1, 1]} : vector<8x34xbf16> to vector<8x32xbf16>
    %cst_62 = arith.constant dense<0.000000e+00> : vector<8x32xf32>
    %101 = tpu.matmul %99, %100, %cst_62 {dimension_numbers = #tpu.dot_dimension_numbers<[1], [0], [0], [1], [0, 0, 1, 1], [], []>} : vector<8x8xbf16>, vector<8x32xbf16>, vector<8x32xf32> -> vector<8x32xf32>
    %102 = arith.addf %97, %101 : vector<8x32xf32>
    %cst_63 = arith.constant dense<0.000000e+00> : vector<8xf32>
    %103 = vector.multi_reduction <add>, %102, %cst_63 [1] : vector<8x32xf32> to vector<8xf32>
    %104 = vector.shape_cast %103 : vector<8xf32> to vector<8x1xf32>
    %105 = arith.mulf %102, %102 : vector<8x32xf32>
    %cst_64 = arith.constant dense<0.000000e+00> : vector<8xf32>
    %106 = vector.multi_reduction <add>, %105, %cst_64 [1] : vector<8x32xf32> to vector<8xf32>
    %107 = vector.shape_cast %106 : vector<8xf32> to vector<8x1xf32>
    %cst_65 = arith.constant 3.200000e+01 : f32
    %108 = vector.broadcast %cst_65 : f32 to vector<8x1xf32>
    %109 = arith.divf %104, %108 : vector<8x1xf32>
    %cst_66 = arith.constant 3.200000e+01 : f32
    %110 = vector.broadcast %cst_66 : f32 to vector<8x1xf32>
    %111 = arith.divf %107, %110 : vector<8x1xf32>
    %112 = arith.mulf %109, %109 : vector<8x1xf32>
    %113 = arith.subf %111, %112 : vector<8x1xf32>
    %cst_67 = arith.constant 0.000000e+00 : f32
    %114 = vector.broadcast %cst_67 : f32 to vector<8x1xf32>
    %115 = arith.maximumf %113, %114 : vector<8x1xf32>
    %cst_68 = arith.constant 9.99999974E-6 : f32
    %116 = vector.broadcast %cst_68 : f32 to vector<8x1xf32>
    %117 = arith.addf %115, %116 : vector<8x1xf32>
    %118 = math.rsqrt %117 : vector<8x1xf32>
    %119 = vector.broadcast %109 : vector<8x1xf32> to vector<8x32xf32>
    %120 = arith.subf %102, %119 : vector<8x32xf32>
    %121 = vector.broadcast %118 : vector<8x1xf32> to vector<8x32xf32>
    %122 = arith.mulf %120, %121 : vector<8x32xf32>
    %c0_69 = arith.constant 0 : index
    %c0_70 = arith.constant 0 : index
    %123 = vector.load %arg15[%c0_69, %c0_70] : memref<1x32xf32, #tpu.memory_space<vmem>>, vector<1x32xf32>
    %124 = vector.broadcast %123 : vector<1x32xf32> to vector<8x32xf32>
    %125 = arith.mulf %122, %124 : vector<8x32xf32>
    %c0_71 = arith.constant 0 : index
    %c0_72 = arith.constant 0 : index
    %126 = vector.load %arg16[%c0_71, %c0_72] : memref<1x32xf32, #tpu.memory_space<vmem>>, vector<1x32xf32>
    %127 = vector.broadcast %126 : vector<1x32xf32> to vector<8x32xf32>
    %128 = arith.addf %125, %127 : vector<8x32xf32>
    %c1_73 = arith.constant 1 : index
    %129 = memref.load %arg19[%c1_73] : memref<5xf32, #tpu.memory_space<smem>>
    %cst_74 = arith.constant 0.000000e+00 : f32
    %130 = vector.broadcast %cst_74 : f32 to vector<8x32xf32>
    %131 = arith.cmpf oge, %128, %130 : vector<8x32xf32>
    %132 = vector.broadcast %129 : f32 to vector<8x32xf32>
    %133 = arith.mulf %132, %128 : vector<8x32xf32>
    %134 = arith.select %131, %128, %133 : vector<8x32xi1>, vector<8x32xf32>
    %c0_75 = arith.constant 0 : index
    %c128_76 = arith.constant 128 : index
    %135 = vector.load %arg23[%c0_75, %c128_76] : memref<8x288xf32, #tpu.memory_space<vmem>>, vector<8x32xf32>
    tpu.vector_store %arg23[%c0_75, %c128_76], %134 {strides = array<i32>} : memref<8x288xf32, #tpu.memory_space<vmem>>, vector<8x32xf32>,
    %c0_77 = arith.constant 0 : index
    %c0_78 = arith.constant 0 : index
    %136 = vector.load %arg23[%c0_77, %c0_78] : memref<8x288xf32, #tpu.memory_space<vmem>>, vector<8x288xf32>
    %137 = vector.extract_strided_slice %136 {offsets = [0, 127], sizes = [8, 34], strides = [1, 1]} : vector<8x288xf32> to vector<8x34xf32>
    %138 = arith.truncf %137 : vector<8x34xf32> to vector<8x34xbf16>
    %c0_79 = arith.constant 0 : index
    %c0_80 = arith.constant 0 : index
    %139 = vector.load %arg8[%c0_79, %c0_80] : memref<8x1xf32, #tpu.memory_space<vmem>>, vector<8x1xf32>
    %c0_81 = arith.constant 0 : index
    %c0_82 = arith.constant 0 : index
    %c0_83 = arith.constant 0 : index
    %140 = vector.load %arg7[%c0_81, %c0_82, %c0_83] : memref<3x8x8xbf16, #tpu.memory_space<vmem>>, vector<1x8x8xbf16>
    %141 = vector.shape_cast %140 : vector<1x8x8xbf16> to vector<8x8xbf16>
    %142 = vector.extract_strided_slice %138 {offsets = [0, 0], sizes = [8, 32], strides = [1, 1]} : vector<8x34xbf16> to vector<8x32xbf16>
    %cst_84 = arith.constant dense<0.000000e+00> : vector<8x32xf32>
    %143 = tpu.matmul %141, %142, %cst_84 {dimension_numbers = #tpu.dot_dimension_numbers<[1], [0], [0], [1], [0, 0, 1, 1], [], []>} : vector<8x8xbf16>, vector<8x32xbf16>, vector<8x32xf32> -> vector<8x32xf32>
    %144 = vector.broadcast %139 : vector<8x1xf32> to vector<8x32xf32>
    %145 = arith.addf %144, %143 : vector<8x32xf32>
    %c1_85 = arith.constant 1 : index
    %c0_86 = arith.constant 0 : index
    %c0_87 = arith.constant 0 : index
    %146 = vector.load %arg7[%c1_85, %c0_86, %c0_87] : memref<3x8x8xbf16, #tpu.memory_space<vmem>>, vector<1x8x8xbf16>
    %147 = vector.shape_cast %146 : vector<1x8x8xbf16> to vector<8x8xbf16>
    %148 = vector.extract_strided_slice %138 {offsets = [0, 1], sizes = [8, 32], strides = [1, 1]} : vector<8x34xbf16> to vector<8x32xbf16>
    %cst_88 = arith.constant dense<0.000000e+00> : vector<8x32xf32>
    %149 = tpu.matmul %147, %148, %cst_88 {dimension_numbers = #tpu.dot_dimension_numbers<[1], [0], [0], [1], [0, 0, 1, 1], [], []>} : vector<8x8xbf16>, vector<8x32xbf16>, vector<8x32xf32> -> vector<8x32xf32>
    %150 = arith.addf %145, %149 : vector<8x32xf32>
    %c2_89 = arith.constant 2 : index
    %c0_90 = arith.constant 0 : index
    %c0_91 = arith.constant 0 : index
    %151 = vector.load %arg7[%c2_89, %c0_90, %c0_91] : memref<3x8x8xbf16, #tpu.memory_space<vmem>>, vector<1x8x8xbf16>
    %152 = vector.shape_cast %151 : vector<1x8x8xbf16> to vector<8x8xbf16>
    %153 = vector.extract_strided_slice %138 {offsets = [0, 2], sizes = [8, 32], strides = [1, 1]} : vector<8x34xbf16> to vector<8x32xbf16>
    %cst_92 = arith.constant dense<0.000000e+00> : vector<8x32xf32>
    %154 = tpu.matmul %152, %153, %cst_92 {dimension_numbers = #tpu.dot_dimension_numbers<[1], [0], [0], [1], [0, 0, 1, 1], [], []>} : vector<8x8xbf16>, vector<8x32xbf16>, vector<8x32xf32> -> vector<8x32xf32>
    %155 = arith.addf %150, %154 : vector<8x32xf32>
    %cst_93 = arith.constant dense<0.000000e+00> : vector<8xf32>
    %156 = vector.multi_reduction <add>, %155, %cst_93 [1] : vector<8x32xf32> to vector<8xf32>
    %157 = vector.shape_cast %156 : vector<8xf32> to vector<8x1xf32>
    %158 = arith.mulf %155, %155 : vector<8x32xf32>
    %cst_94 = arith.constant dense<0.000000e+00> : vector<8xf32>
    %159 = vector.multi_reduction <add>, %158, %cst_94 [1] : vector<8x32xf32> to vector<8xf32>
    %160 = vector.shape_cast %159 : vector<8xf32> to vector<8x1xf32>
    %cst_95 = arith.constant 3.200000e+01 : f32
    %161 = vector.broadcast %cst_95 : f32 to vector<8x1xf32>
    %162 = arith.divf %157, %161 : vector<8x1xf32>
    %cst_96 = arith.constant 3.200000e+01 : f32
    %163 = vector.broadcast %cst_96 : f32 to vector<8x1xf32>
    %164 = arith.divf %160, %163 : vector<8x1xf32>
    %165 = arith.mulf %162, %162 : vector<8x1xf32>
    %166 = arith.subf %164, %165 : vector<8x1xf32>
    %cst_97 = arith.constant 0.000000e+00 : f32
    %167 = vector.broadcast %cst_97 : f32 to vector<8x1xf32>
    %168 = arith.maximumf %166, %167 : vector<8x1xf32>
    %cst_98 = arith.constant 9.99999974E-6 : f32
    %169 = vector.broadcast %cst_98 : f32 to vector<8x1xf32>
    %170 = arith.addf %168, %169 : vector<8x1xf32>
    %171 = math.rsqrt %170 : vector<8x1xf32>
    %172 = vector.broadcast %162 : vector<8x1xf32> to vector<8x32xf32>
    %173 = arith.subf %155, %172 : vector<8x32xf32>
    %174 = vector.broadcast %171 : vector<8x1xf32> to vector<8x32xf32>
    %175 = arith.mulf %173, %174 : vector<8x32xf32>
    %c0_99 = arith.constant 0 : index
    %c0_100 = arith.constant 0 : index
    %176 = vector.load %arg17[%c0_99, %c0_100] : memref<1x32xf32, #tpu.memory_space<vmem>>, vector<1x32xf32>
    %177 = vector.broadcast %176 : vector<1x32xf32> to vector<8x32xf32>
    %178 = arith.mulf %175, %177 : vector<8x32xf32>
    %c0_101 = arith.constant 0 : index
    %c0_102 = arith.constant 0 : index
    %179 = vector.load %arg18[%c0_101, %c0_102] : memref<1x32xf32, #tpu.memory_space<vmem>>, vector<1x32xf32>
    %180 = vector.broadcast %179 : vector<1x32xf32> to vector<8x32xf32>
    %181 = arith.addf %178, %180 : vector<8x32xf32>
    %c2_103 = arith.constant 2 : index
    %182 = memref.load %arg19[%c2_103] : memref<5xf32, #tpu.memory_space<smem>>
    %cst_104 = arith.constant 0.000000e+00 : f32
    %183 = vector.broadcast %cst_104 : f32 to vector<8x32xf32>
    %184 = arith.cmpf oge, %181, %183 : vector<8x32xf32>
    %185 = vector.broadcast %182 : f32 to vector<8x32xf32>
    %186 = arith.mulf %185, %181 : vector<8x32xf32>
    %187 = arith.select %184, %181, %186 : vector<8x32xi1>, vector<8x32xf32>
    %c0_105 = arith.constant 0 : index
    %c128_106 = arith.constant 128 : index
    %188 = vector.load %arg23[%c0_105, %c128_106] : memref<8x288xf32, #tpu.memory_space<vmem>>, vector<8x32xf32>
    tpu.vector_store %arg23[%c0_105, %c128_106], %187 {strides = array<i32>} : memref<8x288xf32, #tpu.memory_space<vmem>>, vector<8x32xf32>,
    %c0_107 = arith.constant 0 : index
    %c0_108 = arith.constant 0 : index
    %189 = vector.load %arg23[%c0_107, %c0_108] : memref<8x288xf32, #tpu.memory_space<vmem>>, vector<8x288xf32>
    %190 = vector.extract_strided_slice %189 {offsets = [0, 127], sizes = [8, 34], strides = [1, 1]} : vector<8x288xf32> to vector<8x34xf32>
    %191 = arith.truncf %190 : vector<8x34xf32> to vector<8x34xbf16>
    %c0_109 = arith.constant 0 : index
    %c0_110 = arith.constant 0 : index
    %192 = vector.load %arg10[%c0_109, %c0_110] : memref<8x1xf32, #tpu.memory_space<vmem>>, vector<8x1xf32>
    %c0_111 = arith.constant 0 : index
    %c0_112 = arith.constant 0 : index
    %c0_113 = arith.constant 0 : index
    %193 = vector.load %arg9[%c0_111, %c0_112, %c0_113] : memref<3x8x8xbf16, #tpu.memory_space<vmem>>, vector<1x8x8xbf16>
    %194 = vector.shape_cast %193 : vector<1x8x8xbf16> to vector<8x8xbf16>
    %195 = vector.extract_strided_slice %191 {offsets = [0, 0], sizes = [8, 32], strides = [1, 1]} : vector<8x34xbf16> to vector<8x32xbf16>
    %cst_114 = arith.constant dense<0.000000e+00> : vector<8x32xf32>
    %196 = tpu.matmul %194, %195, %cst_114 {dimension_numbers = #tpu.dot_dimension_numbers<[1], [0], [0], [1], [0, 0, 1, 1], [], []>} : vector<8x8xbf16>, vector<8x32xbf16>, vector<8x32xf32> -> vector<8x32xf32>
    %197 = vector.broadcast %192 : vector<8x1xf32> to vector<8x32xf32>
    %198 = arith.addf %197, %196 : vector<8x32xf32>
    %c1_115 = arith.constant 1 : index
    %c0_116 = arith.constant 0 : index
    %c0_117 = arith.constant 0 : index
    %199 = vector.load %arg9[%c1_115, %c0_116, %c0_117] : memref<3x8x8xbf16, #tpu.memory_space<vmem>>, vector<1x8x8xbf16>
    %200 = vector.shape_cast %199 : vector<1x8x8xbf16> to vector<8x8xbf16>
    %201 = vector.extract_strided_slice %191 {offsets = [0, 1], sizes = [8, 32], strides = [1, 1]} : vector<8x34xbf16> to vector<8x32xbf16>
    %cst_118 = arith.constant dense<0.000000e+00> : vector<8x32xf32>
    %202 = tpu.matmul %200, %201, %cst_118 {dimension_numbers = #tpu.dot_dimension_numbers<[1], [0], [0], [1], [0, 0, 1, 1], [], []>} : vector<8x8xbf16>, vector<8x32xbf16>, vector<8x32xf32> -> vector<8x32xf32>
    %203 = arith.addf %198, %202 : vector<8x32xf32>
    %c2_119 = arith.constant 2 : index
    %c0_120 = arith.constant 0 : index
    %c0_121 = arith.constant 0 : index
    %204 = vector.load %arg9[%c2_119, %c0_120, %c0_121] : memref<3x8x8xbf16, #tpu.memory_space<vmem>>, vector<1x8x8xbf16>
    %205 = vector.shape_cast %204 : vector<1x8x8xbf16> to vector<8x8xbf16>
    %206 = vector.extract_strided_slice %191 {offsets = [0, 2], sizes = [8, 32], strides = [1, 1]} : vector<8x34xbf16> to vector<8x32xbf16>
    %cst_122 = arith.constant dense<0.000000e+00> : vector<8x32xf32>
    %207 = tpu.matmul %205, %206, %cst_122 {dimension_numbers = #tpu.dot_dimension_numbers<[1], [0], [0], [1], [0, 0, 1, 1], [], []>} : vector<8x8xbf16>, vector<8x32xbf16>, vector<8x32xf32> -> vector<8x32xf32>
    %208 = arith.addf %203, %207 : vector<8x32xf32>
    %c3 = arith.constant 3 : index
    %209 = memref.load %arg19[%c3] : memref<5xf32, #tpu.memory_space<smem>>
    %cst_123 = arith.constant 0.000000e+00 : f32
    %210 = vector.broadcast %cst_123 : f32 to vector<8x32xf32>
    %211 = arith.cmpf oge, %208, %210 : vector<8x32xf32>
    %212 = vector.broadcast %209 : f32 to vector<8x32xf32>
    %213 = arith.mulf %212, %208 : vector<8x32xf32>
    %214 = arith.select %211, %208, %213 : vector<8x32xi1>, vector<8x32xf32>
    %c0_124 = arith.constant 0 : index
    %c128_125 = arith.constant 128 : index
    %215 = vector.load %arg23[%c0_124, %c128_125] : memref<8x288xf32, #tpu.memory_space<vmem>>, vector<8x32xf32>
    tpu.vector_store %arg23[%c0_124, %c128_125], %214 {strides = array<i32>} : memref<8x288xf32, #tpu.memory_space<vmem>>, vector<8x32xf32>,
    %c0_126 = arith.constant 0 : index
    %c0_127 = arith.constant 0 : index
    %216 = vector.load %arg23[%c0_126, %c0_127] : memref<8x288xf32, #tpu.memory_space<vmem>>, vector<8x288xf32>
    %217 = vector.extract_strided_slice %216 {offsets = [0, 127], sizes = [8, 34], strides = [1, 1]} : vector<8x288xf32> to vector<8x34xf32>
    %218 = arith.truncf %217 : vector<8x34xf32> to vector<8x34xbf16>
    %c0_128 = arith.constant 0 : index
    %c0_129 = arith.constant 0 : index
    %219 = vector.load %arg12[%c0_128, %c0_129] : memref<8x1xf32, #tpu.memory_space<vmem>>, vector<8x1xf32>
    %c0_130 = arith.constant 0 : index
    %c0_131 = arith.constant 0 : index
    %c0_132 = arith.constant 0 : index
    %220 = vector.load %arg11[%c0_130, %c0_131, %c0_132] : memref<3x8x8xbf16, #tpu.memory_space<vmem>>, vector<1x8x8xbf16>
    %221 = vector.shape_cast %220 : vector<1x8x8xbf16> to vector<8x8xbf16>
    %222 = vector.extract_strided_slice %218 {offsets = [0, 0], sizes = [8, 32], strides = [1, 1]} : vector<8x34xbf16> to vector<8x32xbf16>
    %cst_133 = arith.constant dense<0.000000e+00> : vector<8x32xf32>
    %223 = tpu.matmul %221, %222, %cst_133 {dimension_numbers = #tpu.dot_dimension_numbers<[1], [0], [0], [1], [0, 0, 1, 1], [], []>} : vector<8x8xbf16>, vector<8x32xbf16>, vector<8x32xf32> -> vector<8x32xf32>
    %224 = vector.broadcast %219 : vector<8x1xf32> to vector<8x32xf32>
    %225 = arith.addf %224, %223 : vector<8x32xf32>
    %c1_134 = arith.constant 1 : index
    %c0_135 = arith.constant 0 : index
    %c0_136 = arith.constant 0 : index
    %226 = vector.load %arg11[%c1_134, %c0_135, %c0_136] : memref<3x8x8xbf16, #tpu.memory_space<vmem>>, vector<1x8x8xbf16>
    %227 = vector.shape_cast %226 : vector<1x8x8xbf16> to vector<8x8xbf16>
    %228 = vector.extract_strided_slice %218 {offsets = [0, 1], sizes = [8, 32], strides = [1, 1]} : vector<8x34xbf16> to vector<8x32xbf16>
    %cst_137 = arith.constant dense<0.000000e+00> : vector<8x32xf32>
    %229 = tpu.matmul %227, %228, %cst_137 {dimension_numbers = #tpu.dot_dimension_numbers<[1], [0], [0], [1], [0, 0, 1, 1], [], []>} : vector<8x8xbf16>, vector<8x32xbf16>, vector<8x32xf32> -> vector<8x32xf32>
    %230 = arith.addf %225, %229 : vector<8x32xf32>
    %c2_138 = arith.constant 2 : index
    %c0_139 = arith.constant 0 : index
    %c0_140 = arith.constant 0 : index
    %231 = vector.load %arg11[%c2_138, %c0_139, %c0_140] : memref<3x8x8xbf16, #tpu.memory_space<vmem>>, vector<1x8x8xbf16>
    %232 = vector.shape_cast %231 : vector<1x8x8xbf16> to vector<8x8xbf16>
    %233 = vector.extract_strided_slice %218 {offsets = [0, 2], sizes = [8, 32], strides = [1, 1]} : vector<8x34xbf16> to vector<8x32xbf16>
    %cst_141 = arith.constant dense<0.000000e+00> : vector<8x32xf32>
    %234 = tpu.matmul %232, %233, %cst_141 {dimension_numbers = #tpu.dot_dimension_numbers<[1], [0], [0], [1], [0, 0, 1, 1], [], []>} : vector<8x8xbf16>, vector<8x32xbf16>, vector<8x32xf32> -> vector<8x32xf32>
    %235 = arith.addf %230, %234 : vector<8x32xf32>
    %c4 = arith.constant 4 : index
    %236 = memref.load %arg19[%c4] : memref<5xf32, #tpu.memory_space<smem>>
    %cst_142 = arith.constant 0.000000e+00 : f32
    %237 = vector.broadcast %cst_142 : f32 to vector<8x32xf32>
    %238 = arith.cmpf oge, %235, %237 : vector<8x32xf32>
    %239 = vector.broadcast %236 : f32 to vector<8x32xf32>
    %240 = arith.mulf %239, %235 : vector<8x32xf32>
    %241 = arith.select %238, %235, %240 : vector<8x32xi1>, vector<8x32xf32>
    %c0_143 = arith.constant 0 : index
    %c0_144 = arith.constant 0 : index
    %242 = vector.load %arg20[%c0_143, %c0_144] : memref<4x8xbf16, #tpu.memory_space<vmem>>, vector<4x8xbf16>
    %243 = arith.truncf %241 : vector<8x32xf32> to vector<8x32xbf16>
    %cst_145 = arith.constant dense<0.000000e+00> : vector<4x32xf32>
    %244 = tpu.matmul %242, %243, %cst_145 {dimension_numbers = #tpu.dot_dimension_numbers<[1], [0], [0], [1], [0, 0, 1, 1], [], []>} : vector<4x8xbf16>, vector<8x32xbf16>, vector<4x32xf32> -> vector<4x32xf32>
    %c0_146 = arith.constant 0 : index
    %c0_147 = arith.constant 0 : index
    %245 = vector.load %arg21[%c0_146, %c0_147] : memref<4x1xf32, #tpu.memory_space<vmem>>, vector<4x1xf32>
    %246 = vector.broadcast %245 : vector<4x1xf32> to vector<4x32xf32>
    %247 = arith.addf %244, %246 : vector<4x32xf32>
    %248 = arith.negf %247 : vector<4x32xf32>
    %249 = math.exp %248 : vector<4x32xf32>
    %cst_148 = arith.constant 1.000000e+00 : f32
    %250 = vector.broadcast %cst_148 : f32 to vector<4x32xf32>
    %251 = arith.addf %250, %249 : vector<4x32xf32>
    %252 = arith.divf %250, %251 : vector<4x32xf32>
    %c0_149 = arith.constant 0 : index
    %c0_150 = arith.constant 0 : index
    %253 = vector.load %arg22[%c0_149, %c0_150] : memref<4x32xf32, #tpu.memory_space<vmem>>, vector<4x32xf32>
    tpu.vector_store %arg22[%c0_149, %c0_150], %252 {strides = array<i32>} : memref<4x32xf32, #tpu.memory_space<vmem>>, vector<4x32xf32>,
    return
  }
}

module attributes {stable_mosaic.version = 11 : i64} {
  func.func @kernel(%arg0: memref<16x32xf32, #tpu.memory_space<vmem>>, %arg1: memref<8x16xbf16, #tpu.memory_space<vmem>>, %arg2: memref<8x1xf32, #tpu.memory_space<vmem>>, %arg3: memref<3x8x8xbf16, #tpu.memory_space<vmem>>, %arg4: memref<8x1xf32, #tpu.memory_space<vmem>>, %arg5: memref<3x8x8xbf16, #tpu.memory_space<vmem>>, %arg6: memref<8x1xf32, #tpu.memory_space<vmem>>, %arg7: memref<3x8x8xbf16, #tpu.memory_space<vmem>>, %arg8: memref<8x1xf32, #tpu.memory_space<vmem>>, %arg9: memref<3xf32, #tpu.memory_space<smem>>, %arg10: memref<8x1xf32, #tpu.memory_space<vmem>>, %arg11: memref<8x1xf32, #tpu.memory_space<vmem>>, %arg12: memref<4x8xbf16, #tpu.memory_space<vmem>>, %arg13: memref<4x1xf32, #tpu.memory_space<vmem>>, %arg14: memref<8x32xf32, #tpu.memory_space<vmem>>, %arg15: memref<4x32xf32, #tpu.memory_space<vmem>>, %arg16: memref<8x288xf32, #tpu.memory_space<vmem>>) attributes {dimension_semantics = [], scalar_prefetch = 0 : i64, scratch_operands = 1 : i64, tpu.core_type = #tpu.core_type<tc>} {
    %cst = arith.constant 0.000000e+00 : f32
    %0 = vector.broadcast %cst : f32 to vector<8x288xf32>
    %c0 = arith.constant 0 : index
    %c0_0 = arith.constant 0 : index
    %1 = vector.load %arg16[%c0, %c0_0] : memref<8x288xf32, #tpu.memory_space<vmem>>, vector<8x288xf32>
    tpu.vector_store %arg16[%c0, %c0_0], %0 {strides = array<i32>} : memref<8x288xf32, #tpu.memory_space<vmem>>, vector<8x288xf32>,
    %c0_1 = arith.constant 0 : index
    %c0_2 = arith.constant 0 : index
    %2 = vector.load %arg1[%c0_1, %c0_2] : memref<8x16xbf16, #tpu.memory_space<vmem>>, vector<8x16xbf16>
    %c0_3 = arith.constant 0 : index
    %c0_4 = arith.constant 0 : index
    %3 = vector.load %arg0[%c0_3, %c0_4] : memref<16x32xf32, #tpu.memory_space<vmem>>, vector<16x32xf32>
    %4 = arith.truncf %3 : vector<16x32xf32> to vector<16x32xbf16>
    %cst_5 = arith.constant dense<0.000000e+00> : vector<8x32xf32>
    %5 = tpu.matmul %2, %4, %cst_5 {dimension_numbers = #tpu.dot_dimension_numbers<[1], [0], [0], [1], [0, 0, 1, 1], [], []>} : vector<8x16xbf16>, vector<16x32xbf16>, vector<8x32xf32> -> vector<8x32xf32>
    %c0_6 = arith.constant 0 : index
    %c0_7 = arith.constant 0 : index
    %6 = vector.load %arg2[%c0_6, %c0_7] : memref<8x1xf32, #tpu.memory_space<vmem>>, vector<8x1xf32>
    %7 = vector.broadcast %6 : vector<8x1xf32> to vector<8x32xf32>
    %8 = arith.addf %5, %7 : vector<8x32xf32>
    %c0_8 = arith.constant 0 : index
    %c128 = arith.constant 128 : index
    %9 = vector.load %arg16[%c0_8, %c128] : memref<8x288xf32, #tpu.memory_space<vmem>>, vector<8x32xf32>
    tpu.vector_store %arg16[%c0_8, %c128], %8 {strides = array<i32>} : memref<8x288xf32, #tpu.memory_space<vmem>>, vector<8x32xf32>,
    %c0_9 = arith.constant 0 : index
    %c0_10 = arith.constant 0 : index
    %10 = vector.load %arg16[%c0_9, %c0_10] : memref<8x288xf32, #tpu.memory_space<vmem>>, vector<8x288xf32>
    %11 = vector.extract_strided_slice %10 {offsets = [0, 127], sizes = [8, 34], strides = [1, 1]} : vector<8x288xf32> to vector<8x34xf32>
    %12 = arith.truncf %11 : vector<8x34xf32> to vector<8x34xbf16>
    %c0_11 = arith.constant 0 : index
    %c0_12 = arith.constant 0 : index
    %13 = vector.load %arg4[%c0_11, %c0_12] : memref<8x1xf32, #tpu.memory_space<vmem>>, vector<8x1xf32>
    %c0_13 = arith.constant 0 : index
    %c0_14 = arith.constant 0 : index
    %c0_15 = arith.constant 0 : index
    %14 = vector.load %arg3[%c0_13, %c0_14, %c0_15] : memref<3x8x8xbf16, #tpu.memory_space<vmem>>, vector<1x8x8xbf16>
    %15 = vector.shape_cast %14 : vector<1x8x8xbf16> to vector<8x8xbf16>
    %16 = vector.extract_strided_slice %12 {offsets = [0, 0], sizes = [8, 32], strides = [1, 1]} : vector<8x34xbf16> to vector<8x32xbf16>
    %cst_16 = arith.constant dense<0.000000e+00> : vector<8x32xf32>
    %17 = tpu.matmul %15, %16, %cst_16 {dimension_numbers = #tpu.dot_dimension_numbers<[1], [0], [0], [1], [0, 0, 1, 1], [], []>} : vector<8x8xbf16>, vector<8x32xbf16>, vector<8x32xf32> -> vector<8x32xf32>
    %18 = vector.broadcast %13 : vector<8x1xf32> to vector<8x32xf32>
    %19 = arith.addf %18, %17 : vector<8x32xf32>
    %c1 = arith.constant 1 : index
    %c0_17 = arith.constant 0 : index
    %c0_18 = arith.constant 0 : index
    %20 = vector.load %arg3[%c1, %c0_17, %c0_18] : memref<3x8x8xbf16, #tpu.memory_space<vmem>>, vector<1x8x8xbf16>
    %21 = vector.shape_cast %20 : vector<1x8x8xbf16> to vector<8x8xbf16>
    %22 = vector.extract_strided_slice %12 {offsets = [0, 1], sizes = [8, 32], strides = [1, 1]} : vector<8x34xbf16> to vector<8x32xbf16>
    %cst_19 = arith.constant dense<0.000000e+00> : vector<8x32xf32>
    %23 = tpu.matmul %21, %22, %cst_19 {dimension_numbers = #tpu.dot_dimension_numbers<[1], [0], [0], [1], [0, 0, 1, 1], [], []>} : vector<8x8xbf16>, vector<8x32xbf16>, vector<8x32xf32> -> vector<8x32xf32>
    %24 = arith.addf %19, %23 : vector<8x32xf32>
    %c2 = arith.constant 2 : index
    %c0_20 = arith.constant 0 : index
    %c0_21 = arith.constant 0 : index
    %25 = vector.load %arg3[%c2, %c0_20, %c0_21] : memref<3x8x8xbf16, #tpu.memory_space<vmem>>, vector<1x8x8xbf16>
    %26 = vector.shape_cast %25 : vector<1x8x8xbf16> to vector<8x8xbf16>
    %27 = vector.extract_strided_slice %12 {offsets = [0, 2], sizes = [8, 32], strides = [1, 1]} : vector<8x34xbf16> to vector<8x32xbf16>
    %cst_22 = arith.constant dense<0.000000e+00> : vector<8x32xf32>
    %28 = tpu.matmul %26, %27, %cst_22 {dimension_numbers = #tpu.dot_dimension_numbers<[1], [0], [0], [1], [0, 0, 1, 1], [], []>} : vector<8x8xbf16>, vector<8x32xbf16>, vector<8x32xf32> -> vector<8x32xf32>
    %29 = arith.addf %24, %28 : vector<8x32xf32>
    %c0_23 = arith.constant 0 : index
    %30 = memref.load %arg9[%c0_23] : memref<3xf32, #tpu.memory_space<smem>>
    %cst_24 = arith.constant 0.000000e+00 : f32
    %31 = vector.broadcast %cst_24 : f32 to vector<8x32xf32>
    %32 = arith.cmpf oge, %29, %31 : vector<8x32xf32>
    %33 = vector.broadcast %30 : f32 to vector<8x32xf32>
    %34 = arith.mulf %33, %29 : vector<8x32xf32>
    %35 = arith.select %32, %29, %34 : vector<8x32xi1>, vector<8x32xf32>
    %c0_25 = arith.constant 0 : index
    %c128_26 = arith.constant 128 : index
    %36 = vector.load %arg16[%c0_25, %c128_26] : memref<8x288xf32, #tpu.memory_space<vmem>>, vector<8x32xf32>
    tpu.vector_store %arg16[%c0_25, %c128_26], %35 {strides = array<i32>} : memref<8x288xf32, #tpu.memory_space<vmem>>, vector<8x32xf32>,
    %c0_27 = arith.constant 0 : index
    %c0_28 = arith.constant 0 : index
    %37 = vector.load %arg16[%c0_27, %c0_28] : memref<8x288xf32, #tpu.memory_space<vmem>>, vector<8x288xf32>
    %38 = vector.extract_strided_slice %37 {offsets = [0, 127], sizes = [8, 34], strides = [1, 1]} : vector<8x288xf32> to vector<8x34xf32>
    %39 = arith.truncf %38 : vector<8x34xf32> to vector<8x34xbf16>
    %c0_29 = arith.constant 0 : index
    %c0_30 = arith.constant 0 : index
    %40 = vector.load %arg6[%c0_29, %c0_30] : memref<8x1xf32, #tpu.memory_space<vmem>>, vector<8x1xf32>
    %c0_31 = arith.constant 0 : index
    %c0_32 = arith.constant 0 : index
    %c0_33 = arith.constant 0 : index
    %41 = vector.load %arg5[%c0_31, %c0_32, %c0_33] : memref<3x8x8xbf16, #tpu.memory_space<vmem>>, vector<1x8x8xbf16>
    %42 = vector.shape_cast %41 : vector<1x8x8xbf16> to vector<8x8xbf16>
    %43 = vector.extract_strided_slice %39 {offsets = [0, 0], sizes = [8, 32], strides = [1, 1]} : vector<8x34xbf16> to vector<8x32xbf16>
    %cst_34 = arith.constant dense<0.000000e+00> : vector<8x32xf32>
    %44 = tpu.matmul %42, %43, %cst_34 {dimension_numbers = #tpu.dot_dimension_numbers<[1], [0], [0], [1], [0, 0, 1, 1], [], []>} : vector<8x8xbf16>, vector<8x32xbf16>, vector<8x32xf32> -> vector<8x32xf32>
    %45 = vector.broadcast %40 : vector<8x1xf32> to vector<8x32xf32>
    %46 = arith.addf %45, %44 : vector<8x32xf32>
    %c1_35 = arith.constant 1 : index
    %c0_36 = arith.constant 0 : index
    %c0_37 = arith.constant 0 : index
    %47 = vector.load %arg5[%c1_35, %c0_36, %c0_37] : memref<3x8x8xbf16, #tpu.memory_space<vmem>>, vector<1x8x8xbf16>
    %48 = vector.shape_cast %47 : vector<1x8x8xbf16> to vector<8x8xbf16>
    %49 = vector.extract_strided_slice %39 {offsets = [0, 1], sizes = [8, 32], strides = [1, 1]} : vector<8x34xbf16> to vector<8x32xbf16>
    %cst_38 = arith.constant dense<0.000000e+00> : vector<8x32xf32>
    %50 = tpu.matmul %48, %49, %cst_38 {dimension_numbers = #tpu.dot_dimension_numbers<[1], [0], [0], [1], [0, 0, 1, 1], [], []>} : vector<8x8xbf16>, vector<8x32xbf16>, vector<8x32xf32> -> vector<8x32xf32>
    %51 = arith.addf %46, %50 : vector<8x32xf32>
    %c2_39 = arith.constant 2 : index
    %c0_40 = arith.constant 0 : index
    %c0_41 = arith.constant 0 : index
    %52 = vector.load %arg5[%c2_39, %c0_40, %c0_41] : memref<3x8x8xbf16, #tpu.memory_space<vmem>>, vector<1x8x8xbf16>
    %53 = vector.shape_cast %52 : vector<1x8x8xbf16> to vector<8x8xbf16>
    %54 = vector.extract_strided_slice %39 {offsets = [0, 2], sizes = [8, 32], strides = [1, 1]} : vector<8x34xbf16> to vector<8x32xbf16>
    %cst_42 = arith.constant dense<0.000000e+00> : vector<8x32xf32>
    %55 = tpu.matmul %53, %54, %cst_42 {dimension_numbers = #tpu.dot_dimension_numbers<[1], [0], [0], [1], [0, 0, 1, 1], [], []>} : vector<8x8xbf16>, vector<8x32xbf16>, vector<8x32xf32> -> vector<8x32xf32>
    %56 = arith.addf %51, %55 : vector<8x32xf32>
    %c1_43 = arith.constant 1 : index
    %57 = memref.load %arg9[%c1_43] : memref<3xf32, #tpu.memory_space<smem>>
    %cst_44 = arith.constant 0.000000e+00 : f32
    %58 = vector.broadcast %cst_44 : f32 to vector<8x32xf32>
    %59 = arith.cmpf oge, %56, %58 : vector<8x32xf32>
    %60 = vector.broadcast %57 : f32 to vector<8x32xf32>
    %61 = arith.mulf %60, %56 : vector<8x32xf32>
    %62 = arith.select %59, %56, %61 : vector<8x32xi1>, vector<8x32xf32>
    %c0_45 = arith.constant 0 : index
    %c128_46 = arith.constant 128 : index
    %63 = vector.load %arg16[%c0_45, %c128_46] : memref<8x288xf32, #tpu.memory_space<vmem>>, vector<8x32xf32>
    tpu.vector_store %arg16[%c0_45, %c128_46], %62 {strides = array<i32>} : memref<8x288xf32, #tpu.memory_space<vmem>>, vector<8x32xf32>,
    %c0_47 = arith.constant 0 : index
    %c0_48 = arith.constant 0 : index
    %64 = vector.load %arg16[%c0_47, %c0_48] : memref<8x288xf32, #tpu.memory_space<vmem>>, vector<8x288xf32>
    %65 = vector.extract_strided_slice %64 {offsets = [0, 127], sizes = [8, 34], strides = [1, 1]} : vector<8x288xf32> to vector<8x34xf32>
    %66 = arith.truncf %65 : vector<8x34xf32> to vector<8x34xbf16>
    %c0_49 = arith.constant 0 : index
    %c0_50 = arith.constant 0 : index
    %67 = vector.load %arg8[%c0_49, %c0_50] : memref<8x1xf32, #tpu.memory_space<vmem>>, vector<8x1xf32>
    %c0_51 = arith.constant 0 : index
    %c0_52 = arith.constant 0 : index
    %c0_53 = arith.constant 0 : index
    %68 = vector.load %arg7[%c0_51, %c0_52, %c0_53] : memref<3x8x8xbf16, #tpu.memory_space<vmem>>, vector<1x8x8xbf16>
    %69 = vector.shape_cast %68 : vector<1x8x8xbf16> to vector<8x8xbf16>
    %70 = vector.extract_strided_slice %66 {offsets = [0, 0], sizes = [8, 32], strides = [1, 1]} : vector<8x34xbf16> to vector<8x32xbf16>
    %cst_54 = arith.constant dense<0.000000e+00> : vector<8x32xf32>
    %71 = tpu.matmul %69, %70, %cst_54 {dimension_numbers = #tpu.dot_dimension_numbers<[1], [0], [0], [1], [0, 0, 1, 1], [], []>} : vector<8x8xbf16>, vector<8x32xbf16>, vector<8x32xf32> -> vector<8x32xf32>
    %72 = vector.broadcast %67 : vector<8x1xf32> to vector<8x32xf32>
    %73 = arith.addf %72, %71 : vector<8x32xf32>
    %c1_55 = arith.constant 1 : index
    %c0_56 = arith.constant 0 : index
    %c0_57 = arith.constant 0 : index
    %74 = vector.load %arg7[%c1_55, %c0_56, %c0_57] : memref<3x8x8xbf16, #tpu.memory_space<vmem>>, vector<1x8x8xbf16>
    %75 = vector.shape_cast %74 : vector<1x8x8xbf16> to vector<8x8xbf16>
    %76 = vector.extract_strided_slice %66 {offsets = [0, 1], sizes = [8, 32], strides = [1, 1]} : vector<8x34xbf16> to vector<8x32xbf16>
    %cst_58 = arith.constant dense<0.000000e+00> : vector<8x32xf32>
    %77 = tpu.matmul %75, %76, %cst_58 {dimension_numbers = #tpu.dot_dimension_numbers<[1], [0], [0], [1], [0, 0, 1, 1], [], []>} : vector<8x8xbf16>, vector<8x32xbf16>, vector<8x32xf32> -> vector<8x32xf32>
    %78 = arith.addf %73, %77 : vector<8x32xf32>
    %c2_59 = arith.constant 2 : index
    %c0_60 = arith.constant 0 : index
    %c0_61 = arith.constant 0 : index
    %79 = vector.load %arg7[%c2_59, %c0_60, %c0_61] : memref<3x8x8xbf16, #tpu.memory_space<vmem>>, vector<1x8x8xbf16>
    %80 = vector.shape_cast %79 : vector<1x8x8xbf16> to vector<8x8xbf16>
    %81 = vector.extract_strided_slice %66 {offsets = [0, 2], sizes = [8, 32], strides = [1, 1]} : vector<8x34xbf16> to vector<8x32xbf16>
    %cst_62 = arith.constant dense<0.000000e+00> : vector<8x32xf32>
    %82 = tpu.matmul %80, %81, %cst_62 {dimension_numbers = #tpu.dot_dimension_numbers<[1], [0], [0], [1], [0, 0, 1, 1], [], []>} : vector<8x8xbf16>, vector<8x32xbf16>, vector<8x32xf32> -> vector<8x32xf32>
    %83 = arith.addf %78, %82 : vector<8x32xf32>
    %c2_63 = arith.constant 2 : index
    %84 = memref.load %arg9[%c2_63] : memref<3xf32, #tpu.memory_space<smem>>
    %cst_64 = arith.constant 0.000000e+00 : f32
    %85 = vector.broadcast %cst_64 : f32 to vector<8x32xf32>
    %86 = arith.cmpf oge, %83, %85 : vector<8x32xf32>
    %87 = vector.broadcast %84 : f32 to vector<8x32xf32>
    %88 = arith.mulf %87, %83 : vector<8x32xf32>
    %89 = arith.select %86, %83, %88 : vector<8x32xi1>, vector<8x32xf32>
    %c0_65 = arith.constant 0 : index
    %c0_66 = arith.constant 0 : index
    %90 = vector.load %arg14[%c0_65, %c0_66] : memref<8x32xf32, #tpu.memory_space<vmem>>, vector<8x32xf32>
    tpu.vector_store %arg14[%c0_65, %c0_66], %89 {strides = array<i32>} : memref<8x32xf32, #tpu.memory_space<vmem>>, vector<8x32xf32>,
    %cst_67 = arith.constant dense<0.000000e+00> : vector<32xf32>
    %91 = vector.multi_reduction <add>, %89, %cst_67 [0] : vector<8x32xf32> to vector<32xf32>
    %92 = vector.shape_cast %91 : vector<32xf32> to vector<1x32xf32>
    %93 = arith.mulf %89, %89 : vector<8x32xf32>
    %cst_68 = arith.constant dense<0.000000e+00> : vector<32xf32>
    %94 = vector.multi_reduction <add>, %93, %cst_68 [0] : vector<8x32xf32> to vector<32xf32>
    %95 = vector.shape_cast %94 : vector<32xf32> to vector<1x32xf32>
    %cst_69 = arith.constant 8.000000e+00 : f32
    %96 = vector.broadcast %cst_69 : f32 to vector<1x32xf32>
    %97 = arith.divf %92, %96 : vector<1x32xf32>
    %cst_70 = arith.constant 8.000000e+00 : f32
    %98 = vector.broadcast %cst_70 : f32 to vector<1x32xf32>
    %99 = arith.divf %95, %98 : vector<1x32xf32>
    %100 = arith.mulf %97, %97 : vector<1x32xf32>
    %101 = arith.subf %99, %100 : vector<1x32xf32>
    %cst_71 = arith.constant 0.000000e+00 : f32
    %102 = vector.broadcast %cst_71 : f32 to vector<1x32xf32>
    %103 = arith.maximumf %101, %102 : vector<1x32xf32>
    %cst_72 = arith.constant 9.99999974E-6 : f32
    %104 = vector.broadcast %cst_72 : f32 to vector<1x32xf32>
    %105 = arith.addf %103, %104 : vector<1x32xf32>
    %106 = math.rsqrt %105 : vector<1x32xf32>
    %107 = vector.broadcast %97 : vector<1x32xf32> to vector<8x32xf32>
    %108 = arith.subf %89, %107 : vector<8x32xf32>
    %109 = vector.broadcast %106 : vector<1x32xf32> to vector<8x32xf32>
    %110 = arith.mulf %108, %109 : vector<8x32xf32>
    %c0_73 = arith.constant 0 : index
    %c0_74 = arith.constant 0 : index
    %111 = vector.load %arg10[%c0_73, %c0_74] : memref<8x1xf32, #tpu.memory_space<vmem>>, vector<8x1xf32>
    %112 = vector.broadcast %111 : vector<8x1xf32> to vector<8x32xf32>
    %113 = arith.mulf %110, %112 : vector<8x32xf32>
    %c0_75 = arith.constant 0 : index
    %c0_76 = arith.constant 0 : index
    %114 = vector.load %arg11[%c0_75, %c0_76] : memref<8x1xf32, #tpu.memory_space<vmem>>, vector<8x1xf32>
    %115 = vector.broadcast %114 : vector<8x1xf32> to vector<8x32xf32>
    %116 = arith.addf %113, %115 : vector<8x32xf32>
    %c0_77 = arith.constant 0 : index
    %c0_78 = arith.constant 0 : index
    %117 = vector.load %arg12[%c0_77, %c0_78] : memref<4x8xbf16, #tpu.memory_space<vmem>>, vector<4x8xbf16>
    %118 = arith.truncf %116 : vector<8x32xf32> to vector<8x32xbf16>
    %cst_79 = arith.constant dense<0.000000e+00> : vector<4x32xf32>
    %119 = tpu.matmul %117, %118, %cst_79 {dimension_numbers = #tpu.dot_dimension_numbers<[1], [0], [0], [1], [0, 0, 1, 1], [], []>} : vector<4x8xbf16>, vector<8x32xbf16>, vector<4x32xf32> -> vector<4x32xf32>
    %c0_80 = arith.constant 0 : index
    %c0_81 = arith.constant 0 : index
    %120 = vector.load %arg13[%c0_80, %c0_81] : memref<4x1xf32, #tpu.memory_space<vmem>>, vector<4x1xf32>
    %121 = vector.broadcast %120 : vector<4x1xf32> to vector<4x32xf32>
    %122 = arith.addf %119, %121 : vector<4x32xf32>
    %c0_82 = arith.constant 0 : index
    %c0_83 = arith.constant 0 : index
    %123 = vector.load %arg15[%c0_82, %c0_83] : memref<4x32xf32, #tpu.memory_space<vmem>>, vector<4x32xf32>
    tpu.vector_store %arg15[%c0_82, %c0_83], %122 {strides = array<i32>} : memref<4x32xf32, #tpu.memory_space<vmem>>, vector<4x32xf32>,
    return
  }
}

module attributes {stable_mosaic.version = 11 : i64} {
  func.func @kernel(%arg0: i32, %arg1: memref<2xi32, #tpu.memory_space<smem>>, %arg2: memref<8x32xf32, #tpu.memory_space<vmem>>, %arg3: memref<1x8x8xbf16, #tpu.memory_space<vmem>>, %arg4: memref<1x8x1xf32, #tpu.memory_space<vmem>>, %arg5: memref<1x8x1xf32, #tpu.memory_space<vmem>>, %arg6: memref<1x8x1xf32, #tpu.memory_space<vmem>>, %arg7: memref<1x8x1xf32, #tpu.memory_space<vmem>>, %arg8: memref<1x8x3xf32, #tpu.memory_space<vmem>>, %arg9: memref<1x8x1xf32, #tpu.memory_space<vmem>>, %arg10: memref<1x8x1xf32, #tpu.memory_space<vmem>>, %arg11: memref<1x8x1xf32, #tpu.memory_space<vmem>>, %arg12: memref<1x8x1xf32, #tpu.memory_space<vmem>>, %arg13: memref<1x8x8xbf16, #tpu.memory_space<vmem>>, %arg14: memref<1x8x1xf32, #tpu.memory_space<vmem>>, %arg15: memref<8x32xf32, #tpu.memory_space<vmem>>, %arg16: memref<8x288xf32, #tpu.memory_space<vmem>>) attributes {dimension_semantics = [#tpu.dimension_semantics<arbitrary>], iteration_bounds = array<i64: 2>, scalar_prefetch = 1 : i64, scratch_operands = 1 : i64, tpu.core_type = #tpu.core_type<tc>, window_params = [{pipeline_mode = #tpu.pipeline_mode<synchronous>, transform_indices = @transform_0, window_bounds = array<i64: 8, 32>}, {transform_indices = @transform_1, window_bounds = array<i64: 1, 8, 8>}, {transform_indices = @transform_2, window_bounds = array<i64: 1, 8, 1>}, {transform_indices = @transform_3, window_bounds = array<i64: 1, 8, 1>}, {transform_indices = @transform_4, window_bounds = array<i64: 1, 8, 1>}, {transform_indices = @transform_5, window_bounds = array<i64: 1, 8, 1>}, {transform_indices = @transform_6, window_bounds = array<i64: 1, 8, 3>}, {transform_indices = @transform_7, window_bounds = array<i64: 1, 8, 1>}, {transform_indices = @transform_8, window_bounds = array<i64: 1, 8, 1>}, {transform_indices = @transform_9, window_bounds = array<i64: 1, 8, 1>}, {transform_indices = @transform_10, window_bounds = array<i64: 1, 8, 1>}, {transform_indices = @transform_11, window_bounds = array<i64: 1, 8, 8>}, {transform_indices = @transform_12, window_bounds = array<i64: 1, 8, 1>}, {pipeline_mode = #tpu.pipeline_mode<synchronous>, transform_indices = @transform_13, window_bounds = array<i64: 8, 32>}]} {
    %c0_i32 = arith.constant 0 : i32
    %0 = arith.cmpi eq, %arg0, %c0_i32 : i32
    %1 = arith.extui %0 : i1 to i32
    %c0_i32_0 = arith.constant 0 : i32
    %2 = arith.cmpi ne, %1, %c0_i32_0 : i32
    scf.if %2 {
      %c0_59 = arith.constant 0 : index
      %c0_60 = arith.constant 0 : index
      %153 = vector.load %arg2[%c0_59, %c0_60] : memref<8x32xf32, #tpu.memory_space<vmem>>, vector<8x32xf32>
      %c0_61 = arith.constant 0 : index
      %c0_62 = arith.constant 0 : index
      %154 = vector.load %arg15[%c0_61, %c0_62] : memref<8x32xf32, #tpu.memory_space<vmem>>, vector<8x32xf32>
      tpu.vector_store %arg15[%c0_61, %c0_62], %153 {strides = array<i32>} : memref<8x32xf32, #tpu.memory_space<vmem>>, vector<8x32xf32>,
      %cst_63 = arith.constant 0.000000e+00 : f32
      %155 = vector.broadcast %cst_63 : f32 to vector<8x288xf32>
      %c0_64 = arith.constant 0 : index
      %c0_65 = arith.constant 0 : index
      %156 = vector.load %arg16[%c0_64, %c0_65] : memref<8x288xf32, #tpu.memory_space<vmem>>, vector<8x288xf32>
      tpu.vector_store %arg16[%c0_64, %c0_65], %155 {strides = array<i32>} : memref<8x288xf32, #tpu.memory_space<vmem>>, vector<8x288xf32>,
    } else {
    }
    %c0 = arith.constant 0 : index
    %c0_1 = arith.constant 0 : index
    %3 = vector.load %arg15[%c0, %c0_1] : memref<8x32xf32, #tpu.memory_space<vmem>>, vector<8x32xf32>
    %4 = arith.index_cast %arg0 : i32 to index
    %5 = memref.load %arg1[%4] : memref<2xi32, #tpu.memory_space<smem>>
    %c0_2 = arith.constant 0 : index
    %c0_3 = arith.constant 0 : index
    %c0_4 = arith.constant 0 : index
    %6 = vector.load %arg3[%c0_2, %c0_3, %c0_4] : memref<1x8x8xbf16, #tpu.memory_space<vmem>>, vector<1x8x8xbf16>
    %7 = vector.shape_cast %6 : vector<1x8x8xbf16> to vector<8x8xbf16>
    %8 = arith.truncf %3 : vector<8x32xf32> to vector<8x32xbf16>
    %cst = arith.constant dense<0.000000e+00> : vector<8x32xf32>
    %9 = tpu.matmul %7, %8, %cst {dimension_numbers = #tpu.dot_dimension_numbers<[1], [0], [0], [1], [0, 0, 1, 1], [], []>} : vector<8x8xbf16>, vector<8x32xbf16>, vector<8x32xf32> -> vector<8x32xf32>
    %c0_5 = arith.constant 0 : index
    %c0_6 = arith.constant 0 : index
    %c0_7 = arith.constant 0 : index
    %10 = vector.load %arg4[%c0_5, %c0_6, %c0_7] : memref<1x8x1xf32, #tpu.memory_space<vmem>>, vector<1x8x1xf32>
    %11 = vector.shape_cast %10 : vector<1x8x1xf32> to vector<8x1xf32>
    %12 = vector.broadcast %11 : vector<8x1xf32> to vector<8x32xf32>
    %13 = arith.addf %9, %12 : vector<8x32xf32>
    %c0_8 = arith.constant 0 : index
    %c0_9 = arith.constant 0 : index
    %c0_10 = arith.constant 0 : index
    %14 = vector.load %arg5[%c0_8, %c0_9, %c0_10] : memref<1x8x1xf32, #tpu.memory_space<vmem>>, vector<1x8x1xf32>
    %15 = vector.shape_cast %14 : vector<1x8x1xf32> to vector<8x1xf32>
    %cst_11 = arith.constant 0.000000e+00 : f32
    %16 = vector.broadcast %cst_11 : f32 to vector<8x32xf32>
    %17 = arith.cmpf oge, %13, %16 : vector<8x32xf32>
    %18 = vector.broadcast %15 : vector<8x1xf32> to vector<8x32xf32>
    %19 = arith.mulf %18, %13 : vector<8x32xf32>
    %20 = arith.select %17, %13, %19 : vector<8x32xi1>, vector<8x32xf32>
    %21 = vector.shape_cast %20 : vector<8x32xf32> to vector<1x8x32xf32>
    %cst_12 = arith.constant dense<0.000000e+00> : vector<1xf32>
    %22 = vector.multi_reduction <add>, %21, %cst_12 [1, 2] : vector<1x8x32xf32> to vector<1xf32>
    %23 = vector.shape_cast %22 : vector<1xf32> to vector<1x1x1xf32>
    %24 = vector.extract %23[0, 0, 0] : f32 from vector<1x1x1xf32>
    %25 = vector.broadcast %24 : f32 to vector<1x1xf32>
    %26 = arith.mulf %20, %20 : vector<8x32xf32>
    %27 = vector.shape_cast %26 : vector<8x32xf32> to vector<1x8x32xf32>
    %cst_13 = arith.constant dense<0.000000e+00> : vector<1xf32>
    %28 = vector.multi_reduction <add>, %27, %cst_13 [1, 2] : vector<1x8x32xf32> to vector<1xf32>
    %29 = vector.shape_cast %28 : vector<1xf32> to vector<1x1x1xf32>
    %30 = vector.extract %29[0, 0, 0] : f32 from vector<1x1x1xf32>
    %31 = vector.broadcast %30 : f32 to vector<1x1xf32>
    %cst_14 = arith.constant 2.560000e+02 : f32
    %32 = vector.broadcast %cst_14 : f32 to vector<1x1xf32>
    %33 = arith.divf %25, %32 : vector<1x1xf32>
    %cst_15 = arith.constant 2.560000e+02 : f32
    %34 = vector.broadcast %cst_15 : f32 to vector<1x1xf32>
    %35 = arith.divf %31, %34 : vector<1x1xf32>
    %36 = arith.mulf %33, %33 : vector<1x1xf32>
    %37 = arith.subf %35, %36 : vector<1x1xf32>
    %cst_16 = arith.constant 0.000000e+00 : f32
    %38 = vector.broadcast %cst_16 : f32 to vector<1x1xf32>
    %39 = arith.maximumf %37, %38 : vector<1x1xf32>
    %cst_17 = arith.constant 9.99999974E-6 : f32
    %40 = vector.broadcast %cst_17 : f32 to vector<1x1xf32>
    %41 = arith.addf %39, %40 : vector<1x1xf32>
    %42 = math.rsqrt %41 : vector<1x1xf32>
    %c0_18 = arith.constant 0 : index
    %c0_19 = arith.constant 0 : index
    %c0_20 = arith.constant 0 : index
    %43 = vector.load %arg6[%c0_18, %c0_19, %c0_20] : memref<1x8x1xf32, #tpu.memory_space<vmem>>, vector<1x8x1xf32>
    %44 = vector.shape_cast %43 : vector<1x8x1xf32> to vector<8x1xf32>
    %45 = vector.broadcast %33 : vector<1x1xf32> to vector<8x32xf32>
    %46 = arith.subf %20, %45 : vector<8x32xf32>
    %47 = vector.broadcast %44 : vector<8x1xf32> to vector<8x32xf32>
    %48 = arith.mulf %47, %46 : vector<8x32xf32>
    %49 = vector.broadcast %42 : vector<1x1xf32> to vector<8x32xf32>
    %50 = arith.mulf %48, %49 : vector<8x32xf32>
    %c0_21 = arith.constant 0 : index
    %c0_22 = arith.constant 0 : index
    %c0_23 = arith.constant 0 : index
    %51 = vector.load %arg7[%c0_21, %c0_22, %c0_23] : memref<1x8x1xf32, #tpu.memory_space<vmem>>, vector<1x8x1xf32>
    %52 = vector.shape_cast %51 : vector<1x8x1xf32> to vector<8x1xf32>
    %53 = vector.broadcast %52 : vector<8x1xf32> to vector<8x32xf32>
    %54 = arith.addf %50, %53 : vector<8x32xf32>
    %c0_24 = arith.constant 0 : index
    %c128 = arith.constant 128 : index
    %55 = vector.load %arg16[%c0_24, %c128] : memref<8x288xf32, #tpu.memory_space<vmem>>, vector<8x32xf32>
    tpu.vector_store %arg16[%c0_24, %c128], %54 {strides = array<i32>} : memref<8x288xf32, #tpu.memory_space<vmem>>, vector<8x32xf32>,
    %c0_25 = arith.constant 0 : index
    %c0_26 = arith.constant 0 : index
    %56 = vector.load %arg16[%c0_25, %c0_26] : memref<8x288xf32, #tpu.memory_space<vmem>>, vector<8x288xf32>
    %c0_27 = arith.constant 0 : index
    %c0_28 = arith.constant 0 : index
    %c0_29 = arith.constant 0 : index
    %57 = vector.load %arg8[%c0_27, %c0_28, %c0_29] : memref<1x8x3xf32, #tpu.memory_space<vmem>>, vector<1x8x3xf32>
    %58 = vector.shape_cast %57 : vector<1x8x3xf32> to vector<8x3xf32>
    %c0_30 = arith.constant 0 : index
    %c0_31 = arith.constant 0 : index
    %c0_32 = arith.constant 0 : index
    %59 = vector.load %arg9[%c0_30, %c0_31, %c0_32] : memref<1x8x1xf32, #tpu.memory_space<vmem>>, vector<1x8x1xf32>
    %60 = vector.shape_cast %59 : vector<1x8x1xf32> to vector<8x1xf32>
    %61 = vector.extract_strided_slice %56 {offsets = [0, 127], sizes = [8, 32], strides = [1, 1]} : vector<8x288xf32> to vector<8x32xf32>
    %62 = vector.extract_strided_slice %58 {offsets = [0, 0], sizes = [8, 1], strides = [1, 1]} : vector<8x3xf32> to vector<8x1xf32>
    %63 = vector.broadcast %62 : vector<8x1xf32> to vector<8x32xf32>
    %64 = arith.mulf %61, %63 : vector<8x32xf32>
    %65 = vector.broadcast %60 : vector<8x1xf32> to vector<8x32xf32>
    %66 = arith.addf %65, %64 : vector<8x32xf32>
    %67 = vector.extract_strided_slice %56 {offsets = [0, 128], sizes = [8, 32], strides = [1, 1]} : vector<8x288xf32> to vector<8x32xf32>
    %68 = vector.extract_strided_slice %58 {offsets = [0, 1], sizes = [8, 1], strides = [1, 1]} : vector<8x3xf32> to vector<8x1xf32>
    %69 = vector.broadcast %68 : vector<8x1xf32> to vector<8x32xf32>
    %70 = arith.mulf %67, %69 : vector<8x32xf32>
    %71 = arith.addf %66, %70 : vector<8x32xf32>
    %72 = vector.extract_strided_slice %56 {offsets = [0, 129], sizes = [8, 32], strides = [1, 1]} : vector<8x288xf32> to vector<8x32xf32>
    %73 = vector.extract_strided_slice %58 {offsets = [0, 2], sizes = [8, 1], strides = [1, 1]} : vector<8x3xf32> to vector<8x1xf32>
    %74 = vector.broadcast %73 : vector<8x1xf32> to vector<8x32xf32>
    %75 = arith.mulf %72, %74 : vector<8x32xf32>
    %76 = arith.addf %71, %75 : vector<8x32xf32>
    %77 = vector.extract_strided_slice %56 {offsets = [0, 126], sizes = [8, 32], strides = [1, 1]} : vector<8x288xf32> to vector<8x32xf32>
    %78 = vector.extract_strided_slice %58 {offsets = [0, 0], sizes = [8, 1], strides = [1, 1]} : vector<8x3xf32> to vector<8x1xf32>
    %79 = vector.broadcast %78 : vector<8x1xf32> to vector<8x32xf32>
    %80 = arith.mulf %77, %79 : vector<8x32xf32>
    %81 = vector.broadcast %60 : vector<8x1xf32> to vector<8x32xf32>
    %82 = arith.addf %81, %80 : vector<8x32xf32>
    %83 = vector.extract_strided_slice %56 {offsets = [0, 128], sizes = [8, 32], strides = [1, 1]} : vector<8x288xf32> to vector<8x32xf32>
    %84 = vector.extract_strided_slice %58 {offsets = [0, 1], sizes = [8, 1], strides = [1, 1]} : vector<8x3xf32> to vector<8x1xf32>
    %85 = vector.broadcast %84 : vector<8x1xf32> to vector<8x32xf32>
    %86 = arith.mulf %83, %85 : vector<8x32xf32>
    %87 = arith.addf %82, %86 : vector<8x32xf32>
    %88 = vector.extract_strided_slice %56 {offsets = [0, 130], sizes = [8, 32], strides = [1, 1]} : vector<8x288xf32> to vector<8x32xf32>
    %89 = vector.extract_strided_slice %58 {offsets = [0, 2], sizes = [8, 1], strides = [1, 1]} : vector<8x3xf32> to vector<8x1xf32>
    %90 = vector.broadcast %89 : vector<8x1xf32> to vector<8x32xf32>
    %91 = arith.mulf %88, %90 : vector<8x32xf32>
    %92 = arith.addf %87, %91 : vector<8x32xf32>
    %c2_i32 = arith.constant 2 : i32
    %93 = arith.cmpi eq, %5, %c2_i32 : i32
    %94 = arith.extui %93 : i1 to i32
    %95 = arith.sitofp %94 : i32 to f32
    %96 = vector.broadcast %95 : f32 to vector<8x32xf32>
    %97 = arith.mulf %96, %92 : vector<8x32xf32>
    %cst_33 = arith.constant 1.000000e+00 : f32
    %98 = arith.subf %cst_33, %95 : f32
    %99 = vector.broadcast %98 : f32 to vector<8x32xf32>
    %100 = arith.mulf %99, %76 : vector<8x32xf32>
    %101 = arith.addf %97, %100 : vector<8x32xf32>
    %c0_34 = arith.constant 0 : index
    %c0_35 = arith.constant 0 : index
    %c0_36 = arith.constant 0 : index
    %102 = vector.load %arg10[%c0_34, %c0_35, %c0_36] : memref<1x8x1xf32, #tpu.memory_space<vmem>>, vector<1x8x1xf32>
    %103 = vector.shape_cast %102 : vector<1x8x1xf32> to vector<8x1xf32>
    %cst_37 = arith.constant 0.000000e+00 : f32
    %104 = vector.broadcast %cst_37 : f32 to vector<8x32xf32>
    %105 = arith.cmpf oge, %101, %104 : vector<8x32xf32>
    %106 = vector.broadcast %103 : vector<8x1xf32> to vector<8x32xf32>
    %107 = arith.mulf %106, %101 : vector<8x32xf32>
    %108 = arith.select %105, %101, %107 : vector<8x32xi1>, vector<8x32xf32>
    %109 = vector.shape_cast %108 : vector<8x32xf32> to vector<1x8x32xf32>
    %cst_38 = arith.constant dense<0.000000e+00> : vector<1xf32>
    %110 = vector.multi_reduction <add>, %109, %cst_38 [1, 2] : vector<1x8x32xf32> to vector<1xf32>
    %111 = vector.shape_cast %110 : vector<1xf32> to vector<1x1x1xf32>
    %112 = vector.extract %111[0, 0, 0] : f32 from vector<1x1x1xf32>
    %113 = vector.broadcast %112 : f32 to vector<1x1xf32>
    %114 = arith.mulf %108, %108 : vector<8x32xf32>
    %115 = vector.shape_cast %114 : vector<8x32xf32> to vector<1x8x32xf32>
    %cst_39 = arith.constant dense<0.000000e+00> : vector<1xf32>
    %116 = vector.multi_reduction <add>, %115, %cst_39 [1, 2] : vector<1x8x32xf32> to vector<1xf32>
    %117 = vector.shape_cast %116 : vector<1xf32> to vector<1x1x1xf32>
    %118 = vector.extract %117[0, 0, 0] : f32 from vector<1x1x1xf32>
    %119 = vector.broadcast %118 : f32 to vector<1x1xf32>
    %cst_40 = arith.constant 2.560000e+02 : f32
    %120 = vector.broadcast %cst_40 : f32 to vector<1x1xf32>
    %121 = arith.divf %113, %120 : vector<1x1xf32>
    %cst_41 = arith.constant 2.560000e+02 : f32
    %122 = vector.broadcast %cst_41 : f32 to vector<1x1xf32>
    %123 = arith.divf %119, %122 : vector<1x1xf32>
    %124 = arith.mulf %121, %121 : vector<1x1xf32>
    %125 = arith.subf %123, %124 : vector<1x1xf32>
    %cst_42 = arith.constant 0.000000e+00 : f32
    %126 = vector.broadcast %cst_42 : f32 to vector<1x1xf32>
    %127 = arith.maximumf %125, %126 : vector<1x1xf32>
    %cst_43 = arith.constant 9.99999974E-6 : f32
    %128 = vector.broadcast %cst_43 : f32 to vector<1x1xf32>
    %129 = arith.addf %127, %128 : vector<1x1xf32>
    %130 = math.rsqrt %129 : vector<1x1xf32>
    %c0_44 = arith.constant 0 : index
    %c0_45 = arith.constant 0 : index
    %c0_46 = arith.constant 0 : index
    %131 = vector.load %arg11[%c0_44, %c0_45, %c0_46] : memref<1x8x1xf32, #tpu.memory_space<vmem>>, vector<1x8x1xf32>
    %132 = vector.shape_cast %131 : vector<1x8x1xf32> to vector<8x1xf32>
    %133 = vector.broadcast %121 : vector<1x1xf32> to vector<8x32xf32>
    %134 = arith.subf %108, %133 : vector<8x32xf32>
    %135 = vector.broadcast %132 : vector<8x1xf32> to vector<8x32xf32>
    %136 = arith.mulf %135, %134 : vector<8x32xf32>
    %137 = vector.broadcast %130 : vector<1x1xf32> to vector<8x32xf32>
    %138 = arith.mulf %136, %137 : vector<8x32xf32>
    %c0_47 = arith.constant 0 : index
    %c0_48 = arith.constant 0 : index
    %c0_49 = arith.constant 0 : index
    %139 = vector.load %arg12[%c0_47, %c0_48, %c0_49] : memref<1x8x1xf32, #tpu.memory_space<vmem>>, vector<1x8x1xf32>
    %140 = vector.shape_cast %139 : vector<1x8x1xf32> to vector<8x1xf32>
    %141 = vector.broadcast %140 : vector<8x1xf32> to vector<8x32xf32>
    %142 = arith.addf %138, %141 : vector<8x32xf32>
    %c0_50 = arith.constant 0 : index
    %c0_51 = arith.constant 0 : index
    %c0_52 = arith.constant 0 : index
    %143 = vector.load %arg13[%c0_50, %c0_51, %c0_52] : memref<1x8x8xbf16, #tpu.memory_space<vmem>>, vector<1x8x8xbf16>
    %144 = vector.shape_cast %143 : vector<1x8x8xbf16> to vector<8x8xbf16>
    %145 = arith.truncf %142 : vector<8x32xf32> to vector<8x32xbf16>
    %cst_53 = arith.constant dense<0.000000e+00> : vector<8x32xf32>
    %146 = tpu.matmul %144, %145, %cst_53 {dimension_numbers = #tpu.dot_dimension_numbers<[1], [0], [0], [1], [0, 0, 1, 1], [], []>} : vector<8x8xbf16>, vector<8x32xbf16>, vector<8x32xf32> -> vector<8x32xf32>
    %c0_54 = arith.constant 0 : index
    %c0_55 = arith.constant 0 : index
    %c0_56 = arith.constant 0 : index
    %147 = vector.load %arg14[%c0_54, %c0_55, %c0_56] : memref<1x8x1xf32, #tpu.memory_space<vmem>>, vector<1x8x1xf32>
    %148 = vector.shape_cast %147 : vector<1x8x1xf32> to vector<8x1xf32>
    %149 = vector.broadcast %148 : vector<8x1xf32> to vector<8x32xf32>
    %150 = arith.addf %146, %149 : vector<8x32xf32>
    %151 = arith.addf %3, %150 : vector<8x32xf32>
    %c0_57 = arith.constant 0 : index
    %c0_58 = arith.constant 0 : index
    %152 = vector.load %arg15[%c0_57, %c0_58] : memref<8x32xf32, #tpu.memory_space<vmem>>, vector<8x32xf32>
    tpu.vector_store %arg15[%c0_57, %c0_58], %151 {strides = array<i32>} : memref<8x32xf32, #tpu.memory_space<vmem>>, vector<8x32xf32>,
    return
  }
  func.func @transform_0(%arg0: i32, %arg1: memref<2xi32, #tpu.memory_space<smem>>) -> (i32, i32) {
    %c0_i32 = arith.constant 0 : i32
    %c0_i32_0 = arith.constant 0 : i32
    %c0_i32_1 = arith.constant 0 : i32
    return %c0_i32, %c0_i32_0 : i32, i32
  }
  func.func @transform_1(%arg0: i32, %arg1: memref<2xi32, #tpu.memory_space<smem>>) -> (i32, i32, i32) {
    %c0_i32 = arith.constant 0 : i32
    %c0_i32_0 = arith.constant 0 : i32
    %c0_i32_1 = arith.constant 0 : i32
    return %arg0, %c0_i32, %c0_i32_0 : i32, i32, i32
  }
  func.func @transform_2(%arg0: i32, %arg1: memref<2xi32, #tpu.memory_space<smem>>) -> (i32, i32, i32) {
    %c0_i32 = arith.constant 0 : i32
    %c0_i32_0 = arith.constant 0 : i32
    %c0_i32_1 = arith.constant 0 : i32
    return %arg0, %c0_i32, %c0_i32_0 : i32, i32, i32
  }
  func.func @transform_3(%arg0: i32, %arg1: memref<2xi32, #tpu.memory_space<smem>>) -> (i32, i32, i32) {
    %c0_i32 = arith.constant 0 : i32
    %c0_i32_0 = arith.constant 0 : i32
    %c0_i32_1 = arith.constant 0 : i32
    return %arg0, %c0_i32, %c0_i32_0 : i32, i32, i32
  }
  func.func @transform_4(%arg0: i32, %arg1: memref<2xi32, #tpu.memory_space<smem>>) -> (i32, i32, i32) {
    %c0_i32 = arith.constant 0 : i32
    %c0_i32_0 = arith.constant 0 : i32
    %c0_i32_1 = arith.constant 0 : i32
    return %arg0, %c0_i32, %c0_i32_0 : i32, i32, i32
  }
  func.func @transform_5(%arg0: i32, %arg1: memref<2xi32, #tpu.memory_space<smem>>) -> (i32, i32, i32) {
    %c0_i32 = arith.constant 0 : i32
    %c0_i32_0 = arith.constant 0 : i32
    %c0_i32_1 = arith.constant 0 : i32
    return %arg0, %c0_i32, %c0_i32_0 : i32, i32, i32
  }
  func.func @transform_6(%arg0: i32, %arg1: memref<2xi32, #tpu.memory_space<smem>>) -> (i32, i32, i32) {
    %c0_i32 = arith.constant 0 : i32
    %c0_i32_0 = arith.constant 0 : i32
    %c0_i32_1 = arith.constant 0 : i32
    return %arg0, %c0_i32, %c0_i32_0 : i32, i32, i32
  }
  func.func @transform_7(%arg0: i32, %arg1: memref<2xi32, #tpu.memory_space<smem>>) -> (i32, i32, i32) {
    %c0_i32 = arith.constant 0 : i32
    %c0_i32_0 = arith.constant 0 : i32
    %c0_i32_1 = arith.constant 0 : i32
    return %arg0, %c0_i32, %c0_i32_0 : i32, i32, i32
  }
  func.func @transform_8(%arg0: i32, %arg1: memref<2xi32, #tpu.memory_space<smem>>) -> (i32, i32, i32) {
    %c0_i32 = arith.constant 0 : i32
    %c0_i32_0 = arith.constant 0 : i32
    %c0_i32_1 = arith.constant 0 : i32
    return %arg0, %c0_i32, %c0_i32_0 : i32, i32, i32
  }
  func.func @transform_9(%arg0: i32, %arg1: memref<2xi32, #tpu.memory_space<smem>>) -> (i32, i32, i32) {
    %c0_i32 = arith.constant 0 : i32
    %c0_i32_0 = arith.constant 0 : i32
    %c0_i32_1 = arith.constant 0 : i32
    return %arg0, %c0_i32, %c0_i32_0 : i32, i32, i32
  }
  func.func @transform_10(%arg0: i32, %arg1: memref<2xi32, #tpu.memory_space<smem>>) -> (i32, i32, i32) {
    %c0_i32 = arith.constant 0 : i32
    %c0_i32_0 = arith.constant 0 : i32
    %c0_i32_1 = arith.constant 0 : i32
    return %arg0, %c0_i32, %c0_i32_0 : i32, i32, i32
  }
  func.func @transform_11(%arg0: i32, %arg1: memref<2xi32, #tpu.memory_space<smem>>) -> (i32, i32, i32) {
    %c0_i32 = arith.constant 0 : i32
    %c0_i32_0 = arith.constant 0 : i32
    %c0_i32_1 = arith.constant 0 : i32
    return %arg0, %c0_i32, %c0_i32_0 : i32, i32, i32
  }
  func.func @transform_12(%arg0: i32, %arg1: memref<2xi32, #tpu.memory_space<smem>>) -> (i32, i32, i32) {
    %c0_i32 = arith.constant 0 : i32
    %c0_i32_0 = arith.constant 0 : i32
    %c0_i32_1 = arith.constant 0 : i32
    return %arg0, %c0_i32, %c0_i32_0 : i32, i32, i32
  }
  func.func @transform_13(%arg0: i32, %arg1: memref<2xi32, #tpu.memory_space<smem>>) -> (i32, i32) {
    %c0_i32 = arith.constant 0 : i32
    %c0_i32_0 = arith.constant 0 : i32
    %c0_i32_1 = arith.constant 0 : i32
    return %c0_i32, %c0_i32_0 : i32, i32
  }
}

module attributes {stable_mosaic.version = 11 : i64} {
  func.func @kernel(%arg0: memref<8x32xf32, #tpu.memory_space<vmem>>, %arg1: memref<8x32xf32, #tpu.memory_space<vmem>>, %arg2: memref<8x8xbf16, #tpu.memory_space<vmem>>, %arg3: memref<8x1xf32, #tpu.memory_space<vmem>>, %arg4: memref<3x16x8xbf16, #tpu.memory_space<vmem>>, %arg5: memref<16x1xf32, #tpu.memory_space<vmem>>, %arg6: memref<3x16x16xbf16, #tpu.memory_space<vmem>>, %arg7: memref<16x1xf32, #tpu.memory_space<vmem>>, %arg8: memref<3x16x16xbf16, #tpu.memory_space<vmem>>, %arg9: memref<16x1xf32, #tpu.memory_space<vmem>>, %arg10: memref<3xf32, #tpu.memory_space<smem>>, %arg11: memref<16x16xbf16, #tpu.memory_space<vmem>>, %arg12: memref<16x32xf32, #tpu.memory_space<vmem>>, %arg13: memref<16x288xf32, #tpu.memory_space<vmem>>) attributes {dimension_semantics = [], scalar_prefetch = 0 : i64, scratch_operands = 1 : i64, tpu.core_type = #tpu.core_type<tc>} {
    %c0 = arith.constant 0 : index
    %c0_0 = arith.constant 0 : index
    %0 = vector.load %arg2[%c0, %c0_0] : memref<8x8xbf16, #tpu.memory_space<vmem>>, vector<8x8xbf16>
    %c0_1 = arith.constant 0 : index
    %c0_2 = arith.constant 0 : index
    %1 = vector.load %arg0[%c0_1, %c0_2] : memref<8x32xf32, #tpu.memory_space<vmem>>, vector<8x32xf32>
    %2 = arith.truncf %1 : vector<8x32xf32> to vector<8x32xbf16>
    %cst = arith.constant dense<0.000000e+00> : vector<8x32xf32>
    %3 = tpu.matmul %0, %2, %cst {dimension_numbers = #tpu.dot_dimension_numbers<[1], [0], [0], [1], [0, 0, 1, 1], [], []>} : vector<8x8xbf16>, vector<8x32xbf16>, vector<8x32xf32> -> vector<8x32xf32>
    %c0_3 = arith.constant 0 : index
    %c0_4 = arith.constant 0 : index
    %4 = vector.load %arg3[%c0_3, %c0_4] : memref<8x1xf32, #tpu.memory_space<vmem>>, vector<8x1xf32>
    %5 = vector.broadcast %4 : vector<8x1xf32> to vector<8x32xf32>
    %6 = arith.addf %3, %5 : vector<8x32xf32>
    %c0_5 = arith.constant 0 : index
    %c0_6 = arith.constant 0 : index
    %7 = vector.load %arg1[%c0_5, %c0_6] : memref<8x32xf32, #tpu.memory_space<vmem>>, vector<8x32xf32>
    %cst_7 = arith.constant 0.000000e+00 : f32
    %8 = vector.broadcast %cst_7 : f32 to vector<8x32xf32>
    %9 = arith.maximumf %6, %8 : vector<8x32xf32>
    %10 = arith.mulf %7, %9 : vector<8x32xf32>
    %cst_8 = arith.constant 0.000000e+00 : f32
    %11 = vector.broadcast %cst_8 : f32 to vector<16x288xf32>
    %c0_9 = arith.constant 0 : index
    %c0_10 = arith.constant 0 : index
    %12 = vector.load %arg13[%c0_9, %c0_10] : memref<16x288xf32, #tpu.memory_space<vmem>>, vector<16x288xf32>
    tpu.vector_store %arg13[%c0_9, %c0_10], %11 {strides = array<i32>} : memref<16x288xf32, #tpu.memory_space<vmem>>, vector<16x288xf32>,
    %c0_11 = arith.constant 0 : index
    %c128 = arith.constant 128 : index
    %13 = vector.load %arg13[%c0_11, %c128] : memref<16x288xf32, #tpu.memory_space<vmem>>, vector<8x32xf32>
    tpu.vector_store %arg13[%c0_11, %c128], %10 {strides = array<i32>} : memref<16x288xf32, #tpu.memory_space<vmem>>, vector<8x32xf32>,
    %c0_12 = arith.constant 0 : index
    %c0_13 = arith.constant 0 : index
    %14 = vector.load %arg13[%c0_12, %c0_13] : memref<16x288xf32, #tpu.memory_space<vmem>>, vector<16x288xf32>
    %15 = vector.extract_strided_slice %14 {offsets = [0, 127], sizes = [8, 34], strides = [1, 1]} : vector<16x288xf32> to vector<8x34xf32>
    %16 = arith.truncf %15 : vector<8x34xf32> to vector<8x34xbf16>
    %c0_14 = arith.constant 0 : index
    %c0_15 = arith.constant 0 : index
    %17 = vector.load %arg5[%c0_14, %c0_15] : memref<16x1xf32, #tpu.memory_space<vmem>>, vector<16x1xf32>
    %c0_16 = arith.constant 0 : index
    %c0_17 = arith.constant 0 : index
    %c0_18 = arith.constant 0 : index
    %18 = vector.load %arg4[%c0_16, %c0_17, %c0_18] : memref<3x16x8xbf16, #tpu.memory_space<vmem>>, vector<1x16x8xbf16>
    %19 = vector.shape_cast %18 : vector<1x16x8xbf16> to vector<16x8xbf16>
    %20 = vector.extract_strided_slice %16 {offsets = [0, 0], sizes = [8, 32], strides = [1, 1]} : vector<8x34xbf16> to vector<8x32xbf16>
    %cst_19 = arith.constant dense<0.000000e+00> : vector<16x32xf32>
    %21 = tpu.matmul %19, %20, %cst_19 {dimension_numbers = #tpu.dot_dimension_numbers<[1], [0], [0], [1], [0, 0, 1, 1], [], []>} : vector<16x8xbf16>, vector<8x32xbf16>, vector<16x32xf32> -> vector<16x32xf32>
    %22 = vector.broadcast %17 : vector<16x1xf32> to vector<16x32xf32>
    %23 = arith.addf %22, %21 : vector<16x32xf32>
    %c1 = arith.constant 1 : index
    %c0_20 = arith.constant 0 : index
    %c0_21 = arith.constant 0 : index
    %24 = vector.load %arg4[%c1, %c0_20, %c0_21] : memref<3x16x8xbf16, #tpu.memory_space<vmem>>, vector<1x16x8xbf16>
    %25 = vector.shape_cast %24 : vector<1x16x8xbf16> to vector<16x8xbf16>
    %26 = vector.extract_strided_slice %16 {offsets = [0, 1], sizes = [8, 32], strides = [1, 1]} : vector<8x34xbf16> to vector<8x32xbf16>
    %cst_22 = arith.constant dense<0.000000e+00> : vector<16x32xf32>
    %27 = tpu.matmul %25, %26, %cst_22 {dimension_numbers = #tpu.dot_dimension_numbers<[1], [0], [0], [1], [0, 0, 1, 1], [], []>} : vector<16x8xbf16>, vector<8x32xbf16>, vector<16x32xf32> -> vector<16x32xf32>
    %28 = arith.addf %23, %27 : vector<16x32xf32>
    %c2 = arith.constant 2 : index
    %c0_23 = arith.constant 0 : index
    %c0_24 = arith.constant 0 : index
    %29 = vector.load %arg4[%c2, %c0_23, %c0_24] : memref<3x16x8xbf16, #tpu.memory_space<vmem>>, vector<1x16x8xbf16>
    %30 = vector.shape_cast %29 : vector<1x16x8xbf16> to vector<16x8xbf16>
    %31 = vector.extract_strided_slice %16 {offsets = [0, 2], sizes = [8, 32], strides = [1, 1]} : vector<8x34xbf16> to vector<8x32xbf16>
    %cst_25 = arith.constant dense<0.000000e+00> : vector<16x32xf32>
    %32 = tpu.matmul %30, %31, %cst_25 {dimension_numbers = #tpu.dot_dimension_numbers<[1], [0], [0], [1], [0, 0, 1, 1], [], []>} : vector<16x8xbf16>, vector<8x32xbf16>, vector<16x32xf32> -> vector<16x32xf32>
    %33 = arith.addf %28, %32 : vector<16x32xf32>
    %c0_26 = arith.constant 0 : index
    %34 = memref.load %arg10[%c0_26] : memref<3xf32, #tpu.memory_space<smem>>
    %cst_27 = arith.constant 0.000000e+00 : f32
    %35 = vector.broadcast %cst_27 : f32 to vector<16x32xf32>
    %36 = arith.cmpf oge, %33, %35 : vector<16x32xf32>
    %37 = vector.broadcast %34 : f32 to vector<16x32xf32>
    %38 = arith.mulf %37, %33 : vector<16x32xf32>
    %39 = arith.select %36, %33, %38 : vector<16x32xi1>, vector<16x32xf32>
    %c0_28 = arith.constant 0 : index
    %c128_29 = arith.constant 128 : index
    %40 = vector.load %arg13[%c0_28, %c128_29] : memref<16x288xf32, #tpu.memory_space<vmem>>, vector<16x32xf32>
    tpu.vector_store %arg13[%c0_28, %c128_29], %39 {strides = array<i32>} : memref<16x288xf32, #tpu.memory_space<vmem>>, vector<16x32xf32>,
    %c0_30 = arith.constant 0 : index
    %c0_31 = arith.constant 0 : index
    %41 = vector.load %arg13[%c0_30, %c0_31] : memref<16x288xf32, #tpu.memory_space<vmem>>, vector<16x288xf32>
    %42 = vector.extract_strided_slice %41 {offsets = [0, 127], sizes = [16, 34], strides = [1, 1]} : vector<16x288xf32> to vector<16x34xf32>
    %43 = arith.truncf %42 : vector<16x34xf32> to vector<16x34xbf16>
    %c0_32 = arith.constant 0 : index
    %c0_33 = arith.constant 0 : index
    %44 = vector.load %arg7[%c0_32, %c0_33] : memref<16x1xf32, #tpu.memory_space<vmem>>, vector<16x1xf32>
    %c0_34 = arith.constant 0 : index
    %c0_35 = arith.constant 0 : index
    %c0_36 = arith.constant 0 : index
    %45 = vector.load %arg6[%c0_34, %c0_35, %c0_36] : memref<3x16x16xbf16, #tpu.memory_space<vmem>>, vector<1x16x16xbf16>
    %46 = vector.shape_cast %45 : vector<1x16x16xbf16> to vector<16x16xbf16>
    %47 = vector.extract_strided_slice %43 {offsets = [0, 0], sizes = [16, 32], strides = [1, 1]} : vector<16x34xbf16> to vector<16x32xbf16>
    %cst_37 = arith.constant dense<0.000000e+00> : vector<16x32xf32>
    %48 = tpu.matmul %46, %47, %cst_37 {dimension_numbers = #tpu.dot_dimension_numbers<[1], [0], [0], [1], [0, 0, 1, 1], [], []>} : vector<16x16xbf16>, vector<16x32xbf16>, vector<16x32xf32> -> vector<16x32xf32>
    %49 = vector.broadcast %44 : vector<16x1xf32> to vector<16x32xf32>
    %50 = arith.addf %49, %48 : vector<16x32xf32>
    %c1_38 = arith.constant 1 : index
    %c0_39 = arith.constant 0 : index
    %c0_40 = arith.constant 0 : index
    %51 = vector.load %arg6[%c1_38, %c0_39, %c0_40] : memref<3x16x16xbf16, #tpu.memory_space<vmem>>, vector<1x16x16xbf16>
    %52 = vector.shape_cast %51 : vector<1x16x16xbf16> to vector<16x16xbf16>
    %53 = vector.extract_strided_slice %43 {offsets = [0, 1], sizes = [16, 32], strides = [1, 1]} : vector<16x34xbf16> to vector<16x32xbf16>
    %cst_41 = arith.constant dense<0.000000e+00> : vector<16x32xf32>
    %54 = tpu.matmul %52, %53, %cst_41 {dimension_numbers = #tpu.dot_dimension_numbers<[1], [0], [0], [1], [0, 0, 1, 1], [], []>} : vector<16x16xbf16>, vector<16x32xbf16>, vector<16x32xf32> -> vector<16x32xf32>
    %55 = arith.addf %50, %54 : vector<16x32xf32>
    %c2_42 = arith.constant 2 : index
    %c0_43 = arith.constant 0 : index
    %c0_44 = arith.constant 0 : index
    %56 = vector.load %arg6[%c2_42, %c0_43, %c0_44] : memref<3x16x16xbf16, #tpu.memory_space<vmem>>, vector<1x16x16xbf16>
    %57 = vector.shape_cast %56 : vector<1x16x16xbf16> to vector<16x16xbf16>
    %58 = vector.extract_strided_slice %43 {offsets = [0, 2], sizes = [16, 32], strides = [1, 1]} : vector<16x34xbf16> to vector<16x32xbf16>
    %cst_45 = arith.constant dense<0.000000e+00> : vector<16x32xf32>
    %59 = tpu.matmul %57, %58, %cst_45 {dimension_numbers = #tpu.dot_dimension_numbers<[1], [0], [0], [1], [0, 0, 1, 1], [], []>} : vector<16x16xbf16>, vector<16x32xbf16>, vector<16x32xf32> -> vector<16x32xf32>
    %60 = arith.addf %55, %59 : vector<16x32xf32>
    %c1_46 = arith.constant 1 : index
    %61 = memref.load %arg10[%c1_46] : memref<3xf32, #tpu.memory_space<smem>>
    %cst_47 = arith.constant 0.000000e+00 : f32
    %62 = vector.broadcast %cst_47 : f32 to vector<16x32xf32>
    %63 = arith.cmpf oge, %60, %62 : vector<16x32xf32>
    %64 = vector.broadcast %61 : f32 to vector<16x32xf32>
    %65 = arith.mulf %64, %60 : vector<16x32xf32>
    %66 = arith.select %63, %60, %65 : vector<16x32xi1>, vector<16x32xf32>
    %c0_48 = arith.constant 0 : index
    %c128_49 = arith.constant 128 : index
    %67 = vector.load %arg13[%c0_48, %c128_49] : memref<16x288xf32, #tpu.memory_space<vmem>>, vector<16x32xf32>
    tpu.vector_store %arg13[%c0_48, %c128_49], %66 {strides = array<i32>} : memref<16x288xf32, #tpu.memory_space<vmem>>, vector<16x32xf32>,
    %c0_50 = arith.constant 0 : index
    %c0_51 = arith.constant 0 : index
    %68 = vector.load %arg13[%c0_50, %c0_51] : memref<16x288xf32, #tpu.memory_space<vmem>>, vector<16x288xf32>
    %69 = vector.extract_strided_slice %68 {offsets = [0, 127], sizes = [16, 34], strides = [1, 1]} : vector<16x288xf32> to vector<16x34xf32>
    %70 = arith.truncf %69 : vector<16x34xf32> to vector<16x34xbf16>
    %c0_52 = arith.constant 0 : index
    %c0_53 = arith.constant 0 : index
    %71 = vector.load %arg9[%c0_52, %c0_53] : memref<16x1xf32, #tpu.memory_space<vmem>>, vector<16x1xf32>
    %c0_54 = arith.constant 0 : index
    %c0_55 = arith.constant 0 : index
    %c0_56 = arith.constant 0 : index
    %72 = vector.load %arg8[%c0_54, %c0_55, %c0_56] : memref<3x16x16xbf16, #tpu.memory_space<vmem>>, vector<1x16x16xbf16>
    %73 = vector.shape_cast %72 : vector<1x16x16xbf16> to vector<16x16xbf16>
    %74 = vector.extract_strided_slice %70 {offsets = [0, 0], sizes = [16, 32], strides = [1, 1]} : vector<16x34xbf16> to vector<16x32xbf16>
    %cst_57 = arith.constant dense<0.000000e+00> : vector<16x32xf32>
    %75 = tpu.matmul %73, %74, %cst_57 {dimension_numbers = #tpu.dot_dimension_numbers<[1], [0], [0], [1], [0, 0, 1, 1], [], []>} : vector<16x16xbf16>, vector<16x32xbf16>, vector<16x32xf32> -> vector<16x32xf32>
    %76 = vector.broadcast %71 : vector<16x1xf32> to vector<16x32xf32>
    %77 = arith.addf %76, %75 : vector<16x32xf32>
    %c1_58 = arith.constant 1 : index
    %c0_59 = arith.constant 0 : index
    %c0_60 = arith.constant 0 : index
    %78 = vector.load %arg8[%c1_58, %c0_59, %c0_60] : memref<3x16x16xbf16, #tpu.memory_space<vmem>>, vector<1x16x16xbf16>
    %79 = vector.shape_cast %78 : vector<1x16x16xbf16> to vector<16x16xbf16>
    %80 = vector.extract_strided_slice %70 {offsets = [0, 1], sizes = [16, 32], strides = [1, 1]} : vector<16x34xbf16> to vector<16x32xbf16>
    %cst_61 = arith.constant dense<0.000000e+00> : vector<16x32xf32>
    %81 = tpu.matmul %79, %80, %cst_61 {dimension_numbers = #tpu.dot_dimension_numbers<[1], [0], [0], [1], [0, 0, 1, 1], [], []>} : vector<16x16xbf16>, vector<16x32xbf16>, vector<16x32xf32> -> vector<16x32xf32>
    %82 = arith.addf %77, %81 : vector<16x32xf32>
    %c2_62 = arith.constant 2 : index
    %c0_63 = arith.constant 0 : index
    %c0_64 = arith.constant 0 : index
    %83 = vector.load %arg8[%c2_62, %c0_63, %c0_64] : memref<3x16x16xbf16, #tpu.memory_space<vmem>>, vector<1x16x16xbf16>
    %84 = vector.shape_cast %83 : vector<1x16x16xbf16> to vector<16x16xbf16>
    %85 = vector.extract_strided_slice %70 {offsets = [0, 2], sizes = [16, 32], strides = [1, 1]} : vector<16x34xbf16> to vector<16x32xbf16>
    %cst_65 = arith.constant dense<0.000000e+00> : vector<16x32xf32>
    %86 = tpu.matmul %84, %85, %cst_65 {dimension_numbers = #tpu.dot_dimension_numbers<[1], [0], [0], [1], [0, 0, 1, 1], [], []>} : vector<16x16xbf16>, vector<16x32xbf16>, vector<16x32xf32> -> vector<16x32xf32>
    %87 = arith.addf %82, %86 : vector<16x32xf32>
    %c2_66 = arith.constant 2 : index
    %88 = memref.load %arg10[%c2_66] : memref<3xf32, #tpu.memory_space<smem>>
    %cst_67 = arith.constant 0.000000e+00 : f32
    %89 = vector.broadcast %cst_67 : f32 to vector<16x32xf32>
    %90 = arith.cmpf oge, %87, %89 : vector<16x32xf32>
    %91 = vector.broadcast %88 : f32 to vector<16x32xf32>
    %92 = arith.mulf %91, %87 : vector<16x32xf32>
    %93 = arith.select %90, %87, %92 : vector<16x32xi1>, vector<16x32xf32>
    %c0_68 = arith.constant 0 : index
    %c0_69 = arith.constant 0 : index
    %94 = vector.load %arg11[%c0_68, %c0_69] : memref<16x16xbf16, #tpu.memory_space<vmem>>, vector<16x16xbf16>
    %95 = arith.truncf %93 : vector<16x32xf32> to vector<16x32xbf16>
    %cst_70 = arith.constant dense<0.000000e+00> : vector<16x32xf32>
    %96 = tpu.matmul %94, %95, %cst_70 {dimension_numbers = #tpu.dot_dimension_numbers<[1], [0], [0], [1], [0, 0, 1, 1], [], []>} : vector<16x16xbf16>, vector<16x32xbf16>, vector<16x32xf32> -> vector<16x32xf32>
    %c0_71 = arith.constant 0 : index
    %c0_72 = arith.constant 0 : index
    %97 = vector.load %arg12[%c0_71, %c0_72] : memref<16x32xf32, #tpu.memory_space<vmem>>, vector<16x32xf32>
    tpu.vector_store %arg12[%c0_71, %c0_72], %96 {strides = array<i32>} : memref<16x32xf32, #tpu.memory_space<vmem>>, vector<16x32xf32>,
    return
  }
}

</mosaic_0001>

<llo_original>
// kernel: conv_tasnet_forward.6
$region0: #{conv_tasnet_forward.6}
  #allocation0 [shape = 'u32[]', space=smem, size = 0x4, offset = 0x4, fixed_abs, tag = 'smem constant byte address 0x4 - core index']
  #allocation1 [shape = 'u32[144,128]{1,0:T(1,128)}', space=vmem, size = 0x12000, scoped, tag = 'internal scratch']
  #allocation2 [shape = 'f32[8,288]{1,0:T(8,128)}', space=vmem, size = 0x3000, scoped, tag = 'scratch operand']
  #allocation3 [shape = 's32[1]{0}', space=sflag, size = 0x4, scoped, tag = 'scoped memory for conv_tasnet_forward.6']
  #allocation4 [shape = 'u8[512]{0}', space=smem, size = 0x200, scoped, tag = 'prefetched SMEM operand 0']
  %s0 = inlined_call_operand.hbm [shape: s32[2], index: 0, kind: input, shape index: {}]
  %s1 = inlined_call_operand.hbm [shape: f32[8,32], index: 1, kind: input, shape index: {}]
  %s2 = inlined_call_operand.hbm [shape: bf16[2,8,8], index: 2, kind: input, shape index: {}]
  %s3 = inlined_call_operand.hbm [shape: f32[2,8,1], index: 3, kind: input, shape index: {}]
  %s4 = inlined_call_operand.hbm [shape: f32[2,8,1], index: 4, kind: input, shape index: {}]
  %s5 = inlined_call_operand.hbm [shape: f32[2,8,1], index: 5, kind: input, shape index: {}]
  %s6 = inlined_call_operand.hbm [shape: f32[2,8,1], index: 6, kind: input, shape index: {}]
  %s7 = inlined_call_operand.hbm [shape: f32[2,8,3], index: 7, kind: input, shape index: {}]
  %s8 = inlined_call_operand.hbm [shape: f32[2,8,1], index: 8, kind: input, shape index: {}]
  %s9 = inlined_call_operand.hbm [shape: f32[2,8,1], index: 9, kind: input, shape index: {}]
  %s10 = inlined_call_operand.hbm [shape: f32[2,8,1], index: 10, kind: input, shape index: {}]
  %s11 = inlined_call_operand.hbm [shape: f32[2,8,1], index: 11, kind: input, shape index: {}]
  %s12 = inlined_call_operand.hbm [shape: bf16[2,8,8], index: 12, kind: input, shape index: {}]
  %s13 = inlined_call_operand.hbm [shape: f32[2,8,1], index: 13, kind: input, shape index: {}]
  %s14 = inlined_call_operand.hbm [shape: f32[8,32], index: 14, kind: output, shape index: {}]
  %s15 = sld [smem:[#allocation0]]
  $region141: #{conv_tasnet_forward.6} parent=0
    _
  %s17 = ssub.s32 1, %s15
  %s18 = scalar_select 0, %s17, %s15
  %20 = dma.hbm_to_smem %s0, 16, [#allocation4], [#allocation3]
  %21 = dma.done [#allocation3], 16
  %22 = sfence
  $region1: #{conv_tasnet_forward.6} parent=0
    #allocation5 [shape = 'u8[4096]{0}', space=vmem, size = 0x1000, scoped, tag = 'input window, operand 1, single buffered']
    #allocation6 [shape = 's32[2]{0}', space=sflag, size = 0x8, scoped, tag = 'scoped memory for conv_tasnet_forward.6']
    #allocation7 [shape = 's32[2]{0}', space=sflag, size = 0x8, scoped, tag = 'scoped memory for conv_tasnet_forward.6']
    #allocation8 [shape = 'u8[4096]{0}', space=vmem, size = 0x1000, scoped, tag = 'input window, operand 2']
    #allocation9 [shape = 's32[2]{0}', space=sflag, size = 0x8, scoped, tag = 'scoped memory for conv_tasnet_forward.6']
    #allocation10 [shape = 'u8[8192]{0}', space=vmem, size = 0x2000, scoped, tag = 'input window, operand 3']
    #allocation11 [shape = 'u8[8192]{0}', space=vmem, size = 0x2000, scoped, tag = 'input window, operand 4']
    #allocation12 [shape = 's32[2]{0}', space=sflag, size = 0x8, scoped, tag = 'scoped memory for conv_tasnet_forward.6']
    #allocation13 [shape = 'u8[8192]{0}', space=vmem, size = 0x2000, scoped, tag = 'input window, operand 5']
    #allocation14 [shape = 'u8[8192]{0}', space=vmem, size = 0x2000, scoped, tag = 'input window, operand 6']
    #allocation15 [shape = 's32[2]{0}', space=sflag, size = 0x8, scoped, tag = 'scoped memory for conv_tasnet_forward.6']
    #allocation16 [shape = 'u8[8192]{0}', space=vmem, size = 0x2000, scoped, tag = 'input window, operand 7']
    #allocation17 [shape = 'u8[8192]{0}', space=vmem, size = 0x2000, scoped, tag = 'input window, operand 8']
    #allocation18 [shape = 's32[2]{0}', space=sflag, size = 0x8, scoped, tag = 'scoped memory for conv_tasnet_forward.6']
    #allocation19 [shape = 'u8[8192]{0}', space=vmem, size = 0x2000, scoped, tag = 'input window, operand 9']
    #allocation20 [shape = 'u8[8192]{0}', space=vmem, size = 0x2000, scoped, tag = 'input window, operand 10']
    #allocation21 [shape = 's32[2]{0}', space=sflag, size = 0x8, scoped, tag = 'scoped memory for conv_tasnet_forward.6']
    #allocation22 [shape = 'u8[8192]{0}', space=vmem, size = 0x2000, scoped, tag = 'input window, operand 11']
    #allocation23 [shape = 'u8[4096]{0}', space=vmem, size = 0x1000, scoped, tag = 'input window, operand 12']
    #allocation24 [shape = 's32[2]{0}', space=sflag, size = 0x8, scoped, tag = 'scoped memory for conv_tasnet_forward.6']
    #allocation25 [shape = 'u8[8192]{0}', space=vmem, size = 0x2000, scoped, tag = 'input window, operand 13']
    #allocation26 [shape = 'u8[4096]{0}', space=vmem, size = 0x1000, scoped, tag = 'output window, operand 0, single buffered']
    %23 = vsyncpa [#allocation6], 0
    %24 = vsyncpa [#allocation9], 0
    %s25 = scalar_lea.sflag [#allocation9], 1
    %26 = vsyncpa %s25, 0
    %27 = vsyncpa [#allocation12], 0
    %s28 = scalar_lea.sflag [#allocation12], 1
    %29 = vsyncpa %s28, 0
    %30 = vsyncpa [#allocation15], 0
    %s31 = scalar_lea.sflag [#allocation15], 1
    %32 = vsyncpa %s31, 0
    %33 = vsyncpa [#allocation18], 0
    %s34 = scalar_lea.sflag [#allocation18], 1
    %35 = vsyncpa %s34, 0
    %36 = vsyncpa [#allocation21], 0
    %s37 = scalar_lea.sflag [#allocation21], 1
    %38 = vsyncpa %s37, 0
    %39 = vsyncpa [#allocation24], 0
    %s40 = scalar_lea.sflag [#allocation24], 1
    %41 = vsyncpa %s40, 0
    %42 = vsyncpa [#allocation7], 0
    loop: start=0, step=1, limit=4
    $region2: #{conv_tasnet_forward.6} parent=1 // loop_pre_header
      _
    $region3: #{conv_tasnet_forward.6} parent=1 // loop_header
      %s44 = sphi 0, %s48
      %p45 = scmp.ge.s32.totalorder %s44, 4
      %s52 = sphi 0, %s52
      %s54 = sphi 0, %s52
      %s55 = sphi 0, %s54
      %s69 = sphi 0, %s55
      %s75 = sphi 0, %s77
      %s78 = sphi 0, %s75
      %s79 = sphi 0, %s78
      %s95 = sphi 0, %s79
      %s101 = sphi 0, %s103
      %s104 = sphi 0, %s101
      %s105 = sphi 0, %s104
      %s121 = sphi 0, %s105
      %s127 = sphi 0, %s129
      %s130 = sphi 0, %s127
      %s131 = sphi 0, %s130
      %s147 = sphi 0, %s131
      %s153 = sphi 0, %s155
      %s156 = sphi 0, %s153
      %s157 = sphi 0, %s156
      %s173 = sphi 0, %s157
      %s179 = sphi 0, %s181
      %s182 = sphi 0, %s179
      %s183 = sphi 0, %s182
      %s199 = sphi 0, %s183
      %s205 = sphi 0, %s207
      %s208 = sphi 0, %s205
      %s209 = sphi 0, %s208
      %s225 = sphi 0, %s209
      %s231 = sphi 0, %s233
      %s234 = sphi 0, %s231
      %s235 = sphi 0, %s234
      %s251 = sphi 0, %s235
      %s257 = sphi 0, %s259
      %s260 = sphi 0, %s257
      %s261 = sphi 0, %s260
      %s277 = sphi 0, %s261
      %s283 = sphi 0, %s285
      %s286 = sphi 0, %s283
      %s287 = sphi 0, %s286
      %s303 = sphi 0, %s287
      %s309 = sphi 0, %s311
      %s312 = sphi 0, %s309
      %s313 = sphi 0, %s312
      %s329 = sphi 0, %s313
      %s335 = sphi 0, %s337
      %s338 = sphi 0, %s335
      %s339 = sphi 0, %s338
      %s355 = sphi 0, %s339
      %s361 = sphi 0, %s363
      %s364 = sphi 0, %s361
      %s365 = sphi 0, %s364
      %s381 = sphi 0, %s365
      %s385 = sphi 0, %s385
      %s387 = sphi 0, %s385
      %s388 = sphi 0, %s387
      %s402 = sphi 0, %s388
    $region4: #{conv_tasnet_forward.6} parent=1 // loop_header_branch
      %47 = sbr.rel (%p45) target = $region8
    $region5: #{conv_tasnet_forward.6} parent=1 // loop_body
      %s49 = ssub.s32 %s44, 1
      %s50 = ssub.s32 %s44, 2
      %s51 = sadd.s32 %s44, 1
      %s53 = sadd.s32 %s52, 1
      %p56 = scmp.eq.s32.totalorder %s44, 1
      %p57 = scmp.ne.s32.totalorder %s52, %s54
      %p58 = scmp.eq.s32.totalorder %s44, 0
      %p59 = por %p57, %p58
      %p60 = scmp.ne.s32.totalorder %s52, %s54
      %p61 = scmp.eq.s32.totalorder %s49, 1
      %p62 = por %p60, %p61
      %p63 = scmp.ne.s32.totalorder %s54, %s55
      %p64 = scmp.eq.s32.totalorder %s49, 0
      %p65 = por %p63, %p64
      %p66 = scmp.ne.s32.totalorder %s54, %s55
      %p67 = scmp.eq.s32.totalorder %s50, 1
      %p68 = por %p66, %p67
      %p70 = scmp.ne.s32.totalorder %s55, %s69
      %p71 = scmp.eq.s32.totalorder %s50, 0
      %p72 = por %p70, %p71
      %s73 = ssub.s32 %s44, %s51
      %p74 = scmp.eq.s32.totalorder %s73, 0
      %s76 = sadd.s32 %s75, 1
      %s77 = scalar_select %p74, %s75, %s76
      %p80 = pneg %p74
      %p81 = scmp.eq.s32.totalorder %s44, 1
      %p82 = por %p80, %p81
      %p83 = scmp.ne.s32.totalorder %s75, %s78
      %p84 = scmp.eq.s32.totalorder %s44, 0
      %p85 = por %p83, %p84
      %p86 = scmp.ne.s32.totalorder %s75, %s78
      %p87 = scmp.eq.s32.totalorder %s49, 1
      %p88 = por %p86, %p87
      %p89 = scmp.ne.s32.totalorder %s78, %s79
      %p90 = scmp.eq.s32.totalorder %s49, 0
      %p91 = por %p89, %p90
      %p92 = scmp.ne.s32.totalorder %s78, %s79
      %p93 = scmp.eq.s32.totalorder %s50, 1
      %p94 = por %p92, %p93
      %p96 = scmp.ne.s32.totalorder %s79, %s95
      %p97 = scmp.eq.s32.totalorder %s50, 0
      %p98 = por %p96, %p97
      %s99 = ssub.s32 %s44, %s51
      %p100 = scmp.eq.s32.totalorder %s99, 0
      %s102 = sadd.s32 %s101, 1
      %s103 = scalar_select %p100, %s101, %s102
      %p106 = pneg %p100
      %p107 = scmp.eq.s32.totalorder %s44, 1
      %p108 = por %p106, %p107
      %p109 = scmp.ne.s32.totalorder %s101, %s104
      %p110 = scmp.eq.s32.totalorder %s44, 0
      %p111 = por %p109, %p110
      %p112 = scmp.ne.s32.totalorder %s101, %s104
      %p113 = scmp.eq.s32.totalorder %s49, 1
      %p114 = por %p112, %p113
      %p115 = scmp.ne.s32.totalorder %s104, %s105
      %p116 = scmp.eq.s32.totalorder %s49, 0
      %p117 = por %p115, %p116
      %p118 = scmp.ne.s32.totalorder %s104, %s105
      %p119 = scmp.eq.s32.totalorder %s50, 1
      %p120 = por %p118, %p119
      %p122 = scmp.ne.s32.totalorder %s105, %s121
      %p123 = scmp.eq.s32.totalorder %s50, 0
      %p124 = por %p122, %p123
      %s125 = ssub.s32 %s44, %s51
      %p126 = scmp.eq.s32.totalorder %s125, 0
      %s128 = sadd.s32 %s127, 1
      %s129 = scalar_select %p126, %s127, %s128
      %p132 = pneg %p126
      %p133 = scmp.eq.s32.totalorder %s44, 1
      %p134 = por %p132, %p133
      %p135 = scmp.ne.s32.totalorder %s127, %s130
      %p136 = scmp.eq.s32.totalorder %s44, 0
      %p137 = por %p135, %p136
      %p138 = scmp.ne.s32.totalorder %s127, %s130
      %p139 = scmp.eq.s32.totalorder %s49, 1
      %p140 = por %p138, %p139
      %p141 = scmp.ne.s32.totalorder %s130, %s131
      %p142 = scmp.eq.s32.totalorder %s49, 0
      %p143 = por %p141, %p142
      %p144 = scmp.ne.s32.totalorder %s130, %s131
      %p145 = scmp.eq.s32.totalorder %s50, 1
      %p146 = por %p144, %p145
      %p148 = scmp.ne.s32.totalorder %s131, %s147
      %p149 = scmp.eq.s32.totalorder %s50, 0
      %p150 = por %p148, %p149
      %s151 = ssub.s32 %s44, %s51
      %p152 = scmp.eq.s32.totalorder %s151, 0
      %s154 = sadd.s32 %s153, 1
      %s155 = scalar_select %p152, %s153, %s154
      %p158 = pneg %p152
      %p159 = scmp.eq.s32.totalorder %s44, 1
      %p160 = por %p158, %p159
      %p161 = scmp.ne.s32.totalorder %s153, %s156
      %p162 = scmp.eq.s32.totalorder %s44, 0
      %p163 = por %p161, %p162
      %p164 = scmp.ne.s32.totalorder %s153, %s156
      %p165 = scmp.eq.s32.totalorder %s49, 1
      %p166 = por %p164, %p165
      %p167 = scmp.ne.s32.totalorder %s156, %s157
      %p168 = scmp.eq.s32.totalorder %s49, 0
      %p169 = por %p167, %p168
      %p170 = scmp.ne.s32.totalorder %s156, %s157
      %p171 = scmp.eq.s32.totalorder %s50, 1
      %p172 = por %p170, %p171
      %p174 = scmp.ne.s32.totalorder %s157, %s173
      %p175 = scmp.eq.s32.totalorder %s50, 0
      %p176 = por %p174, %p175
      %s177 = ssub.s32 %s44, %s51
      %p178 = scmp.eq.s32.totalorder %s177, 0
      %s180 = sadd.s32 %s179, 1
      %s181 = scalar_select %p178, %s179, %s180
      %p184 = pneg %p178
      %p185 = scmp.eq.s32.totalorder %s44, 1
      %p186 = por %p184, %p185
      %p187 = scmp.ne.s32.totalorder %s179, %s182
      %p188 = scmp.eq.s32.totalorder %s44, 0
      %p189 = por %p187, %p188
      %p190 = scmp.ne.s32.totalorder %s179, %s182
      %p191 = scmp.eq.s32.totalorder %s49, 1
      %p192 = por %p190, %p191
      %p193 = scmp.ne.s32.totalorder %s182, %s183
      %p194 = scmp.eq.s32.totalorder %s49, 0
      %p195 = por %p193, %p194
      %p196 = scmp.ne.s32.totalorder %s182, %s183
      %p197 = scmp.eq.s32.totalorder %s50, 1
      %p198 = por %p196, %p197
      %p200 = scmp.ne.s32.totalorder %s183, %s199
      %p201 = scmp.eq.s32.totalorder %s50, 0
      %p202 = por %p200, %p201
      %s203 = ssub.s32 %s44, %s51
      %p204 = scmp.eq.s32.totalorder %s203, 0
      %s206 = sadd.s32 %s205, 1
      %s207 = scalar_select %p204, %s205, %s206
      %p210 = pneg %p204
      %p211 = scmp.eq.s32.totalorder %s44, 1
      %p212 = por %p210, %p211
      %p213 = scmp.ne.s32.totalorder %s205, %s208
      %p214 = scmp.eq.s32.totalorder %s44, 0
      %p215 = por %p213, %p214
      %p216 = scmp.ne.s32.totalorder %s205, %s208
      %p217 = scmp.eq.s32.totalorder %s49, 1
      %p218 = por %p216, %p217
      %p219 = scmp.ne.s32.totalorder %s208, %s209
      %p220 = scmp.eq.s32.totalorder %s49, 0
      %p221 = por %p219, %p220
      %p222 = scmp.ne.s32.totalorder %s208, %s209
      %p223 = scmp.eq.s32.totalorder %s50, 1
      %p224 = por %p222, %p223
      %p226 = scmp.ne.s32.totalorder %s209, %s225
      %p227 = scmp.eq.s32.totalorder %s50, 0
      %p228 = por %p226, %p227
      %s229 = ssub.s32 %s44, %s51
      %p230 = scmp.eq.s32.totalorder %s229, 0
      %s232 = sadd.s32 %s231, 1
      %s233 = scalar_select %p230, %s231, %s232
      %p236 = pneg %p230
      %p237 = scmp.eq.s32.totalorder %s44, 1
      %p238 = por %p236, %p237
      %p239 = scmp.ne.s32.totalorder %s231, %s234
      %p240 = scmp.eq.s32.totalorder %s44, 0
      %p241 = por %p239, %p240
      %p242 = scmp.ne.s32.totalorder %s231, %s234
      %p243 = scmp.eq.s32.totalorder %s49, 1
      %p244 = por %p242, %p243
      %p245 = scmp.ne.s32.totalorder %s234, %s235
      %p246 = scmp.eq.s32.totalorder %s49, 0
      %p247 = por %p245, %p246
      %p248 = scmp.ne.s32.totalorder %s234, %s235
      %p249 = scmp.eq.s32.totalorder %s50, 1
      %p250 = por %p248, %p249
      %p252 = scmp.ne.s32.totalorder %s235, %s251
      %p253 = scmp.eq.s32.totalorder %s50, 0
      %p254 = por %p252, %p253
      %s255 = ssub.s32 %s44, %s51
      %p256 = scmp.eq.s32.totalorder %s255, 0
      %s258 = sadd.s32 %s257, 1
      %s259 = scalar_select %p256, %s257, %s258
      %p262 = pneg %p256
      %p263 = scmp.eq.s32.totalorder %s44, 1
      %p264 = por %p262, %p263
      %p265 = scmp.ne.s32.totalorder %s257, %s260
      %p266 = scmp.eq.s32.totalorder %s44, 0
      %p267 = por %p265, %p266
      %p268 = scmp.ne.s32.totalorder %s257, %s260
      %p269 = scmp.eq.s32.totalorder %s49, 1
      %p270 = por %p268, %p269
      %p271 = scmp.ne.s32.totalorder %s260, %s261
      %p272 = scmp.eq.s32.totalorder %s49, 0
      %p273 = por %p271, %p272
      %p274 = scmp.ne.s32.totalorder %s260, %s261
      %p275 = scmp.eq.s32.totalorder %s50, 1
      %p276 = por %p274, %p275
      %p278 = scmp.ne.s32.totalorder %s261, %s277
      %p279 = scmp.eq.s32.totalorder %s50, 0
      %p280 = por %p278, %p279
      %s281 = ssub.s32 %s44, %s51
      %p282 = scmp.eq.s32.totalorder %s281, 0
      %s284 = sadd.s32 %s283, 1
      %s285 = scalar_select %p282, %s283, %s284
      %p288 = pneg %p282
      %p289 = scmp.eq.s32.totalorder %s44, 1
      %p290 = por %p288, %p289
      %p291 = scmp.ne.s32.totalorder %s283, %s286
      %p292 = scmp.eq.s32.totalorder %s44, 0
      %p293 = por %p291, %p292
      %p294 = scmp.ne.s32.totalorder %s283, %s286
      %p295 = scmp.eq.s32.totalorder %s49, 1
      %p296 = por %p294, %p295
      %p297 = scmp.ne.s32.totalorder %s286, %s287
      %p298 = scmp.eq.s32.totalorder %s49, 0
      %p299 = por %p297, %p298
      %p300 = scmp.ne.s32.totalorder %s286, %s287
      %p301 = scmp.eq.s32.totalorder %s50, 1
      %p302 = por %p300, %p301
      %p304 = scmp.ne.s32.totalorder %s287, %s303
      %p305 = scmp.eq.s32.totalorder %s50, 0
      %p306 = por %p304, %p305
      %s307 = ssub.s32 %s44, %s51
      %p308 = scmp.eq.s32.totalorder %s307, 0
      %s310 = sadd.s32 %s309, 1
      %s311 = scalar_select %p308, %s309, %s310
      %p314 = pneg %p308
      %p315 = scmp.eq.s32.totalorder %s44, 1
      %p316 = por %p314, %p315
      %p317 = scmp.ne.s32.totalorder %s309, %s312
      %p318 = scmp.eq.s32.totalorder %s44, 0
      %p319 = por %p317, %p318
      %p320 = scmp.ne.s32.totalorder %s309, %s312
      %p321 = scmp.eq.s32.totalorder %s49, 1
      %p322 = por %p320, %p321
      %p323 = scmp.ne.s32.totalorder %s312, %s313
      %p324 = scmp.eq.s32.totalorder %s49, 0
      %p325 = por %p323, %p324
      %p326 = scmp.ne.s32.totalorder %s312, %s313
      %p327 = scmp.eq.s32.totalorder %s50, 1
      %p328 = por %p326, %p327
      %p330 = scmp.ne.s32.totalorder %s313, %s329
      %p331 = scmp.eq.s32.totalorder %s50, 0
      %p332 = por %p330, %p331
      %s333 = ssub.s32 %s44, %s51
      %p334 = scmp.eq.s32.totalorder %s333, 0
      %s336 = sadd.s32 %s335, 1
      %s337 = scalar_select %p334, %s335, %s336
      %p340 = pneg %p334
      %p341 = scmp.eq.s32.totalorder %s44, 1
      %p342 = por %p340, %p341
      %p343 = scmp.ne.s32.totalorder %s335, %s338
      %p344 = scmp.eq.s32.totalorder %s44, 0
      %p345 = por %p343, %p344
      %p346 = scmp.ne.s32.totalorder %s335, %s338
      %p347 = scmp.eq.s32.totalorder %s49, 1
      %p348 = por %p346, %p347
      %p349 = scmp.ne.s32.totalorder %s338, %s339
      %p350 = scmp.eq.s32.totalorder %s49, 0
      %p351 = por %p349, %p350
      %p352 = scmp.ne.s32.totalorder %s338, %s339
      %p353 = scmp.eq.s32.totalorder %s50, 1
      %p354 = por %p352, %p353
      %p356 = scmp.ne.s32.totalorder %s339, %s355
      %p357 = scmp.eq.s32.totalorder %s50, 0
      %p358 = por %p356, %p357
      %s359 = ssub.s32 %s44, %s51
      %p360 = scmp.eq.s32.totalorder %s359, 0
      %s362 = sadd.s32 %s361, 1
      %s363 = scalar_select %p360, %s361, %s362
      %p366 = pneg %p360
      %p367 = scmp.eq.s32.totalorder %s44, 1
      %p368 = por %p366, %p367
      %p369 = scmp.ne.s32.totalorder %s361, %s364
      %p370 = scmp.eq.s32.totalorder %s44, 0
      %p371 = por %p369, %p370
      %p372 = scmp.ne.s32.totalorder %s361, %s364
      %p373 = scmp.eq.s32.totalorder %s49, 1
      %p374 = por %p372, %p373
      %p375 = scmp.ne.s32.totalorder %s364, %s365
      %p376 = scmp.eq.s32.totalorder %s49, 0
      %p377 = por %p375, %p376
      %p378 = scmp.ne.s32.totalorder %s364, %s365
      %p379 = scmp.eq.s32.totalorder %s50, 1
      %p380 = por %p378, %p379
      %p382 = scmp.ne.s32.totalorder %s365, %s381
      %p383 = scmp.eq.s32.totalorder %s50, 0
      %p384 = por %p382, %p383
      %s386 = sadd.s32 %s385, 1
      %p389 = scmp.eq.s32.totalorder %s44, 1
      %p390 = scmp.ne.s32.totalorder %s385, %s387
      %p391 = scmp.eq.s32.totalorder %s44, 0
      %p392 = por %p390, %p391
      %p393 = scmp.ne.s32.totalorder %s385, %s387
      %p394 = scmp.eq.s32.totalorder %s49, 1
      %p395 = por %p393, %p394
      %p396 = scmp.ne.s32.totalorder %s387, %s388
      %p397 = scmp.eq.s32.totalorder %s49, 0
      %p398 = por %p396, %p397
      %p399 = scmp.ne.s32.totalorder %s387, %s388
      %p400 = scmp.eq.s32.totalorder %s50, 1
      %p401 = por %p399, %p400
      %p403 = scmp.ne.s32.totalorder %s388, %s402
      %p404 = scmp.eq.s32.totalorder %s50, 0
      %p405 = por %p403, %p404
      %p406 = scmp.le.s32.totalorder 1, %s44
      %p407 = scmp.lt.s32.totalorder %s44, 3
      %p408 = pnand %p406, %p407
      %p409 = pneg %p408
      // Predicated region
      $region9: #{conv_tasnet_forward.6} parent=5 // pred_check
        _
      $region10: #{conv_tasnet_forward.6} parent=5 // pred_check_branch
        %411 = sbr.rel (%p408) target = $region12
      $region11: #{conv_tasnet_forward.6} parent=5 // pred_region
        %s412 = ssub.s32 %s44, 1
        // Predicated region
        $region13: #{conv_tasnet_forward.6} parent=11 // pred_check
          %p413 = pneg %p65
        $region14: #{conv_tasnet_forward.6} parent=11 // pred_check_branch
          %415 = sbr.rel (%p413) target = $region16
        $region15: #{conv_tasnet_forward.6} parent=11 // pred_region
          %s417 = ssub.s32 128, 128
          %418 = vsyncadd [#allocation6], %s417
          %s420 = sshll.u32 [#allocation5], 4
          %s421 = int_to_ptr.vmem [resolvable:$true] %s420
          %423 = dma.hbm_to_vmem [thread:$0]  %s1, 128, %s421, [#allocation6]
        $region16: #{conv_tasnet_forward.6} parent=11 // pred_fallthru
          _
      $region12: #{conv_tasnet_forward.6} parent=5 // pred_fallthru
        _
      %p424 = scmp.lt.s32.totalorder %s44, 2
      // Predicated region
      $region17: #{conv_tasnet_forward.6} parent=5 // pred_check
        %p425 = pneg %p424
      $region18: #{conv_tasnet_forward.6} parent=5 // pred_check_branch
        %427 = sbr.rel (%p425) target = $region20
      $region19: #{conv_tasnet_forward.6} parent=5 // pred_region
        // Predicated region
        $region21: #{conv_tasnet_forward.6} parent=19 // pred_check
          %p428 = pneg %p85
        $region22: #{conv_tasnet_forward.6} parent=19 // pred_check_branch
          %430 = sbr.rel (%p428) target = $region24
        $region23: #{conv_tasnet_forward.6} parent=19 // pred_region
          %s431 = sand.u32 %s44, 1
          %s432 = scalar_lea.sflag [#allocation9], %s431
          %s433 = sand.u32 %s75, 1
          %s434 = smul.addr %s433, 4
          %s435 = scalar_lea.vmem [#allocation8], %s434
          %s437 = ssub.s32 64, 64
          %438 = vsyncadd %s432, %s437
          %s439 = smul.addr %s44, 64
          %s440 = scalar_lea.hbm %s2, %s439
          %s442 = sshll.u32 %s435, 4
          %s443 = int_to_ptr.vmem [resolvable:$true] %s442
          %445 = dma.hbm_to_vmem [thread:$0]  %s440, 64, %s443, %s432
        $region24: #{conv_tasnet_forward.6} parent=19 // pred_fallthru
          _
        // Predicated region
        $region25: #{conv_tasnet_forward.6} parent=19 // pred_check
          %p446 = pneg %p111
        $region26: #{conv_tasnet_forward.6} parent=19 // pred_check_branch
          %448 = sbr.rel (%p446) target = $region28
        $region27: #{conv_tasnet_forward.6} parent=19 // pred_region
          %s449 = sand.u32 %s44, 1
          %s450 = scalar_lea.sflag [#allocation9], %s449
          %s451 = sand.u32 %s101, 1
          %s452 = smul.addr %s451, 8
          %s453 = scalar_lea.vmem [#allocation10], %s452
          %s455 = ssub.s32 128, 128
          %456 = vsyncadd %s450, %s455
          %s457 = smul.addr %s44, 128
          %s458 = scalar_lea.hbm %s3, %s457
          %s460 = sshll.u32 %s453, 4
          %s461 = int_to_ptr.vmem [resolvable:$true] %s460
          %463 = dma.hbm_to_vmem [thread:$0]  %s458, 128, %s461, %s450
        $region28: #{conv_tasnet_forward.6} parent=19 // pred_fallthru
          _
        // Predicated region
        $region29: #{conv_tasnet_forward.6} parent=19 // pred_check
          %p464 = pneg %p137
        $region30: #{conv_tasnet_forward.6} parent=19 // pred_check_branch
          %466 = sbr.rel (%p464) target = $region32
        $region31: #{conv_tasnet_forward.6} parent=19 // pred_region
          %s467 = sand.u32 %s44, 1
          %s468 = scalar_lea.sflag [#allocation12], %s467
          %s469 = sand.u32 %s127, 1
          %s470 = smul.addr %s469, 8
          %s471 = scalar_lea.vmem [#allocation11], %s470
          %s473 = ssub.s32 128, 128
          %474 = vsyncadd %s468, %s473
          %s475 = smul.addr %s44, 128
          %s476 = scalar_lea.hbm %s4, %s475
          %s478 = sshll.u32 %s471, 4
          %s479 = int_to_ptr.vmem [resolvable:$true] %s478
          %481 = dma.hbm_to_vmem [thread:$0]  %s476, 128, %s479, %s468
        $region32: #{conv_tasnet_forward.6} parent=19 // pred_fallthru
          _
        // Predicated region
        $region33: #{conv_tasnet_forward.6} parent=19 // pred_check
          %p482 = pneg %p163
        $region34: #{conv_tasnet_forward.6} parent=19 // pred_check_branch
          %484 = sbr.rel (%p482) target = $region36
        $region35: #{conv_tasnet_forward.6} parent=19 // pred_region
          %s485 = sand.u32 %s44, 1
          %s486 = scalar_lea.sflag [#allocation12], %s485
          %s487 = sand.u32 %s153, 1
          %s488 = smul.addr %s487, 8
          %s489 = scalar_lea.vmem [#allocation13], %s488
          %s491 = ssub.s32 128, 128
          %492 = vsyncadd %s486, %s491
          %s493 = smul.addr %s44, 128
          %s494 = scalar_lea.hbm %s5, %s493
          %s496 = sshll.u32 %s489, 4
          %s497 = int_to_ptr.vmem [resolvable:$true] %s496
          %499 = dma.hbm_to_vmem [thread:$0]  %s494, 128, %s497, %s486
        $region36: #{conv_tasnet_forward.6} parent=19 // pred_fallthru
          _
        // Predicated region
        $region37: #{conv_tasnet_forward.6} parent=19 // pred_check
          %p500 = pneg %p189
        $region38: #{conv_tasnet_forward.6} parent=19 // pred_check_branch
          %502 = sbr.rel (%p500) target = $region40
        $region39: #{conv_tasnet_forward.6} parent=19 // pred_region
          %s503 = sand.u32 %s44, 1
          %s504 = scalar_lea.sflag [#allocation15], %s503
          %s505 = sand.u32 %s179, 1
          %s506 = smul.addr %s505, 8
          %s507 = scalar_lea.vmem [#allocation14], %s506
          %s509 = ssub.s32 128, 128
          %510 = vsyncadd %s504, %s509
          %s511 = smul.addr %s44, 128
          %s512 = scalar_lea.hbm %s6, %s511
          %s514 = sshll.u32 %s507, 4
          %s515 = int_to_ptr.vmem [resolvable:$true] %s514
          %517 = dma.hbm_to_vmem [thread:$0]  %s512, 128, %s515, %s504
        $region40: #{conv_tasnet_forward.6} parent=19 // pred_fallthru
          _
        // Predicated region
        $region41: #{conv_tasnet_forward.6} parent=19 // pred_check
          %p518 = pneg %p215
        $region42: #{conv_tasnet_forward.6} parent=19 // pred_check_branch
          %520 = sbr.rel (%p518) target = $region44
        $region43: #{conv_tasnet_forward.6} parent=19 // pred_region
          %s521 = sand.u32 %s44, 1
          %s522 = scalar_lea.sflag [#allocation15], %s521
          %s523 = sand.u32 %s205, 1
          %s524 = smul.addr %s523, 8
          %s525 = scalar_lea.vmem [#allocation16], %s524
          %s527 = ssub.s32 128, 128
          %528 = vsyncadd %s522, %s527
          %s529 = smul.addr %s44, 128
          %s530 = scalar_lea.hbm %s7, %s529
          %s532 = sshll.u32 %s525, 4
          %s533 = int_to_ptr.vmem [resolvable:$true] %s532
          %535 = dma.hbm_to_vmem [thread:$0]  %s530, 128, %s533, %s522
        $region44: #{conv_tasnet_forward.6} parent=19 // pred_fallthru
          _
        // Predicated region
        $region45: #{conv_tasnet_forward.6} parent=19 // pred_check
          %p536 = pneg %p241
        $region46: #{conv_tasnet_forward.6} parent=19 // pred_check_branch
          %538 = sbr.rel (%p536) target = $region48
        $region47: #{conv_tasnet_forward.6} parent=19 // pred_region
          %s539 = sand.u32 %s44, 1
          %s540 = scalar_lea.sflag [#allocation18], %s539
          %s541 = sand.u32 %s231, 1
          %s542 = smul.addr %s541, 8
          %s543 = scalar_lea.vmem [#allocation17], %s542
          %s545 = ssub.s32 128, 128
          %546 = vsyncadd %s540, %s545
          %s547 = smul.addr %s44, 128
          %s548 = scalar_lea.hbm %s8, %s547
          %s550 = sshll.u32 %s543, 4
          %s551 = int_to_ptr.vmem [resolvable:$true] %s550
          %553 = dma.hbm_to_vmem [thread:$0]  %s548, 128, %s551, %s540
        $region48: #{conv_tasnet_forward.6} parent=19 // pred_fallthru
          _
        // Predicated region
        $region49: #{conv_tasnet_forward.6} parent=19 // pred_check
          %p554 = pneg %p267
        $region50: #{conv_tasnet_forward.6} parent=19 // pred_check_branch
          %556 = sbr.rel (%p554) target = $region52
        $region51: #{conv_tasnet_forward.6} parent=19 // pred_region
          %s557 = sand.u32 %s44, 1
          %s558 = scalar_lea.sflag [#allocation18], %s557
          %s559 = sand.u32 %s257, 1
          %s560 = smul.addr %s559, 8
          %s561 = scalar_lea.vmem [#allocation19], %s560
          %s563 = ssub.s32 128, 128
          %564 = vsyncadd %s558, %s563
          %s565 = smul.addr %s44, 128
          %s566 = scalar_lea.hbm %s9, %s565
          %s568 = sshll.u32 %s561, 4
          %s569 = int_to_ptr.vmem [resolvable:$true] %s568
          %571 = dma.hbm_to_vmem [thread:$0]  %s566, 128, %s569, %s558
        $region52: #{conv_tasnet_forward.6} parent=19 // pred_fallthru
          _
        // Predicated region
        $region53: #{conv_tasnet_forward.6} parent=19 // pred_check
          %p572 = pneg %p293
        $region54: #{conv_tasnet_forward.6} parent=19 // pred_check_branch
          %574 = sbr.rel (%p572) target = $region56
        $region55: #{conv_tasnet_forward.6} parent=19 // pred_region
          %s575 = sand.u32 %s44, 1
          %s576 = scalar_lea.sflag [#allocation21], %s575
          %s577 = sand.u32 %s283, 1
          %s578 = smul.addr %s577, 8
          %s579 = scalar_lea.vmem [#allocation20], %s578
          %s581 = ssub.s32 128, 128
          %582 = vsyncadd %s576, %s581
          %s583 = smul.addr %s44, 128
          %s584 = scalar_lea.hbm %s10, %s583
          %s586 = sshll.u32 %s579, 4
          %s587 = int_to_ptr.vmem [resolvable:$true] %s586
          %589 = dma.hbm_to_vmem [thread:$0]  %s584, 128, %s587, %s576
        $region56: #{conv_tasnet_forward.6} parent=19 // pred_fallthru
          _
        // Predicated region
        $region57: #{conv_tasnet_forward.6} parent=19 // pred_check
          %p590 = pneg %p319
        $region58: #{conv_tasnet_forward.6} parent=19 // pred_check_branch
          %592 = sbr.rel (%p590) target = $region60
        $region59: #{conv_tasnet_forward.6} parent=19 // pred_region
          %s593 = sand.u32 %s44, 1
          %s594 = scalar_lea.sflag [#allocation21], %s593
          %s595 = sand.u32 %s309, 1
          %s596 = smul.addr %s595, 8
          %s597 = scalar_lea.vmem [#allocation22], %s596
          %s599 = ssub.s32 128, 128
          %600 = vsyncadd %s594, %s599
          %s601 = smul.addr %s44, 128
          %s602 = scalar_lea.hbm %s11, %s601
          %s604 = sshll.u32 %s597, 4
          %s605 = int_to_ptr.vmem [resolvable:$true] %s604
          %607 = dma.hbm_to_vmem [thread:$0]  %s602, 128, %s605, %s594
        $region60: #{conv_tasnet_forward.6} parent=19 // pred_fallthru
          _
        // Predicated region
        $region61: #{conv_tasnet_forward.6} parent=19 // pred_check
          %p608 = pneg %p345
        $region62: #{conv_tasnet_forward.6} parent=19 // pred_check_branch
          %610 = sbr.rel (%p608) target = $region64
        $region63: #{conv_tasnet_forward.6} parent=19 // pred_region
          %s611 = sand.u32 %s44, 1
          %s612 = scalar_lea.sflag [#allocation24], %s611
          %s613 = sand.u32 %s335, 1
          %s614 = smul.addr %s613, 4
          %s615 = scalar_lea.vmem [#allocation23], %s614
          %s617 = ssub.s32 64, 64
          %618 = vsyncadd %s612, %s617
          %s619 = smul.addr %s44, 64
          %s620 = scalar_lea.hbm %s12, %s619
          %s622 = sshll.u32 %s615, 4
          %s623 = int_to_ptr.vmem [resolvable:$true] %s622
          %625 = dma.hbm_to_vmem [thread:$0]  %s620, 64, %s623, %s612
        $region64: #{conv_tasnet_forward.6} parent=19 // pred_fallthru
          _
        // Predicated region
        $region65: #{conv_tasnet_forward.6} parent=19 // pred_check
          %p626 = pneg %p371
        $region66: #{conv_tasnet_forward.6} parent=19 // pred_check_branch
          %628 = sbr.rel (%p626) target = $region68
        $region67: #{conv_tasnet_forward.6} parent=19 // pred_region
          %s629 = sand.u32 %s44, 1
          %s630 = scalar_lea.sflag [#allocation24], %s629
          %s631 = sand.u32 %s361, 1
          %s632 = smul.addr %s631, 8
          %s633 = scalar_lea.vmem [#allocation25], %s632
          %s635 = ssub.s32 128, 128
          %636 = vsyncadd %s630, %s635
          %s637 = smul.addr %s44, 128
          %s638 = scalar_lea.hbm %s13, %s637
          %s640 = sshll.u32 %s633, 4
          %s641 = int_to_ptr.vmem [resolvable:$true] %s640
          %643 = dma.hbm_to_vmem [thread:$0]  %s638, 128, %s641, %s630
        $region68: #{conv_tasnet_forward.6} parent=19 // pred_fallthru
          _
      $region20: #{conv_tasnet_forward.6} parent=5 // pred_fallthru
        _
      %p644 = scmp.le.s32.totalorder 1, %s44
      %p645 = scmp.lt.s32.totalorder %s44, 3
      %p646 = pnand %p644, %p645
      %p647 = pneg %p646
      // Predicated region
      $region69: #{conv_tasnet_forward.6} parent=5 // pred_check
        _
      $region70: #{conv_tasnet_forward.6} parent=5 // pred_check_branch
        %649 = sbr.rel (%p646) target = $region72
      $region71: #{conv_tasnet_forward.6} parent=5 // pred_region
        %s650 = ssub.s32 %s44, 1
        // Predicated region
        $region73: #{conv_tasnet_forward.6} parent=71 // pred_check
          %p651 = pneg %p65
        $region74: #{conv_tasnet_forward.6} parent=71 // pred_check_branch
          %653 = sbr.rel (%p651) target = $region76
        $region75: #{conv_tasnet_forward.6} parent=71 // pred_region
          %654 = dma.done [#allocation6], 128
        $region76: #{conv_tasnet_forward.6} parent=71 // pred_fallthru
          _
        %s655 = sand.u32 %s49, 1
        %s656 = scalar_lea.sflag [#allocation9], %s655
        %s657 = sand.u32 %s78, 1
        %s658 = smul.addr %s657, 4
        %s659 = scalar_lea.vmem [#allocation8], %s658
        // Predicated region
        $region77: #{conv_tasnet_forward.6} parent=71 // pred_check
          %p660 = pneg %p91
        $region78: #{conv_tasnet_forward.6} parent=71 // pred_check_branch
          %662 = sbr.rel (%p660) target = $region80
        $region79: #{conv_tasnet_forward.6} parent=71 // pred_region
          %663 = dma.done %s656, 64
        $region80: #{conv_tasnet_forward.6} parent=71 // pred_fallthru
          _
        %s664 = sand.u32 %s49, 1
        %s665 = scalar_lea.sflag [#allocation9], %s664
        %s666 = sand.u32 %s104, 1
        %s667 = smul.addr %s666, 8
        %s668 = scalar_lea.vmem [#allocation10], %s667
        // Predicated region
        $region81: #{conv_tasnet_forward.6} parent=71 // pred_check
          %p669 = pneg %p117
        $region82: #{conv_tasnet_forward.6} parent=71 // pred_check_branch
          %671 = sbr.rel (%p669) target = $region84
        $region83: #{conv_tasnet_forward.6} parent=71 // pred_region
          %672 = dma.done %s665, 128
        $region84: #{conv_tasnet_forward.6} parent=71 // pred_fallthru
          _
        %s673 = sand.u32 %s49, 1
        %s674 = scalar_lea.sflag [#allocation12], %s673
        %s675 = sand.u32 %s130, 1
        %s676 = smul.addr %s675, 8
        %s677 = scalar_lea.vmem [#allocation11], %s676
        // Predicated region
        $region85: #{conv_tasnet_forward.6} parent=71 // pred_check
          %p678 = pneg %p143
        $region86: #{conv_tasnet_forward.6} parent=71 // pred_check_branch
          %680 = sbr.rel (%p678) target = $region88
        $region87: #{conv_tasnet_forward.6} parent=71 // pred_region
          %681 = dma.done %s674, 128
        $region88: #{conv_tasnet_forward.6} parent=71 // pred_fallthru
          _
        %s682 = sand.u32 %s49, 1
        %s683 = scalar_lea.sflag [#allocation12], %s682
        %s684 = sand.u32 %s156, 1
        %s685 = smul.addr %s684, 8
        %s686 = scalar_lea.vmem [#allocation13], %s685
        // Predicated region
        $region89: #{conv_tasnet_forward.6} parent=71 // pred_check
          %p687 = pneg %p169
        $region90: #{conv_tasnet_forward.6} parent=71 // pred_check_branch
          %689 = sbr.rel (%p687) target = $region92
        $region91: #{conv_tasnet_forward.6} parent=71 // pred_region
          %690 = dma.done %s683, 128
        $region92: #{conv_tasnet_forward.6} parent=71 // pred_fallthru
          _
        %s691 = sand.u32 %s49, 1
        %s692 = scalar_lea.sflag [#allocation15], %s691
        %s693 = sand.u32 %s182, 1
        %s694 = smul.addr %s693, 8
        %s695 = scalar_lea.vmem [#allocation14], %s694
        // Predicated region
        $region93: #{conv_tasnet_forward.6} parent=71 // pred_check
          %p696 = pneg %p195
        $region94: #{conv_tasnet_forward.6} parent=71 // pred_check_branch
          %698 = sbr.rel (%p696) target = $region96
        $region95: #{conv_tasnet_forward.6} parent=71 // pred_region
          %699 = dma.done %s692, 128
        $region96: #{conv_tasnet_forward.6} parent=71 // pred_fallthru
          _
        %s700 = sand.u32 %s49, 1
        %s701 = scalar_lea.sflag [#allocation15], %s700
        %s702 = sand.u32 %s208, 1
        %s703 = smul.addr %s702, 8
        %s704 = scalar_lea.vmem [#allocation16], %s703
        // Predicated region
        $region97: #{conv_tasnet_forward.6} parent=71 // pred_check
          %p705 = pneg %p221
        $region98: #{conv_tasnet_forward.6} parent=71 // pred_check_branch
          %707 = sbr.rel (%p705) target = $region100
        $region99: #{conv_tasnet_forward.6} parent=71 // pred_region
          %708 = dma.done %s701, 128
        $region100: #{conv_tasnet_forward.6} parent=71 // pred_fallthru
          _
        %s709 = sand.u32 %s49, 1
        %s710 = scalar_lea.sflag [#allocation18], %s709
        %s711 = sand.u32 %s234, 1
        %s712 = smul.addr %s711, 8
        %s713 = scalar_lea.vmem [#allocation17], %s712
        // Predicated region
        $region101: #{conv_tasnet_forward.6} parent=71 // pred_check
          %p714 = pneg %p247
        $region102: #{conv_tasnet_forward.6} parent=71 // pred_check_branch
          %716 = sbr.rel (%p714) target = $region104
        $region103: #{conv_tasnet_forward.6} parent=71 // pred_region
          %717 = dma.done %s710, 128
        $region104: #{conv_tasnet_forward.6} parent=71 // pred_fallthru
          _
        %s718 = sand.u32 %s49, 1
        %s719 = scalar_lea.sflag [#allocation18], %s718
        %s720 = sand.u32 %s260, 1
        %s721 = smul.addr %s720, 8
        %s722 = scalar_lea.vmem [#allocation19], %s721
        // Predicated region
        $region105: #{conv_tasnet_forward.6} parent=71 // pred_check
          %p723 = pneg %p273
        $region106: #{conv_tasnet_forward.6} parent=71 // pred_check_branch
          %725 = sbr.rel (%p723) target = $region108
        $region107: #{conv_tasnet_forward.6} parent=71 // pred_region
          %726 = dma.done %s719, 128
        $region108: #{conv_tasnet_forward.6} parent=71 // pred_fallthru
          _
        %s727 = sand.u32 %s49, 1
        %s728 = scalar_lea.sflag [#allocation21], %s727
        %s729 = sand.u32 %s286, 1
        %s730 = smul.addr %s729, 8
        %s731 = scalar_lea.vmem [#allocation20], %s730
        // Predicated region
        $region109: #{conv_tasnet_forward.6} parent=71 // pred_check
          %p732 = pneg %p299
        $region110: #{conv_tasnet_forward.6} parent=71 // pred_check_branch
          %734 = sbr.rel (%p732) target = $region112
        $region111: #{conv_tasnet_forward.6} parent=71 // pred_region
          %735 = dma.done %s728, 128
        $region112: #{conv_tasnet_forward.6} parent=71 // pred_fallthru
          _
        %s736 = sand.u32 %s49, 1
        %s737 = scalar_lea.sflag [#allocation21], %s736
        %s738 = sand.u32 %s312, 1
        %s739 = smul.addr %s738, 8
        %s740 = scalar_lea.vmem [#allocation22], %s739
        // Predicated region
        $region113: #{conv_tasnet_forward.6} parent=71 // pred_check
          %p741 = pneg %p325
        $region114: #{conv_tasnet_forward.6} parent=71 // pred_check_branch
          %743 = sbr.rel (%p741) target = $region116
        $region115: #{conv_tasnet_forward.6} parent=71 // pred_region
          %744 = dma.done %s737, 128
        $region116: #{conv_tasnet_forward.6} parent=71 // pred_fallthru
          _
        %s745 = sand.u32 %s49, 1
        %s746 = scalar_lea.sflag [#allocation24], %s745
        %s747 = sand.u32 %s338, 1
        %s748 = smul.addr %s747, 4
        %s749 = scalar_lea.vmem [#allocation23], %s748
        // Predicated region
        $region117: #{conv_tasnet_forward.6} parent=71 // pred_check
          %p750 = pneg %p351
        $region118: #{conv_tasnet_forward.6} parent=71 // pred_check_branch
          %752 = sbr.rel (%p750) target = $region120
        $region119: #{conv_tasnet_forward.6} parent=71 // pred_region
          %753 = dma.done %s746, 64
        $region120: #{conv_tasnet_forward.6} parent=71 // pred_fallthru
          _
        %s754 = sand.u32 %s49, 1
        %s755 = scalar_lea.sflag [#allocation24], %s754
        %s756 = sand.u32 %s364, 1
        %s757 = smul.addr %s756, 8
        %s758 = scalar_lea.vmem [#allocation25], %s757
        // Predicated region
        $region121: #{conv_tasnet_forward.6} parent=71 // pred_check
          %p759 = pneg %p377
        $region122: #{conv_tasnet_forward.6} parent=71 // pred_check_branch
          %761 = sbr.rel (%p759) target = $region124
        $region123: #{conv_tasnet_forward.6} parent=71 // pred_region
          %762 = dma.done %s755, 128
        $region124: #{conv_tasnet_forward.6} parent=71 // pred_fallthru
          _
        %p763 = pneg %p65
        %p764 = pneg %p62
        %s765 = sand.u32 %s49, 1
        %s766 = scalar_lea.sflag [#allocation9], %s765
        %s767 = sand.u32 %s78, 1
        %s768 = smul.addr %s767, 4
        %s769 = scalar_lea.vmem [#allocation8], %s768
        %p770 = pneg %p91
        %p771 = pneg %p88
        %s772 = sand.u32 %s49, 1
        %s773 = scalar_lea.sflag [#allocation9], %s772
        %s774 = sand.u32 %s104, 1
        %s775 = smul.addr %s774, 8
        %s776 = scalar_lea.vmem [#allocation10], %s775
        %p777 = pneg %p117
        %p778 = pneg %p114
        %s779 = sand.u32 %s49, 1
        %s780 = scalar_lea.sflag [#allocation12], %s779
        %s781 = sand.u32 %s130, 1
        %s782 = smul.addr %s781, 8
        %s783 = scalar_lea.vmem [#allocation11], %s782
        %p784 = pneg %p143
        %p785 = pneg %p140
        %s786 = sand.u32 %s49, 1
        %s787 = scalar_lea.sflag [#allocation12], %s786
        %s788 = sand.u32 %s156, 1
        %s789 = smul.addr %s788, 8
        %s790 = scalar_lea.vmem [#allocation13], %s789
        %p791 = pneg %p169
        %p792 = pneg %p166
        %s793 = sand.u32 %s49, 1
        %s794 = scalar_lea.sflag [#allocation15], %s793
        %s795 = sand.u32 %s182, 1
        %s796 = smul.addr %s795, 8
        %s797 = scalar_lea.vmem [#allocation14], %s796
        %p798 = pneg %p195
        %p799 = pneg %p192
        %s800 = sand.u32 %s49, 1
        %s801 = scalar_lea.sflag [#allocation15], %s800
        %s802 = sand.u32 %s208, 1
        %s803 = smul.addr %s802, 8
        %s804 = scalar_lea.vmem [#allocation16], %s803
        %p805 = pneg %p221
        %p806 = pneg %p218
        %s807 = sand.u32 %s49, 1
        %s808 = scalar_lea.sflag [#allocation18], %s807
        %s809 = sand.u32 %s234, 1
        %s810 = smul.addr %s809, 8
        %s811 = scalar_lea.vmem [#allocation17], %s810
        %p812 = pneg %p247
        %p813 = pneg %p244
        %s814 = sand.u32 %s49, 1
        %s815 = scalar_lea.sflag [#allocation18], %s814
        %s816 = sand.u32 %s260, 1
        %s817 = smul.addr %s816, 8
        %s818 = scalar_lea.vmem [#allocation19], %s817
        %p819 = pneg %p273
        %p820 = pneg %p270
        %s821 = sand.u32 %s49, 1
        %s822 = scalar_lea.sflag [#allocation21], %s821
        %s823 = sand.u32 %s286, 1
        %s824 = smul.addr %s823, 8
        %s825 = scalar_lea.vmem [#allocation20], %s824
        %p826 = pneg %p299
        %p827 = pneg %p296
        %s828 = sand.u32 %s49, 1
        %s829 = scalar_lea.sflag [#allocation21], %s828
        %s830 = sand.u32 %s312, 1
        %s831 = smul.addr %s830, 8
        %s832 = scalar_lea.vmem [#allocation22], %s831
        %p833 = pneg %p325
        %p834 = pneg %p322
        %s835 = sand.u32 %s49, 1
        %s836 = scalar_lea.sflag [#allocation24], %s835
        %s837 = sand.u32 %s338, 1
        %s838 = smul.addr %s837, 4
        %s839 = scalar_lea.vmem [#allocation23], %s838
        %p840 = pneg %p351
        %p841 = pneg %p348
        %s842 = sand.u32 %s49, 1
        %s843 = scalar_lea.sflag [#allocation24], %s842
        %s844 = sand.u32 %s364, 1
        %s845 = smul.addr %s844, 8
        %s846 = scalar_lea.vmem [#allocation25], %s845
        %p847 = pneg %p377
        %p848 = pneg %p374
        %p849 = pneg %p398
        %p850 = pneg %p395
        %p852 = scmp.eq.s32.totalorder %s49, 0
        // Predicated region
        $region125: #{conv_tasnet_forward.6} parent=71 // pred_check
          %p853 = pneg %p852
        $region126: #{conv_tasnet_forward.6} parent=71 // pred_check_branch
          %855 = sbr.rel (%p853) target = $region128
        $region127: #{conv_tasnet_forward.6} parent=71 // pred_region
          %v856 = vld [vmem:[#allocation5] sm:$0xff]
          %vm857 = vcmask 261120
          %858 = vst.msk [vmem:[#allocation26] sm:$0xff] %vm857, %v856
          %859 = vst [vmem:[#allocation2] sm:$0xff] 0.0
          %860 = vst [vmem:[#allocation2 + $0x8] sm:$0xff] 0.0
          %861 = vst.msk [vmem:[#allocation2 + $0x10] sm:$0xff] %vm857, 0.0
        $region128: #{conv_tasnet_forward.6} parent=71 // pred_fallthru
          _
        %v862 = vld [vmem:[#allocation26] sm:$0xff]
        %s863 = sld [smem:[#allocation4 + %s49]]
        %v864 = vld [vmem:[%s659] sm:$0xf]
        %v865 = vpack.c.bf16 %v862, %v862
        %v866 = vld [vmem:[%s668] sm:$0xff]
        %868 = vset.pattern.permute.xlu0 0
        %869 = vperm.xlu0 %868, %v866
        %v870 = vpop.permute.xlu0 %869
        %vm872 = vcmask 64512
        %v874 = vsel %vm872, %v864, 0
        %vm876 = vcmask 1043456
        %v878 = vsel %vm876, %v865, 0
        %880 = vmatprep.subr.bf16.mxu0 0
        %881 = vmatpush1.bf16.msra.mxu0 %v878
        %882 = vmatprep.subr.bf16.mxu0 0
        %883 = vmatpush1.bf16.msra.mxu0 0
        %884 = vmatprep.subr.bf16.mxu0 0
        %885 = vmatpush1.bf16.msra.mxu0 0
        %886 = vmatprep.subr.bf16.mxu0 0
        %887 = vmatpush1.bf16.msra.mxu0 0
        %888 = vmatprep.subr.bf16.mxu0 0
        %889 = vmatpush1.bf16.msra.mxu0 0
        %890 = vmatprep.subr.bf16.mxu0 0
        %891 = vmatpush1.bf16.msra.mxu0 0
        %892 = vmatprep.subr.bf16.mxu0 0
        %893 = vmatpush1.bf16.msra.mxu0 0
        %894 = vmatprep.subr.bf16.mxu0 0
        %895 = vmatpush1.bf16.msra.mxu0 0
        %896 = vmatprep.subr.bf16.mxu0 0
        %897 = vmatpush1.bf16.msra.mxu0 0
        %898 = vmatprep.subr.bf16.mxu0 0
        %899 = vmatpush1.bf16.msra.mxu0 0
        %900 = vmatprep.subr.bf16.mxu0 0
        %901 = vmatpush1.bf16.msra.mxu0 0
        %902 = vmatprep.subr.bf16.mxu0 0
        %903 = vmatpush1.bf16.msra.mxu0 0
        %904 = vmatprep.subr.bf16.mxu0 0
        %905 = vmatpush1.bf16.msra.mxu0 0
        %906 = vmatprep.subr.bf16.mxu0 0
        %907 = vmatpush1.bf16.msra.mxu0 0
        %908 = vmatprep.subr.bf16.mxu0 0
        %909 = vmatpush1.bf16.msra.mxu0 0
        %910 = vmatprep.subr.bf16.mxu0 0
        %911 = vmatpush1.bf16.msra.mxu0 0
        %912 = vmatprep.mubr.bf16.mxu0 0
        %913 = vmatmul.mubr.bf16.gmra.mrb[0].mxu0 %v874
        %v914 = vpop.f32.mrb[0].mxu0
        %v915 = vadd.f32 %v870, %v914
        %v916 = vpop.f32.mrb[0].mxu0
        %v917 = vpop.f32.mrb[0].mxu0
        %v918 = vpop.f32.mrb[0].mxu0
        %919 = vdwg.mxu0
        %v920 = vld [vmem:[%s677] sm:$0xff]
        %vm921 = vcmp.ge.f32.partialorder %v915, 0.0
        %923 = vset.pattern.permute.xlu0 0
        %924 = vperm.xlu0 %923, %v920
        %v925 = vpop.permute.xlu0 %924
        %v927 = vmul.f32 %v925, %v915
        %v928 = vsel %vm921, %v915, %v927
        %vm929 = vcmask 261120
        %v930 = vsel %vm929, %v928, 0.0
        %931 = vadd.xlane.f32.xlu0 %v930
        %v932 = vpop.xlane.xlu0 %931
        %v933 = vrot.slane %v932, 4
        %v934 = vadd.f32 %v932, %v933
        %v935 = vrot.slane %v934, 2
        %v936 = vadd.f32 %v934, %v935
        %v937 = vrot.slane %v936, 1
        %v938 = vadd.f32 %v936, %v937
        %s939 = vtos %v938
        %v940 = vstv %s939
        %v941 = vmul.f32 %v928, %v928
        %v942 = vsel %vm929, %v941, 0.0
        %943 = vadd.xlane.f32.xlu0 %v942
        %v944 = vpop.xlane.xlu0 %943
        %v945 = vrot.slane %v944, 4
        %v946 = vadd.f32 %v944, %v945
        %v947 = vrot.slane %v946, 2
        %v948 = vadd.f32 %v946, %v947
        %v949 = vrot.slane %v948, 1
        %v950 = vadd.f32 %v948, %v949
        %s951 = vtos %v950
        %v952 = vstv %s951
        %v953 = vrcp.pop 256.0
        %v954 = vmul.f32 %v940, %v953
        %v955 = vmul.f32 %v952, %v953
        %v956 = vmul.f32 %v954, %v954
        %v957 = vsub.f32 %v955, %v956
        %v958 = vmax.f32 %v957, 0.0
        %v959 = vadd.f32 %v958, 1e-05
        %v960 = vrsqrt.pop %v959
        %v961 = vld [vmem:[%s686] sm:$0xff]
        %v962 = vsub.f32 %v928, %v954
        %964 = vset.pattern.permute.xlu0 0
        %965 = vperm.xlu0 %964, %v961
        %v966 = vpop.permute.xlu0 %965
        %v968 = vmul.f32 %v966, %v962
        %v969 = vmul.f32 %v968, %v960
        %v970 = vld [vmem:[%s695] sm:$0xff]
        %972 = vset.pattern.permute.xlu0 0
        %973 = vperm.xlu0 %972, %v970
        %v974 = vpop.permute.xlu0 %973
        %v976 = vadd.f32 %v969, %v974
        %977 = vst.msk [vmem:[#allocation2 + $0x8] sm:$0xff] %vm929, %v976
        %v978 = vld [vmem:[#allocation2] sm:$0xff]
        %v979 = vld [vmem:[#allocation2 + $0x8] sm:$0xff]
        %v980 = vld [vmem:[%s704] sm:$0xff]
        %v981 = vld [vmem:[%s713] sm:$0xff]
        %983 = vset.pattern.permute.xlu0 0
        %984 = vperm.xlu0 %983, %v980
        %v985 = vpop.permute.xlu0 %984
        %v987 = vmul.f32 %v978, %v985
        %v988 = vmul.f32 %v979, %v985
        %990 = vset.pattern.permute.xlu0 0
        %991 = vperm.xlu0 %990, %v981
        %v992 = vpop.permute.xlu0 %991
        %v994 = vadd.f32 %v992, %v987
        %v995 = vadd.f32 %v992, %v988
        %996 = vset.pattern.permute.xlu0 1
        %997 = vperm.xlu0 %996, %v980
        %v998 = vpop.permute.xlu0 %997
        %v1000 = vmul.f32 %v979, %v998
        %1002 = vrot.lane.b32.xlu0 %v1000, 127
        %v1003 = vpop.permute.xlu0 %1002
        %v1005 = vadd.f32 %v994, %v1003
        %v1006 = vadd.f32 %v995, %v1003
        %1007 = vset.pattern.permute.xlu0 2
        %1008 = vperm.xlu0 %1007, %v980
        %v1009 = vpop.permute.xlu0 %1008
        %v1011 = vmul.f32 %v979, %v1009
        %1013 = vrot.lane.b32.xlu0 %v1011, 126
        %v1014 = vpop.permute.xlu0 %1013
        %v1016 = vadd.f32 %v1005, %v1014
        %v1017 = vadd.f32 %v1006, %v1014
        %1018 = vrot.lane.b32.xlu0 %v1000, 126
        %v1019 = vpop.permute.xlu0 %1018
        %v1021 = vadd.f32 %v994, %v1019
        %v1022 = vadd.f32 %v995, %v1019
        %1023 = vrot.lane.b32.xlu0 %v1011, 124
        %v1024 = vpop.permute.xlu0 %1023
        %v1026 = vadd.f32 %v1021, %v1024
        %v1027 = vadd.f32 %v1022, %v1024
        %p1028 = scmp.eq.s32.totalorder %s863, 2
        %s1029 = scalar_select %p1028, 1, 0
        %s1030 = scvt.s32.f32 %s1029
        %v1031 = vstv %s1030
        %v1032 = vmul.f32 %v1031, %v1026
        %v1033 = vmul.f32 %v1031, %v1027
        %s1034 = ssub.f32 1.0, %s1030
        %v1035 = vstv %s1034
        %v1036 = vmul.f32 %v1035, %v1016
        %v1037 = vmul.f32 %v1035, %v1017
        %1040 = vrot.lane.b32.xlu0 %v1036, 127
        %v1041 = vpop.permute.xlu0 %1040
        %1042 = vrot.lane.b32.xlu0 %v1037, 127
        %v1043 = vpop.permute.xlu0 %1042
        %vm1044 = vcmask 1039360
        %v1045 = vsel %vm1044, %v1041, %v1043
        %v1048 = vadd.f32 %v1032, %v1045
        %v1049 = vadd.f32 %v1033, %v1043
        %v1050 = vld [vmem:[%s722] sm:$0xff]
        %vm1051 = vcmp.ge.f32.partialorder %v1048, 0.0
        %vm1052 = vcmp.ge.f32.partialorder %v1049, 0.0
        %1054 = vset.pattern.permute.xlu0 0
        %1055 = vperm.xlu0 %1054, %v1050
        %v1056 = vpop.permute.xlu0 %1055
        %v1058 = vmul.f32 %v1056, %v1048
        %v1059 = vmul.f32 %v1056, %v1049
        %v1060 = vsel %vm1051, %v1048, %v1058
        %v1061 = vsel %vm1052, %v1049, %v1059
        %1064 = vrot.lane.b32.xlu0 %v1060, 2
        %v1065 = vpop.permute.xlu0 %1064
        %1066 = vrot.lane.b32.xlu0 %v1061, 2
        %v1067 = vpop.permute.xlu0 %1066
        %vm1068 = vcmask 15360
        %v1069 = vsel %vm1068, %v1065, %v1067
        %v1071 = vsel %vm929, %v1069, 0.0
        %1072 = vadd.xlane.f32.xlu0 %v1071
        %v1073 = vpop.xlane.xlu0 %1072
        %v1074 = vrot.slane %v1073, 4
        %v1075 = vadd.f32 %v1073, %v1074
        %v1076 = vrot.slane %v1075, 2
        %v1077 = vadd.f32 %v1075, %v1076
        %v1078 = vrot.slane %v1077, 1
        %v1079 = vadd.f32 %v1077, %v1078
        %s1080 = vtos %v1079
        %v1081 = vstv %s1080
        %v1082 = vmul.f32 %v1060, %v1060
        %v1083 = vmul.f32 %v1061, %v1061
        %1086 = vrot.lane.b32.xlu0 %v1082, 2
        %v1087 = vpop.permute.xlu0 %1086
        %1088 = vrot.lane.b32.xlu0 %v1083, 2
        %v1089 = vpop.permute.xlu0 %1088
        %v1090 = vsel %vm1068, %v1087, %v1089
        %v1092 = vsel %vm929, %v1090, 0.0
        %1093 = vadd.xlane.f32.xlu0 %v1092
        %v1094 = vpop.xlane.xlu0 %1093
        %v1095 = vrot.slane %v1094, 4
        %v1096 = vadd.f32 %v1094, %v1095
        %v1097 = vrot.slane %v1096, 2
        %v1098 = vadd.f32 %v1096, %v1097
        %v1099 = vrot.slane %v1098, 1
        %v1100 = vadd.f32 %v1098, %v1099
        %s1101 = vtos %v1100
        %v1102 = vstv %s1101
        %v1103 = vmul.f32 %v1081, %v953
        %v1104 = vmul.f32 %v1102, %v953
        %v1105 = vmul.f32 %v1103, %v1103
        %v1106 = vsub.f32 %v1104, %v1105
        %v1107 = vmax.f32 %v1106, 0.0
        %v1108 = vadd.f32 %v1107, 1e-05
        %v1109 = vrsqrt.pop %v1108
        %v1110 = vld [vmem:[%s731] sm:$0xff]
        %v1111 = vsub.f32 %v1060, %v1103
        %v1112 = vsub.f32 %v1061, %v1103
        %1114 = vset.pattern.permute.xlu0 0
        %1115 = vperm.xlu0 %1114, %v1110
        %v1116 = vpop.permute.xlu0 %1115
        %v1118 = vmul.f32 %v1116, %v1111
        %v1119 = vmul.f32 %v1116, %v1112
        %v1120 = vmul.f32 %v1118, %v1109
        %v1121 = vmul.f32 %v1119, %v1109
        %v1122 = vld [vmem:[%s740] sm:$0xff]
        %1124 = vset.pattern.permute.xlu0 0
        %1125 = vperm.xlu0 %1124, %v1122
        %v1126 = vpop.permute.xlu0 %1125
        %v1128 = vadd.f32 %v1120, %v1126
        %v1129 = vadd.f32 %v1121, %v1126
        %v1130 = vld [vmem:[%s749] sm:$0xf]
        %v1131 = vpack.c.bf16 %v1128, %v1128
        %v1132 = vpack.c.bf16 %v1129, %v1129
        %v1133 = vld [vmem:[%s758] sm:$0xff]
        %1135 = vset.pattern.permute.xlu0 0
        %1136 = vperm.xlu0 %1135, %v1133
        %v1137 = vpop.permute.xlu0 %1136
        %1141 = vrot.lane.b32.xlu0 %v1131, 2
        %v1142 = vpop.permute.xlu0 %1141
        %1143 = vrot.lane.b32.xlu0 %v1132, 2
        %v1144 = vpop.permute.xlu0 %1143
        %vm1145 = vcmask 15360
        %v1146 = vsel %vm1145, %v1142, %v1144
        %v1148 = vsel %vm872, %v1130, 0
        %v1151 = vsel %vm876, %v1146, 0
        %1153 = vmatprep.subr.bf16.mxu0 0
        %1154 = vmatpush1.bf16.msra.mxu0 %v1151
        %1155 = vmatprep.subr.bf16.mxu0 0
        %1156 = vmatpush1.bf16.msra.mxu0 0
        %1157 = vmatprep.subr.bf16.mxu0 0
        %1158 = vmatpush1.bf16.msra.mxu0 0
        %1159 = vmatprep.subr.bf16.mxu0 0
        %1160 = vmatpush1.bf16.msra.mxu0 0
        %1161 = vmatprep.subr.bf16.mxu0 0
        %1162 = vmatpush1.bf16.msra.mxu0 0
        %1163 = vmatprep.subr.bf16.mxu0 0
        %1164 = vmatpush1.bf16.msra.mxu0 0
        %1165 = vmatprep.subr.bf16.mxu0 0
        %1166 = vmatpush1.bf16.msra.mxu0 0
        %1167 = vmatprep.subr.bf16.mxu0 0
        %1168 = vmatpush1.bf16.msra.mxu0 0
        %1169 = vmatprep.subr.bf16.mxu0 0
        %1170 = vmatpush1.bf16.msra.mxu0 0
        %1171 = vmatprep.subr.bf16.mxu0 0
        %1172 = vmatpush1.bf16.msra.mxu0 0
        %1173 = vmatprep.subr.bf16.mxu0 0
        %1174 = vmatpush1.bf16.msra.mxu0 0
        %1175 = vmatprep.subr.bf16.mxu0 0
        %1176 = vmatpush1.bf16.msra.mxu0 0
        %1177 = vmatprep.subr.bf16.mxu0 0
        %1178 = vmatpush1.bf16.msra.mxu0 0
        %1179 = vmatprep.subr.bf16.mxu0 0
        %1180 = vmatpush1.bf16.msra.mxu0 0
        %1181 = vmatprep.subr.bf16.mxu0 0
        %1182 = vmatpush1.bf16.msra.mxu0 0
        %1183 = vmatprep.subr.bf16.mxu0 0
        %1184 = vmatpush1.bf16.msra.mxu0 0
        %1185 = vmatprep.mubr.bf16.mxu0 0
        %1186 = vmatmul.mubr.bf16.gmra.mrb[0].mxu0 %v1148
        %v1187 = vpop.f32.mrb[0].mxu0
        %v1188 = vadd.f32 %v1137, %v1187
        %v1189 = vpop.f32.mrb[0].mxu0
        %v1190 = vpop.f32.mrb[0].mxu0
        %v1191 = vpop.f32.mrb[0].mxu0
        %1192 = vdwg.mxu0
        %v1193 = vadd.f32 %v862, %v1188
        %1194 = vst.msk [vmem:[#allocation26] sm:$0xff] %vm929, %v1193
        // Predicated region
        $region129: #{conv_tasnet_forward.6} parent=71 // pred_check
          %p1195 = pneg %p395
        $region130: #{conv_tasnet_forward.6} parent=71 // pred_check_branch
          %1197 = sbr.rel (%p1195) target = $region132
        $region131: #{conv_tasnet_forward.6} parent=71 // pred_region
          %s1199 = ssub.s32 128, 128
          %1200 = vsyncadd [#allocation7], %s1199
          %s1202 = sshll.u32 [#allocation26], 4
          %s1203 = int_to_ptr.vmem [resolvable:$true] %s1202
          %1205 = dma.vmem_to_hbm [thread:$0]  %s1203, 128, %s14, [#allocation7]
        $region132: #{conv_tasnet_forward.6} parent=71 // pred_fallthru
          _
        // Predicated region
        $region133: #{conv_tasnet_forward.6} parent=71 // pred_check
          %p1206 = pneg %p395
        $region134: #{conv_tasnet_forward.6} parent=71 // pred_check_branch
          %1208 = sbr.rel (%p1206) target = $region136
        $region135: #{conv_tasnet_forward.6} parent=71 // pred_region
          %1209 = dma.done [#allocation7], 128
        $region136: #{conv_tasnet_forward.6} parent=71 // pred_fallthru
          _
      $region72: #{conv_tasnet_forward.6} parent=5 // pred_fallthru
        _
      %p1210 = scmp.le.s32.totalorder 2, %s44
      // Predicated region
      $region137: #{conv_tasnet_forward.6} parent=5 // pred_check
        %p1211 = pneg %p1210
      $region138: #{conv_tasnet_forward.6} parent=5 // pred_check_branch
        %1213 = sbr.rel (%p1211) target = $region140
      $region139: #{conv_tasnet_forward.6} parent=5 // pred_region
        %s1214 = ssub.s32 %s44, 2
      $region140: #{conv_tasnet_forward.6} parent=5 // pred_fallthru
        _
    $region6: #{conv_tasnet_forward.6} parent=1 // loop_footer
      %s48 = sadd.s32 1, %s44
    $region7: #{conv_tasnet_forward.6} parent=1 // loop_footer_branch
      %43 = sbr.rel target = $region3
    $region8: #{conv_tasnet_forward.6} parent=1 // loop_exit
      _
    %1215 = vsyncpa [#allocation6], 1
    %s1216 = scalar_lea.sflag [#allocation6], 1
    %1217 = vsyncpa %s1216, 1
    %1218 = vsyncpa [#allocation9], 1
    %s1219 = scalar_lea.sflag [#allocation9], 1
    %1220 = vsyncpa %s1219, 1
    %1221 = vsyncpa [#allocation12], 1
    %s1222 = scalar_lea.sflag [#allocation12], 1
    %1223 = vsyncpa %s1222, 1
    %1224 = vsyncpa [#allocation15], 1
    %s1225 = scalar_lea.sflag [#allocation15], 1
    %1226 = vsyncpa %s1225, 1
    %1227 = vsyncpa [#allocation18], 1
    %s1228 = scalar_lea.sflag [#allocation18], 1
    %1229 = vsyncpa %s1228, 1
    %1230 = vsyncpa [#allocation21], 1
    %s1231 = scalar_lea.sflag [#allocation21], 1
    %1232 = vsyncpa %s1231, 1
    %1233 = vsyncpa [#allocation24], 1
    %s1234 = scalar_lea.sflag [#allocation24], 1
    %1235 = vsyncpa %s1234, 1
    %1236 = vsyncpa [#allocation7], 1
    %s1237 = scalar_lea.sflag [#allocation7], 1
    %1238 = vsyncpa %s1237, 1

// kernel: conv_tasnet_forward.4
$region0: #{conv_tasnet_forward.4}
  #allocation0 [shape = 'u32[]', space=smem, size = 0x4, offset = 0x4, fixed_abs, tag = 'smem constant byte address 0x4 - core index']
  #allocation1 [shape = 'u32[144,128]{1,0:T(1,128)}', space=vmem, size = 0x12000, scoped, tag = 'internal scratch']
  #allocation2 [shape = 'f32[8,288]{1,0:T(8,128)}', space=vmem, size = 0x3000, scoped, tag = 'scratch operand']
  %s0 = inlined_call_operand.vmem [shape: f32[16,32], index: 0, kind: input, shape index: {}]
  %s1 = inlined_call_operand.vmem [shape: bf16[8,16], index: 1, kind: input, shape index: {}]
  %s2 = inlined_call_operand.vmem [shape: f32[8,1], index: 2, kind: input, shape index: {}]
  %s3 = inlined_call_operand.vmem [shape: bf16[3,8,8], index: 3, kind: input, shape index: {}]
  %s4 = inlined_call_operand.vmem [shape: f32[8,1], index: 4, kind: input, shape index: {}]
  %s5 = inlined_call_operand.vmem [shape: bf16[3,8,8], index: 5, kind: input, shape index: {}]
  %s6 = inlined_call_operand.vmem [shape: f32[8,1], index: 6, kind: input, shape index: {}]
  %s7 = inlined_call_operand.vmem [shape: bf16[3,8,8], index: 7, kind: input, shape index: {}]
  %s8 = inlined_call_operand.vmem [shape: f32[8,1], index: 8, kind: input, shape index: {}]
  %s9 = inlined_call_operand.vmem [shape: f32[3], index: 9, kind: input, shape index: {}]
  %s10 = inlined_call_operand.vmem [shape: f32[8,1], index: 10, kind: input, shape index: {}]
  %s11 = inlined_call_operand.vmem [shape: f32[8,1], index: 11, kind: input, shape index: {}]
  %s12 = inlined_call_operand.vmem [shape: bf16[4,8], index: 12, kind: input, shape index: {}]
  %s13 = inlined_call_operand.vmem [shape: f32[4,1], index: 13, kind: input, shape index: {}]
  %s14 = inlined_call_operand.hbm [shape: f32[8,32], index: 14, kind: output, shape index: {0}]
  %s15 = inlined_call_operand.vmem [shape: f32[4,32], index: 15, kind: output, shape index: {1}]
  %16 = xla_tuple %s14, %s15
  %s17 = sld [smem:[#allocation0]]
  $region78: #{conv_tasnet_forward.4} parent=0
    _
  %s19 = ssub.s32 1, %s17
  %s20 = scalar_select 0, %s19, %s17
  $region1: #{conv_tasnet_forward.4} parent=0
    #allocation3 [shape = 'u8[512]{0}', space=smem, size = 0x200, scoped, tag = 'input window, operand 9, single buffered']
    #allocation4 [shape = 's32[1]{0}', space=sflag, size = 0x4, scoped, tag = 'scoped memory for conv_tasnet_forward.4']
    #allocation5 [shape = 's32[1]{0}', space=sflag, size = 0x4, scoped, tag = 'scoped memory for conv_tasnet_forward.4']
    #allocation6 [shape = 'u8[4096]{0}', space=vmem, size = 0x1000, scoped, tag = 'output window, operand 0, single buffered']
    %21 = vsyncpa [#allocation5], 0
    %22 = vsyncpa [#allocation4], 0
    // Predicated region
    $region2: #{conv_tasnet_forward.4} parent=1 // pred_check
      _
    $region3: #{conv_tasnet_forward.4} parent=1 // pred_check_branch
      %24 = sbr.rel (0) target = $region5
    $region4: #{conv_tasnet_forward.4} parent=1 // pred_region
      _
    $region5: #{conv_tasnet_forward.4} parent=1 // pred_fallthru
      _
    // Predicated region
    $region6: #{conv_tasnet_forward.4} parent=1 // pred_check
      _
    $region7: #{conv_tasnet_forward.4} parent=1 // pred_check_branch
      %26 = sbr.rel (0) target = $region9
    $region8: #{conv_tasnet_forward.4} parent=1 // pred_region
      _
    $region9: #{conv_tasnet_forward.4} parent=1 // pred_fallthru
      _
    // Predicated region
    $region10: #{conv_tasnet_forward.4} parent=1 // pred_check
      _
    $region11: #{conv_tasnet_forward.4} parent=1 // pred_check_branch
      %28 = sbr.rel (0) target = $region13
    $region12: #{conv_tasnet_forward.4} parent=1 // pred_region
      _
    $region13: #{conv_tasnet_forward.4} parent=1 // pred_fallthru
      _
    // Predicated region
    $region14: #{conv_tasnet_forward.4} parent=1 // pred_check
      _
    $region15: #{conv_tasnet_forward.4} parent=1 // pred_check_branch
      %30 = sbr.rel (0) target = $region17
    $region16: #{conv_tasnet_forward.4} parent=1 // pred_region
      _
    $region17: #{conv_tasnet_forward.4} parent=1 // pred_fallthru
      _
    // Predicated region
    $region18: #{conv_tasnet_forward.4} parent=1 // pred_check
      _
    $region19: #{conv_tasnet_forward.4} parent=1 // pred_check_branch
      %32 = sbr.rel (0) target = $region21
    $region20: #{conv_tasnet_forward.4} parent=1 // pred_region
      _
    $region21: #{conv_tasnet_forward.4} parent=1 // pred_fallthru
      _
    // Predicated region
    $region22: #{conv_tasnet_forward.4} parent=1 // pred_check
      _
    $region23: #{conv_tasnet_forward.4} parent=1 // pred_check_branch
      %34 = sbr.rel (0) target = $region25
    $region24: #{conv_tasnet_forward.4} parent=1 // pred_region
      _
    $region25: #{conv_tasnet_forward.4} parent=1 // pred_fallthru
      _
    // Predicated region
    $region26: #{conv_tasnet_forward.4} parent=1 // pred_check
      _
    $region27: #{conv_tasnet_forward.4} parent=1 // pred_check_branch
      %36 = sbr.rel (0) target = $region29
    $region28: #{conv_tasnet_forward.4} parent=1 // pred_region
      _
    $region29: #{conv_tasnet_forward.4} parent=1 // pred_fallthru
      _
    // Predicated region
    $region30: #{conv_tasnet_forward.4} parent=1 // pred_check
      _
    $region31: #{conv_tasnet_forward.4} parent=1 // pred_check_branch
      %38 = sbr.rel (0) target = $region33
    $region32: #{conv_tasnet_forward.4} parent=1 // pred_region
      _
    $region33: #{conv_tasnet_forward.4} parent=1 // pred_fallthru
      _
    // Predicated region
    $region34: #{conv_tasnet_forward.4} parent=1 // pred_check
      _
    $region35: #{conv_tasnet_forward.4} parent=1 // pred_check_branch
      %40 = sbr.rel (0) target = $region37
    $region36: #{conv_tasnet_forward.4} parent=1 // pred_region
      _
    $region37: #{conv_tasnet_forward.4} parent=1 // pred_fallthru
      _
    // Predicated region
    $region38: #{conv_tasnet_forward.4} parent=1 // pred_check
      _
    $region39: #{conv_tasnet_forward.4} parent=1 // pred_check_branch
      %42 = sbr.rel (0) target = $region41
    $region40: #{conv_tasnet_forward.4} parent=1 // pred_region
      %s44 = ssub.s32 16, 16
      %45 = vsyncadd [#allocation5], %s44
      %s47 = sshll.u32 %s9, 4
      %s48 = int_to_ptr.vmem [resolvable:$true] %s47
      %50 = dma.vmem_to_smem %s48, 16, [#allocation3], [#allocation5]
    $region41: #{conv_tasnet_forward.4} parent=1 // pred_fallthru
      _
    // Predicated region
    $region42: #{conv_tasnet_forward.4} parent=1 // pred_check
      _
    $region43: #{conv_tasnet_forward.4} parent=1 // pred_check_branch
      %52 = sbr.rel (0) target = $region45
    $region44: #{conv_tasnet_forward.4} parent=1 // pred_region
      _
    $region45: #{conv_tasnet_forward.4} parent=1 // pred_fallthru
      _
    // Predicated region
    $region46: #{conv_tasnet_forward.4} parent=1 // pred_check
      _
    $region47: #{conv_tasnet_forward.4} parent=1 // pred_check_branch
      %54 = sbr.rel (0) target = $region49
    $region48: #{conv_tasnet_forward.4} parent=1 // pred_region
      _
    $region49: #{conv_tasnet_forward.4} parent=1 // pred_fallthru
      _
    // Predicated region
    $region50: #{conv_tasnet_forward.4} parent=1 // pred_check
      _
    $region51: #{conv_tasnet_forward.4} parent=1 // pred_check_branch
      %56 = sbr.rel (0) target = $region53
    $region52: #{conv_tasnet_forward.4} parent=1 // pred_region
      _
    $region53: #{conv_tasnet_forward.4} parent=1 // pred_fallthru
      _
    // Predicated region
    $region54: #{conv_tasnet_forward.4} parent=1 // pred_check
      _
    $region55: #{conv_tasnet_forward.4} parent=1 // pred_check_branch
      %58 = sbr.rel (0) target = $region57
    $region56: #{conv_tasnet_forward.4} parent=1 // pred_region
      _
    $region57: #{conv_tasnet_forward.4} parent=1 // pred_fallthru
      _
    // Predicated region
    $region58: #{conv_tasnet_forward.4} parent=1 // pred_check
      _
    $region59: #{conv_tasnet_forward.4} parent=1 // pred_check_branch
      %60 = sbr.rel (0) target = $region61
    $region60: #{conv_tasnet_forward.4} parent=1 // pred_region
      %61 = dma.done [#allocation5], 16
    $region61: #{conv_tasnet_forward.4} parent=1 // pred_fallthru
      _
    %62 = sfence
    %64 = vst [vmem:[#allocation2] sm:$0xff] 0.0
    %65 = vst [vmem:[#allocation2 + $0x8] sm:$0xff] 0.0
    %vm66 = vcmask 261120
    %67 = vst.msk [vmem:[#allocation2 + $0x10] sm:$0xff] %vm66, 0.0
    %v68 = vld [vmem:[%s1] sm:$0xf]
    %v69 = vld [vmem:[%s0] sm:$0xff]
    %v70 = vld [vmem:[%s0 + $0x8] sm:$0xff]
    %v71 = vpack.c.bf16 %v70, %v69
    %v72 = vld [vmem:[%s2] sm:$0xff]
    %74 = vset.pattern.permute.xlu0 0
    %75 = vperm.xlu0 %74, %v72
    %v76 = vpop.permute.xlu0 %75
    %vm78 = vcmask 130048
    %v80 = vsel %vm78, %v68, 0
    %82 = vmatprep.subr.bf16.mxu0 0
    %83 = vmatpush1.bf16.msra.mxu0 %v71
    %84 = vmatprep.subr.bf16.mxu0 0
    %85 = vmatpush1.bf16.msra.mxu0 0
    %86 = vmatprep.subr.bf16.mxu0 0
    %87 = vmatpush1.bf16.msra.mxu0 0
    %88 = vmatprep.subr.bf16.mxu0 0
    %89 = vmatpush1.bf16.msra.mxu0 0
    %90 = vmatprep.subr.bf16.mxu0 0
    %91 = vmatpush1.bf16.msra.mxu0 0
    %92 = vmatprep.subr.bf16.mxu0 0
    %93 = vmatpush1.bf16.msra.mxu0 0
    %94 = vmatprep.subr.bf16.mxu0 0
    %95 = vmatpush1.bf16.msra.mxu0 0
    %96 = vmatprep.subr.bf16.mxu0 0
    %97 = vmatpush1.bf16.msra.mxu0 0
    %98 = vmatprep.subr.bf16.mxu0 0
    %99 = vmatpush1.bf16.msra.mxu0 0
    %100 = vmatprep.subr.bf16.mxu0 0
    %101 = vmatpush1.bf16.msra.mxu0 0
    %102 = vmatprep.subr.bf16.mxu0 0
    %103 = vmatpush1.bf16.msra.mxu0 0
    %104 = vmatprep.subr.bf16.mxu0 0
    %105 = vmatpush1.bf16.msra.mxu0 0
    %106 = vmatprep.subr.bf16.mxu0 0
    %107 = vmatpush1.bf16.msra.mxu0 0
    %108 = vmatprep.subr.bf16.mxu0 0
    %109 = vmatpush1.bf16.msra.mxu0 0
    %110 = vmatprep.subr.bf16.mxu0 0
    %111 = vmatpush1.bf16.msra.mxu0 0
    %112 = vmatprep.subr.bf16.mxu0 0
    %113 = vmatpush1.bf16.msra.mxu0 0
    %114 = vmatprep.mubr.bf16.mxu0 0
    %115 = vmatmul.mubr.bf16.gmra.mrb[0].mxu0 %v80
    %v116 = vpop.f32.mrb[0].mxu0
    %v117 = vadd.f32 %v76, %v116
    %v118 = vpop.f32.mrb[0].mxu0
    %v119 = vpop.f32.mrb[0].mxu0
    %v120 = vpop.f32.mrb[0].mxu0
    %121 = vdwg.mxu0
    %122 = vst.msk [vmem:[#allocation2 + $0x8] sm:$0xff] %vm66, %v117
    %v123 = vld [vmem:[#allocation2] sm:$0xff]
    %v124 = vld [vmem:[#allocation2 + $0x8] sm:$0xff]
    %v125 = vpack.c.bf16 %v123, %v123
    %v126 = vpack.c.bf16 %v124, %v124
    %v127 = vld [vmem:[%s4] sm:$0xff]
    %v128 = vld [vmem:[%s3] sm:$0xf]
    %131 = vrot.lane.b32.xlu0 %v125, 1
    %v132 = vpop.permute.xlu0 %131
    %133 = vrot.lane.b32.xlu0 %v126, 1
    %v134 = vpop.permute.xlu0 %133
    %vm135 = vcmask 7168
    %v136 = vsel %vm135, %v132, %v134
    %vm137 = vcmask 64512
    %v139 = vsel %vm137, %v128, 0
    %vm141 = vcmask 1043456
    %v143 = vsel %vm141, %v136, 0
    %145 = vmatprep.subr.bf16.mxu0 0
    %146 = vmatpush1.bf16.msra.mxu0 %v143
    %147 = vmatprep.subr.bf16.mxu0 0
    %148 = vmatpush1.bf16.msra.mxu0 0
    %149 = vmatprep.subr.bf16.mxu0 0
    %150 = vmatpush1.bf16.msra.mxu0 0
    %151 = vmatprep.subr.bf16.mxu0 0
    %152 = vmatpush1.bf16.msra.mxu0 0
    %153 = vmatprep.subr.bf16.mxu0 0
    %154 = vmatpush1.bf16.msra.mxu0 0
    %155 = vmatprep.subr.bf16.mxu0 0
    %156 = vmatpush1.bf16.msra.mxu0 0
    %157 = vmatprep.subr.bf16.mxu0 0
    %158 = vmatpush1.bf16.msra.mxu0 0
    %159 = vmatprep.subr.bf16.mxu0 0
    %160 = vmatpush1.bf16.msra.mxu0 0
    %161 = vmatprep.subr.bf16.mxu0 0
    %162 = vmatpush1.bf16.msra.mxu0 0
    %163 = vmatprep.subr.bf16.mxu0 0
    %164 = vmatpush1.bf16.msra.mxu0 0
    %165 = vmatprep.subr.bf16.mxu0 0
    %166 = vmatpush1.bf16.msra.mxu0 0
    %167 = vmatprep.subr.bf16.mxu0 0
    %168 = vmatpush1.bf16.msra.mxu0 0
    %169 = vmatprep.subr.bf16.mxu0 0
    %170 = vmatpush1.bf16.msra.mxu0 0
    %171 = vmatprep.subr.bf16.mxu0 0
    %172 = vmatpush1.bf16.msra.mxu0 0
    %173 = vmatprep.subr.bf16.mxu0 0
    %174 = vmatpush1.bf16.msra.mxu0 0
    %175 = vmatprep.subr.bf16.mxu0 0
    %176 = vmatpush1.bf16.msra.mxu0 0
    %177 = vmatprep.mubr.bf16.mxu0 0
    %178 = vmatmul.mubr.bf16.gmra.mrb[0].mxu0 %v139
    %v179 = vpop.f32.mrb[0].mxu0
    %v180 = vadd.f32 0.0, %v179
    %v181 = vpop.f32.mrb[0].mxu0
    %v182 = vpop.f32.mrb[0].mxu0
    %v183 = vpop.f32.mrb[0].mxu0
    %184 = vdwg.mxu0
    %186 = vset.pattern.permute.xlu0 0
    %187 = vperm.xlu0 %186, %v127
    %v188 = vpop.permute.xlu0 %187
    %v190 = vadd.f32 %v188, %v180
    %s191 = scalar_lea.vmem %s3, 4
    %v192 = vld [vmem:[%s191] sm:$0xf]
    %v194 = vsel %vm137, %v192, 0
    %v197 = vsel %vm141, %v126, 0
    %199 = vmatprep.subr.bf16.mxu0 0
    %200 = vmatpush1.bf16.msra.mxu0 %v197
    %201 = vmatprep.subr.bf16.mxu0 0
    %202 = vmatpush1.bf16.msra.mxu0 0
    %203 = vmatprep.subr.bf16.mxu0 0
    %204 = vmatpush1.bf16.msra.mxu0 0
    %205 = vmatprep.subr.bf16.mxu0 0
    %206 = vmatpush1.bf16.msra.mxu0 0
    %207 = vmatprep.subr.bf16.mxu0 0
    %208 = vmatpush1.bf16.msra.mxu0 0
    %209 = vmatprep.subr.bf16.mxu0 0
    %210 = vmatpush1.bf16.msra.mxu0 0
    %211 = vmatprep.subr.bf16.mxu0 0
    %212 = vmatpush1.bf16.msra.mxu0 0
    %213 = vmatprep.subr.bf16.mxu0 0
    %214 = vmatpush1.bf16.msra.mxu0 0
    %215 = vmatprep.subr.bf16.mxu0 0
    %216 = vmatpush1.bf16.msra.mxu0 0
    %217 = vmatprep.subr.bf16.mxu0 0
    %218 = vmatpush1.bf16.msra.mxu0 0
    %219 = vmatprep.subr.bf16.mxu0 0
    %220 = vmatpush1.bf16.msra.mxu0 0
    %221 = vmatprep.subr.bf16.mxu0 0
    %222 = vmatpush1.bf16.msra.mxu0 0
    %223 = vmatprep.subr.bf16.mxu0 0
    %224 = vmatpush1.bf16.msra.mxu0 0
    %225 = vmatprep.subr.bf16.mxu0 0
    %226 = vmatpush1.bf16.msra.mxu0 0
    %227 = vmatprep.subr.bf16.mxu0 0
    %228 = vmatpush1.bf16.msra.mxu0 0
    %229 = vmatprep.subr.bf16.mxu0 0
    %230 = vmatpush1.bf16.msra.mxu0 0
    %231 = vmatprep.mubr.bf16.mxu0 0
    %232 = vmatmul.mubr.bf16.gmra.mrb[0].mxu0 %v194
    %v233 = vpop.f32.mrb[0].mxu0
    %v234 = vadd.f32 0.0, %v233
    %v235 = vpop.f32.mrb[0].mxu0
    %v236 = vpop.f32.mrb[0].mxu0
    %v237 = vpop.f32.mrb[0].mxu0
    %238 = vdwg.mxu0
    %v239 = vadd.f32 %v190, %v234
    %s240 = scalar_lea.vmem %s3, 8
    %v241 = vld [vmem:[%s240] sm:$0xf]
    %242 = vrot.lane.b32.xlu0 %v126, 127
    %v243 = vpop.permute.xlu0 %242
    %v245 = vsel %vm137, %v241, 0
    %v248 = vsel %vm141, %v243, 0
    %250 = vmatprep.subr.bf16.mxu0 0
    %251 = vmatpush1.bf16.msra.mxu0 %v248
    %252 = vmatprep.subr.bf16.mxu0 0
    %253 = vmatpush1.bf16.msra.mxu0 0
    %254 = vmatprep.subr.bf16.mxu0 0
    %255 = vmatpush1.bf16.msra.mxu0 0
    %256 = vmatprep.subr.bf16.mxu0 0
    %257 = vmatpush1.bf16.msra.mxu0 0
    %258 = vmatprep.subr.bf16.mxu0 0
    %259 = vmatpush1.bf16.msra.mxu0 0
    %260 = vmatprep.subr.bf16.mxu0 0
    %261 = vmatpush1.bf16.msra.mxu0 0
    %262 = vmatprep.subr.bf16.mxu0 0
    %263 = vmatpush1.bf16.msra.mxu0 0
    %264 = vmatprep.subr.bf16.mxu0 0
    %265 = vmatpush1.bf16.msra.mxu0 0
    %266 = vmatprep.subr.bf16.mxu0 0
    %267 = vmatpush1.bf16.msra.mxu0 0
    %268 = vmatprep.subr.bf16.mxu0 0
    %269 = vmatpush1.bf16.msra.mxu0 0
    %270 = vmatprep.subr.bf16.mxu0 0
    %271 = vmatpush1.bf16.msra.mxu0 0
    %272 = vmatprep.subr.bf16.mxu0 0
    %273 = vmatpush1.bf16.msra.mxu0 0
    %274 = vmatprep.subr.bf16.mxu0 0
    %275 = vmatpush1.bf16.msra.mxu0 0
    %276 = vmatprep.subr.bf16.mxu0 0
    %277 = vmatpush1.bf16.msra.mxu0 0
    %278 = vmatprep.subr.bf16.mxu0 0
    %279 = vmatpush1.bf16.msra.mxu0 0
    %280 = vmatprep.subr.bf16.mxu0 0
    %281 = vmatpush1.bf16.msra.mxu0 0
    %282 = vmatprep.mubr.bf16.mxu0 0
    %283 = vmatmul.mubr.bf16.gmra.mrb[0].mxu0 %v245
    %v284 = vpop.f32.mrb[0].mxu0
    %v285 = vadd.f32 0.0, %v284
    %v286 = vpop.f32.mrb[0].mxu0
    %v287 = vpop.f32.mrb[0].mxu0
    %v288 = vpop.f32.mrb[0].mxu0
    %289 = vdwg.mxu0
    %v290 = vadd.f32 %v239, %v285
    %s291 = sld [smem:[#allocation3]]
    %vm292 = vcmp.ge.f32.partialorder %v290, 0.0
    %v293 = vstv %s291
    %v294 = vmul.f32 %v293, %v290
    %v295 = vsel %vm292, %v290, %v294
    %296 = vst.msk [vmem:[#allocation2 + $0x8] sm:$0xff] %vm66, %v295
    %v297 = vld [vmem:[#allocation2] sm:$0xff]
    %v298 = vld [vmem:[#allocation2 + $0x8] sm:$0xff]
    %v299 = vpack.c.bf16 %v297, %v297
    %v300 = vpack.c.bf16 %v298, %v298
    %v301 = vld [vmem:[%s6] sm:$0xff]
    %v302 = vld [vmem:[%s5] sm:$0xf]
    %305 = vrot.lane.b32.xlu0 %v299, 1
    %v306 = vpop.permute.xlu0 %305
    %307 = vrot.lane.b32.xlu0 %v300, 1
    %v308 = vpop.permute.xlu0 %307
    %v309 = vsel %vm135, %v306, %v308
    %v311 = vsel %vm137, %v302, 0
    %v314 = vsel %vm141, %v309, 0
    %316 = vmatprep.subr.bf16.mxu0 0
    %317 = vmatpush1.bf16.msra.mxu0 %v314
    %318 = vmatprep.subr.bf16.mxu0 0
    %319 = vmatpush1.bf16.msra.mxu0 0
    %320 = vmatprep.subr.bf16.mxu0 0
    %321 = vmatpush1.bf16.msra.mxu0 0
    %322 = vmatprep.subr.bf16.mxu0 0
    %323 = vmatpush1.bf16.msra.mxu0 0
    %324 = vmatprep.subr.bf16.mxu0 0
    %325 = vmatpush1.bf16.msra.mxu0 0
    %326 = vmatprep.subr.bf16.mxu0 0
    %327 = vmatpush1.bf16.msra.mxu0 0
    %328 = vmatprep.subr.bf16.mxu0 0
    %329 = vmatpush1.bf16.msra.mxu0 0
    %330 = vmatprep.subr.bf16.mxu0 0
    %331 = vmatpush1.bf16.msra.mxu0 0
    %332 = vmatprep.subr.bf16.mxu0 0
    %333 = vmatpush1.bf16.msra.mxu0 0
    %334 = vmatprep.subr.bf16.mxu0 0
    %335 = vmatpush1.bf16.msra.mxu0 0
    %336 = vmatprep.subr.bf16.mxu0 0
    %337 = vmatpush1.bf16.msra.mxu0 0
    %338 = vmatprep.subr.bf16.mxu0 0
    %339 = vmatpush1.bf16.msra.mxu0 0
    %340 = vmatprep.subr.bf16.mxu0 0
    %341 = vmatpush1.bf16.msra.mxu0 0
    %342 = vmatprep.subr.bf16.mxu0 0
    %343 = vmatpush1.bf16.msra.mxu0 0
    %344 = vmatprep.subr.bf16.mxu0 0
    %345 = vmatpush1.bf16.msra.mxu0 0
    %346 = vmatprep.subr.bf16.mxu0 0
    %347 = vmatpush1.bf16.msra.mxu0 0
    %348 = vmatprep.mubr.bf16.mxu0 0
    %349 = vmatmul.mubr.bf16.gmra.mrb[0].mxu0 %v311
    %v350 = vpop.f32.mrb[0].mxu0
    %v351 = vadd.f32 0.0, %v350
    %v352 = vpop.f32.mrb[0].mxu0
    %v353 = vpop.f32.mrb[0].mxu0
    %v354 = vpop.f32.mrb[0].mxu0
    %355 = vdwg.mxu0
    %357 = vset.pattern.permute.xlu0 0
    %358 = vperm.xlu0 %357, %v301
    %v359 = vpop.permute.xlu0 %358
    %v361 = vadd.f32 %v359, %v351
    %s362 = scalar_lea.vmem %s5, 4
    %v363 = vld [vmem:[%s362] sm:$0xf]
    %v365 = vsel %vm137, %v363, 0
    %v368 = vsel %vm141, %v300, 0
    %370 = vmatprep.subr.bf16.mxu0 0
    %371 = vmatpush1.bf16.msra.mxu0 %v368
    %372 = vmatprep.subr.bf16.mxu0 0
    %373 = vmatpush1.bf16.msra.mxu0 0
    %374 = vmatprep.subr.bf16.mxu0 0
    %375 = vmatpush1.bf16.msra.mxu0 0
    %376 = vmatprep.subr.bf16.mxu0 0
    %377 = vmatpush1.bf16.msra.mxu0 0
    %378 = vmatprep.subr.bf16.mxu0 0
    %379 = vmatpush1.bf16.msra.mxu0 0
    %380 = vmatprep.subr.bf16.mxu0 0
    %381 = vmatpush1.bf16.msra.mxu0 0
    %382 = vmatprep.subr.bf16.mxu0 0
    %383 = vmatpush1.bf16.msra.mxu0 0
    %384 = vmatprep.subr.bf16.mxu0 0
    %385 = vmatpush1.bf16.msra.mxu0 0
    %386 = vmatprep.subr.bf16.mxu0 0
    %387 = vmatpush1.bf16.msra.mxu0 0
    %388 = vmatprep.subr.bf16.mxu0 0
    %389 = vmatpush1.bf16.msra.mxu0 0
    %390 = vmatprep.subr.bf16.mxu0 0
    %391 = vmatpush1.bf16.msra.mxu0 0
    %392 = vmatprep.subr.bf16.mxu0 0
    %393 = vmatpush1.bf16.msra.mxu0 0
    %394 = vmatprep.subr.bf16.mxu0 0
    %395 = vmatpush1.bf16.msra.mxu0 0
    %396 = vmatprep.subr.bf16.mxu0 0
    %397 = vmatpush1.bf16.msra.mxu0 0
    %398 = vmatprep.subr.bf16.mxu0 0
    %399 = vmatpush1.bf16.msra.mxu0 0
    %400 = vmatprep.subr.bf16.mxu0 0
    %401 = vmatpush1.bf16.msra.mxu0 0
    %402 = vmatprep.mubr.bf16.mxu0 0
    %403 = vmatmul.mubr.bf16.gmra.mrb[0].mxu0 %v365
    %v404 = vpop.f32.mrb[0].mxu0
    %v405 = vadd.f32 0.0, %v404
    %v406 = vpop.f32.mrb[0].mxu0
    %v407 = vpop.f32.mrb[0].mxu0
    %v408 = vpop.f32.mrb[0].mxu0
    %409 = vdwg.mxu0
    %v410 = vadd.f32 %v361, %v405
    %s411 = scalar_lea.vmem %s5, 8
    %v412 = vld [vmem:[%s411] sm:$0xf]
    %413 = vrot.lane.b32.xlu0 %v300, 127
    %v414 = vpop.permute.xlu0 %413
    %v416 = vsel %vm137, %v412, 0
    %v419 = vsel %vm141, %v414, 0
    %421 = vmatprep.subr.bf16.mxu0 0
    %422 = vmatpush1.bf16.msra.mxu0 %v419
    %423 = vmatprep.subr.bf16.mxu0 0
    %424 = vmatpush1.bf16.msra.mxu0 0
    %425 = vmatprep.subr.bf16.mxu0 0
    %426 = vmatpush1.bf16.msra.mxu0 0
    %427 = vmatprep.subr.bf16.mxu0 0
    %428 = vmatpush1.bf16.msra.mxu0 0
    %429 = vmatprep.subr.bf16.mxu0 0
    %430 = vmatpush1.bf16.msra.mxu0 0
    %431 = vmatprep.subr.bf16.mxu0 0
    %432 = vmatpush1.bf16.msra.mxu0 0
    %433 = vmatprep.subr.bf16.mxu0 0
    %434 = vmatpush1.bf16.msra.mxu0 0
    %435 = vmatprep.subr.bf16.mxu0 0
    %436 = vmatpush1.bf16.msra.mxu0 0
    %437 = vmatprep.subr.bf16.mxu0 0
    %438 = vmatpush1.bf16.msra.mxu0 0
    %439 = vmatprep.subr.bf16.mxu0 0
    %440 = vmatpush1.bf16.msra.mxu0 0
    %441 = vmatprep.subr.bf16.mxu0 0
    %442 = vmatpush1.bf16.msra.mxu0 0
    %443 = vmatprep.subr.bf16.mxu0 0
    %444 = vmatpush1.bf16.msra.mxu0 0
    %445 = vmatprep.subr.bf16.mxu0 0
    %446 = vmatpush1.bf16.msra.mxu0 0
    %447 = vmatprep.subr.bf16.mxu0 0
    %448 = vmatpush1.bf16.msra.mxu0 0
    %449 = vmatprep.subr.bf16.mxu0 0
    %450 = vmatpush1.bf16.msra.mxu0 0
    %451 = vmatprep.subr.bf16.mxu0 0
    %452 = vmatpush1.bf16.msra.mxu0 0
    %453 = vmatprep.mubr.bf16.mxu0 0
    %454 = vmatmul.mubr.bf16.gmra.mrb[0].mxu0 %v416
    %v455 = vpop.f32.mrb[0].mxu0
    %v456 = vadd.f32 0.0, %v455
    %v457 = vpop.f32.mrb[0].mxu0
    %v458 = vpop.f32.mrb[0].mxu0
    %v459 = vpop.f32.mrb[0].mxu0
    %460 = vdwg.mxu0
    %v461 = vadd.f32 %v410, %v456
    %s462 = sld [smem:[#allocation3 + $0x1]]
    %vm463 = vcmp.ge.f32.partialorder %v461, 0.0
    %v464 = vstv %s462
    %v465 = vmul.f32 %v464, %v461
    %v466 = vsel %vm463, %v461, %v465
    %467 = vst.msk [vmem:[#allocation2 + $0x8] sm:$0xff] %vm66, %v466
    %v468 = vld [vmem:[#allocation2] sm:$0xff]
    %v469 = vld [vmem:[#allocation2 + $0x8] sm:$0xff]
    %v470 = vpack.c.bf16 %v468, %v468
    %v471 = vpack.c.bf16 %v469, %v469
    %v472 = vld [vmem:[%s8] sm:$0xff]
    %v473 = vld [vmem:[%s7] sm:$0xf]
    %476 = vrot.lane.b32.xlu0 %v470, 1
    %v477 = vpop.permute.xlu0 %476
    %478 = vrot.lane.b32.xlu0 %v471, 1
    %v479 = vpop.permute.xlu0 %478
    %v480 = vsel %vm135, %v477, %v479
    %v482 = vsel %vm137, %v473, 0
    %v485 = vsel %vm141, %v480, 0
    %487 = vmatprep.subr.bf16.mxu0 0
    %488 = vmatpush1.bf16.msra.mxu0 %v485
    %489 = vmatprep.subr.bf16.mxu0 0
    %490 = vmatpush1.bf16.msra.mxu0 0
    %491 = vmatprep.subr.bf16.mxu0 0
    %492 = vmatpush1.bf16.msra.mxu0 0
    %493 = vmatprep.subr.bf16.mxu0 0
    %494 = vmatpush1.bf16.msra.mxu0 0
    %495 = vmatprep.subr.bf16.mxu0 0
    %496 = vmatpush1.bf16.msra.mxu0 0
    %497 = vmatprep.subr.bf16.mxu0 0
    %498 = vmatpush1.bf16.msra.mxu0 0
    %499 = vmatprep.subr.bf16.mxu0 0
    %500 = vmatpush1.bf16.msra.mxu0 0
    %501 = vmatprep.subr.bf16.mxu0 0
    %502 = vmatpush1.bf16.msra.mxu0 0
    %503 = vmatprep.subr.bf16.mxu0 0
    %504 = vmatpush1.bf16.msra.mxu0 0
    %505 = vmatprep.subr.bf16.mxu0 0
    %506 = vmatpush1.bf16.msra.mxu0 0
    %507 = vmatprep.subr.bf16.mxu0 0
    %508 = vmatpush1.bf16.msra.mxu0 0
    %509 = vmatprep.subr.bf16.mxu0 0
    %510 = vmatpush1.bf16.msra.mxu0 0
    %511 = vmatprep.subr.bf16.mxu0 0
    %512 = vmatpush1.bf16.msra.mxu0 0
    %513 = vmatprep.subr.bf16.mxu0 0
    %514 = vmatpush1.bf16.msra.mxu0 0
    %515 = vmatprep.subr.bf16.mxu0 0
    %516 = vmatpush1.bf16.msra.mxu0 0
    %517 = vmatprep.subr.bf16.mxu0 0
    %518 = vmatpush1.bf16.msra.mxu0 0
    %519 = vmatprep.mubr.bf16.mxu0 0
    %520 = vmatmul.mubr.bf16.gmra.mrb[0].mxu0 %v482
    %v521 = vpop.f32.mrb[0].mxu0
    %v522 = vadd.f32 0.0, %v521
    %v523 = vpop.f32.mrb[0].mxu0
    %v524 = vpop.f32.mrb[0].mxu0
    %v525 = vpop.f32.mrb[0].mxu0
    %526 = vdwg.mxu0
    %528 = vset.pattern.permute.xlu0 0
    %529 = vperm.xlu0 %528, %v472
    %v530 = vpop.permute.xlu0 %529
    %v532 = vadd.f32 %v530, %v522
    %s533 = scalar_lea.vmem %s7, 4
    %v534 = vld [vmem:[%s533] sm:$0xf]
    %v536 = vsel %vm137, %v534, 0
    %v539 = vsel %vm141, %v471, 0
    %541 = vmatprep.subr.bf16.mxu0 0
    %542 = vmatpush1.bf16.msra.mxu0 %v539
    %543 = vmatprep.subr.bf16.mxu0 0
    %544 = vmatpush1.bf16.msra.mxu0 0
    %545 = vmatprep.subr.bf16.mxu0 0
    %546 = vmatpush1.bf16.msra.mxu0 0
    %547 = vmatprep.subr.bf16.mxu0 0
    %548 = vmatpush1.bf16.msra.mxu0 0
    %549 = vmatprep.subr.bf16.mxu0 0
    %550 = vmatpush1.bf16.msra.mxu0 0
    %551 = vmatprep.subr.bf16.mxu0 0
    %552 = vmatpush1.bf16.msra.mxu0 0
    %553 = vmatprep.subr.bf16.mxu0 0
    %554 = vmatpush1.bf16.msra.mxu0 0
    %555 = vmatprep.subr.bf16.mxu0 0
    %556 = vmatpush1.bf16.msra.mxu0 0
    %557 = vmatprep.subr.bf16.mxu0 0
    %558 = vmatpush1.bf16.msra.mxu0 0
    %559 = vmatprep.subr.bf16.mxu0 0
    %560 = vmatpush1.bf16.msra.mxu0 0
    %561 = vmatprep.subr.bf16.mxu0 0
    %562 = vmatpush1.bf16.msra.mxu0 0
    %563 = vmatprep.subr.bf16.mxu0 0
    %564 = vmatpush1.bf16.msra.mxu0 0
    %565 = vmatprep.subr.bf16.mxu0 0
    %566 = vmatpush1.bf16.msra.mxu0 0
    %567 = vmatprep.subr.bf16.mxu0 0
    %568 = vmatpush1.bf16.msra.mxu0 0
    %569 = vmatprep.subr.bf16.mxu0 0
    %570 = vmatpush1.bf16.msra.mxu0 0
    %571 = vmatprep.subr.bf16.mxu0 0
    %572 = vmatpush1.bf16.msra.mxu0 0
    %573 = vmatprep.mubr.bf16.mxu0 0
    %574 = vmatmul.mubr.bf16.gmra.mrb[0].mxu0 %v536
    %v575 = vpop.f32.mrb[0].mxu0
    %v576 = vadd.f32 0.0, %v575
    %v577 = vpop.f32.mrb[0].mxu0
    %v578 = vpop.f32.mrb[0].mxu0
    %v579 = vpop.f32.mrb[0].mxu0
    %580 = vdwg.mxu0
    %v581 = vadd.f32 %v532, %v576
    %s582 = scalar_lea.vmem %s7, 8
    %v583 = vld [vmem:[%s582] sm:$0xf]
    %584 = vrot.lane.b32.xlu0 %v471, 127
    %v585 = vpop.permute.xlu0 %584
    %v587 = vsel %vm137, %v583, 0
    %v590 = vsel %vm141, %v585, 0
    %592 = vmatprep.subr.bf16.mxu0 0
    %593 = vmatpush1.bf16.msra.mxu0 %v590
    %594 = vmatprep.subr.bf16.mxu0 0
    %595 = vmatpush1.bf16.msra.mxu0 0
    %596 = vmatprep.subr.bf16.mxu0 0
    %597 = vmatpush1.bf16.msra.mxu0 0
    %598 = vmatprep.subr.bf16.mxu0 0
    %599 = vmatpush1.bf16.msra.mxu0 0
    %600 = vmatprep.subr.bf16.mxu0 0
    %601 = vmatpush1.bf16.msra.mxu0 0
    %602 = vmatprep.subr.bf16.mxu0 0
    %603 = vmatpush1.bf16.msra.mxu0 0
    %604 = vmatprep.subr.bf16.mxu0 0
    %605 = vmatpush1.bf16.msra.mxu0 0
    %606 = vmatprep.subr.bf16.mxu0 0
    %607 = vmatpush1.bf16.msra.mxu0 0
    %608 = vmatprep.subr.bf16.mxu0 0
    %609 = vmatpush1.bf16.msra.mxu0 0
    %610 = vmatprep.subr.bf16.mxu0 0
    %611 = vmatpush1.bf16.msra.mxu0 0
    %612 = vmatprep.subr.bf16.mxu0 0
    %613 = vmatpush1.bf16.msra.mxu0 0
    %614 = vmatprep.subr.bf16.mxu0 0
    %615 = vmatpush1.bf16.msra.mxu0 0
    %616 = vmatprep.subr.bf16.mxu0 0
    %617 = vmatpush1.bf16.msra.mxu0 0
    %618 = vmatprep.subr.bf16.mxu0 0
    %619 = vmatpush1.bf16.msra.mxu0 0
    %620 = vmatprep.subr.bf16.mxu0 0
    %621 = vmatpush1.bf16.msra.mxu0 0
    %622 = vmatprep.subr.bf16.mxu0 0
    %623 = vmatpush1.bf16.msra.mxu0 0
    %624 = vmatprep.mubr.bf16.mxu0 0
    %625 = vmatmul.mubr.bf16.gmra.mrb[0].mxu0 %v587
    %v626 = vpop.f32.mrb[0].mxu0
    %v627 = vadd.f32 0.0, %v626
    %v628 = vpop.f32.mrb[0].mxu0
    %v629 = vpop.f32.mrb[0].mxu0
    %v630 = vpop.f32.mrb[0].mxu0
    %631 = vdwg.mxu0
    %v632 = vadd.f32 %v581, %v627
    %s633 = sld [smem:[#allocation3 + $0x2]]
    %vm634 = vcmp.ge.f32.partialorder %v632, 0.0
    %v635 = vstv %s633
    %v636 = vmul.f32 %v635, %v632
    %v637 = vsel %vm634, %v632, %v636
    %638 = vst.msk [vmem:[#allocation6] sm:$0xff] %vm66, %v637
    %v639 = vsel %vm66, %v637, 0.0
    %v640 = vrot.slane %v639, 4
    %v641 = vadd.f32 %v639, %v640
    %v642 = vrot.slane %v641, 2
    %v643 = vadd.f32 %v641, %v642
    %v644 = vrot.slane %v643, 1
    %v645 = vadd.f32 %v643, %v644
    %v646 = vmul.f32 %v637, %v637
    %v647 = vsel %vm66, %v646, 0.0
    %v648 = vrot.slane %v647, 4
    %v649 = vadd.f32 %v647, %v648
    %v650 = vrot.slane %v649, 2
    %v651 = vadd.f32 %v649, %v650
    %v652 = vrot.slane %v651, 1
    %v653 = vadd.f32 %v651, %v652
    %v654 = vrcp.pop 8.0
    %v655 = vmul.f32 %v645, %v654
    %v656 = vmul.f32 %v653, %v654
    %v657 = vmul.f32 %v655, %v655
    %v658 = vsub.f32 %v656, %v657
    %v659 = vmax.f32 %v658, 0.0
    %v660 = vadd.f32 %v659, 1e-05
    %v661 = vrsqrt.pop %v660
    %v662 = vsub.f32 %v637, %v655
    %v663 = vmul.f32 %v662, %v661
    %v664 = vld [vmem:[%s10] sm:$0xff]
    %666 = vset.pattern.permute.xlu0 0
    %667 = vperm.xlu0 %666, %v664
    %v668 = vpop.permute.xlu0 %667
    %v670 = vmul.f32 %v663, %v668
    %v671 = vld [vmem:[%s11] sm:$0xff]
    %673 = vset.pattern.permute.xlu0 0
    %674 = vperm.xlu0 %673, %v671
    %v675 = vpop.permute.xlu0 %674
    %v677 = vadd.f32 %v670, %v675
    %v678 = vld [vmem:[%s12] sm:$0x3]
    %v679 = vpack.c.bf16 %v677, %v677
    %v680 = vld [vmem:[%s13] sm:$0xf]
    %682 = vset.pattern.permute.xlu0 0
    %683 = vperm.xlu0 %682, %v680
    %v684 = vpop.permute.xlu0 %683
    %v687 = vsel %vm137, %v678, 0
    %v690 = vsel %vm141, %v679, 0
    %692 = vmatprep.subr.bf16.mxu0 0
    %693 = vmatpush1.bf16.msra.mxu0 %v690
    %694 = vmatprep.subr.bf16.mxu0 0
    %695 = vmatpush1.bf16.msra.mxu0 0
    %696 = vmatprep.subr.bf16.mxu0 0
    %697 = vmatpush1.bf16.msra.mxu0 0
    %698 = vmatprep.subr.bf16.mxu0 0
    %699 = vmatpush1.bf16.msra.mxu0 0
    %700 = vmatprep.subr.bf16.mxu0 0
    %701 = vmatpush1.bf16.msra.mxu0 0
    %702 = vmatprep.subr.bf16.mxu0 0
    %703 = vmatpush1.bf16.msra.mxu0 0
    %704 = vmatprep.subr.bf16.mxu0 0
    %705 = vmatpush1.bf16.msra.mxu0 0
    %706 = vmatprep.subr.bf16.mxu0 0
    %707 = vmatpush1.bf16.msra.mxu0 0
    %708 = vmatprep.subr.bf16.mxu0 0
    %709 = vmatpush1.bf16.msra.mxu0 0
    %710 = vmatprep.subr.bf16.mxu0 0
    %711 = vmatpush1.bf16.msra.mxu0 0
    %712 = vmatprep.subr.bf16.mxu0 0
    %713 = vmatpush1.bf16.msra.mxu0 0
    %714 = vmatprep.subr.bf16.mxu0 0
    %715 = vmatpush1.bf16.msra.mxu0 0
    %716 = vmatprep.subr.bf16.mxu0 0
    %717 = vmatpush1.bf16.msra.mxu0 0
    %718 = vmatprep.subr.bf16.mxu0 0
    %719 = vmatpush1.bf16.msra.mxu0 0
    %720 = vmatprep.subr.bf16.mxu0 0
    %721 = vmatpush1.bf16.msra.mxu0 0
    %722 = vmatprep.subr.bf16.mxu0 0
    %723 = vmatpush1.bf16.msra.mxu0 0
    %724 = vmatprep.mubr.bf16.mxu0 0
    %725 = vmatmul.mubr.bf16.gmra.mrb[0].mxu0 %v687
    %v726 = vpop.f32.mrb[0].mxu0
    %v727 = vadd.f32 %v684, %v726
    %v728 = vpop.f32.mrb[0].mxu0
    %v729 = vpop.f32.mrb[0].mxu0
    %v730 = vpop.f32.mrb[0].mxu0
    %731 = vdwg.mxu0
    %vm732 = vcmask 257024
    %733 = vst.msk [vmem:[%s15] sm:$0xf] %vm732, %v727
    // Predicated region
    $region62: #{conv_tasnet_forward.4} parent=1 // pred_check
      _
    $region63: #{conv_tasnet_forward.4} parent=1 // pred_check_branch
      %735 = sbr.rel (0) target = $region65
    $region64: #{conv_tasnet_forward.4} parent=1 // pred_region
      %s737 = ssub.s32 128, 128
      %738 = vsyncadd [#allocation4], %s737
      %s740 = sshll.u32 [#allocation6], 4
      %s741 = int_to_ptr.vmem [resolvable:$true] %s740
      %743 = dma.vmem_to_hbm [thread:$0]  %s741, 128, %s14, [#allocation4]
    $region65: #{conv_tasnet_forward.4} parent=1 // pred_fallthru
      _
    // Predicated region
    $region66: #{conv_tasnet_forward.4} parent=1 // pred_check
      _
    $region67: #{conv_tasnet_forward.4} parent=1 // pred_check_branch
      %745 = sbr.rel (0) target = $region69
    $region68: #{conv_tasnet_forward.4} parent=1 // pred_region
      _
    $region69: #{conv_tasnet_forward.4} parent=1 // pred_fallthru
      _
    // Predicated region
    $region70: #{conv_tasnet_forward.4} parent=1 // pred_check
      _
    $region71: #{conv_tasnet_forward.4} parent=1 // pred_check_branch
      %747 = sbr.rel (0) target = $region73
    $region72: #{conv_tasnet_forward.4} parent=1 // pred_region
      %748 = dma.done [#allocation4], 128
    $region73: #{conv_tasnet_forward.4} parent=1 // pred_fallthru
      _
    // Predicated region
    $region74: #{conv_tasnet_forward.4} parent=1 // pred_check
      _
    $region75: #{conv_tasnet_forward.4} parent=1 // pred_check_branch
      %750 = sbr.rel (0) target = $region77
    $region76: #{conv_tasnet_forward.4} parent=1 // pred_region
      _
    $region77: #{conv_tasnet_forward.4} parent=1 // pred_fallthru
      _
    %751 = vsyncpa [#allocation4], 1
    %752 = vsyncpa [#allocation5], 1

// kernel: conv_tasnet_forward.5
$region0: #{conv_tasnet_forward.5}
  #allocation0 [shape = 'u32[]', space=smem, size = 0x4, offset = 0x4, fixed_abs, tag = 'smem constant byte address 0x4 - core index']
  #allocation1 [shape = 'u32[144,128]{1,0:T(1,128)}', space=vmem, size = 0x12000, scoped, tag = 'internal scratch']
  #allocation2 [shape = 'f32[8,288]{1,0:T(8,128)}', space=vmem, size = 0x3000, scoped, tag = 'scratch operand']
  %s0 = inlined_call_operand.vmem [shape: f32[1,32], index: 0, kind: input, shape index: {}]
  %s1 = inlined_call_operand.vmem [shape: f32[3,8,1], index: 1, kind: input, shape index: {}]
  %s2 = inlined_call_operand.vmem [shape: f32[8,1], index: 2, kind: input, shape index: {}]
  %s3 = inlined_call_operand.vmem [shape: bf16[3,8,8], index: 3, kind: input, shape index: {}]
  %s4 = inlined_call_operand.vmem [shape: f32[8,1], index: 4, kind: input, shape index: {}]
  %s5 = inlined_call_operand.vmem [shape: bf16[3,8,8], index: 5, kind: input, shape index: {}]
  %s6 = inlined_call_operand.vmem [shape: f32[8,1], index: 6, kind: input, shape index: {}]
  %s7 = inlined_call_operand.vmem [shape: bf16[3,8,8], index: 7, kind: input, shape index: {}]
  %s8 = inlined_call_operand.vmem [shape: f32[8,1], index: 8, kind: input, shape index: {}]
  %s9 = inlined_call_operand.vmem [shape: bf16[3,8,8], index: 9, kind: input, shape index: {}]
  %s10 = inlined_call_operand.vmem [shape: f32[8,1], index: 10, kind: input, shape index: {}]
  %s11 = inlined_call_operand.vmem [shape: bf16[3,8,8], index: 11, kind: input, shape index: {}]
  %s12 = inlined_call_operand.vmem [shape: f32[8,1], index: 12, kind: input, shape index: {}]
  %s13 = inlined_call_operand.vmem [shape: f32[1,32], index: 13, kind: input, shape index: {}]
  %s14 = inlined_call_operand.vmem [shape: f32[1,32], index: 14, kind: input, shape index: {}]
  %s15 = inlined_call_operand.vmem [shape: f32[1,32], index: 15, kind: input, shape index: {}]
  %s16 = inlined_call_operand.vmem [shape: f32[1,32], index: 16, kind: input, shape index: {}]
  %s17 = inlined_call_operand.vmem [shape: f32[1,32], index: 17, kind: input, shape index: {}]
  %s18 = inlined_call_operand.vmem [shape: f32[1,32], index: 18, kind: input, shape index: {}]
  %s19 = inlined_call_operand.vmem [shape: f32[5], index: 19, kind: input, shape index: {}]
  %s20 = inlined_call_operand.vmem [shape: bf16[4,8], index: 20, kind: input, shape index: {}]
  %s21 = inlined_call_operand.vmem [shape: f32[4,1], index: 21, kind: input, shape index: {}]
  %s22 = inlined_call_operand.vmem [shape: f32[4,32], index: 22, kind: output, shape index: {}]
  %s23 = sld [smem:[#allocation0]]
  $region102: #{conv_tasnet_forward.5} parent=0
    _
  %s25 = ssub.s32 1, %s23
  %s26 = scalar_select 0, %s25, %s23
  $region1: #{conv_tasnet_forward.5} parent=0
    #allocation3 [shape = 'u8[512]{0}', space=smem, size = 0x200, scoped, tag = 'input window, operand 19, single buffered']
    #allocation4 [shape = 's32[1]{0}', space=sflag, size = 0x4, scoped, tag = 'scoped memory for conv_tasnet_forward.5']
    %27 = vsyncpa [#allocation4], 0
    // Predicated region
    $region2: #{conv_tasnet_forward.5} parent=1 // pred_check
      _
    $region3: #{conv_tasnet_forward.5} parent=1 // pred_check_branch
      %29 = sbr.rel (0) target = $region5
    $region4: #{conv_tasnet_forward.5} parent=1 // pred_region
      _
    $region5: #{conv_tasnet_forward.5} parent=1 // pred_fallthru
      _
    // Predicated region
    $region6: #{conv_tasnet_forward.5} parent=1 // pred_check
      _
    $region7: #{conv_tasnet_forward.5} parent=1 // pred_check_branch
      %31 = sbr.rel (0) target = $region9
    $region8: #{conv_tasnet_forward.5} parent=1 // pred_region
      _
    $region9: #{conv_tasnet_forward.5} parent=1 // pred_fallthru
      _
    // Predicated region
    $region10: #{conv_tasnet_forward.5} parent=1 // pred_check
      _
    $region11: #{conv_tasnet_forward.5} parent=1 // pred_check_branch
      %33 = sbr.rel (0) target = $region13
    $region12: #{conv_tasnet_forward.5} parent=1 // pred_region
      _
    $region13: #{conv_tasnet_forward.5} parent=1 // pred_fallthru
      _
    // Predicated region
    $region14: #{conv_tasnet_forward.5} parent=1 // pred_check
      _
    $region15: #{conv_tasnet_forward.5} parent=1 // pred_check_branch
      %35 = sbr.rel (0) target = $region17
    $region16: #{conv_tasnet_forward.5} parent=1 // pred_region
      _
    $region17: #{conv_tasnet_forward.5} parent=1 // pred_fallthru
      _
    // Predicated region
    $region18: #{conv_tasnet_forward.5} parent=1 // pred_check
      _
    $region19: #{conv_tasnet_forward.5} parent=1 // pred_check_branch
      %37 = sbr.rel (0) target = $region21
    $region20: #{conv_tasnet_forward.5} parent=1 // pred_region
      _
    $region21: #{conv_tasnet_forward.5} parent=1 // pred_fallthru
      _
    // Predicated region
    $region22: #{conv_tasnet_forward.5} parent=1 // pred_check
      _
    $region23: #{conv_tasnet_forward.5} parent=1 // pred_check_branch
      %39 = sbr.rel (0) target = $region25
    $region24: #{conv_tasnet_forward.5} parent=1 // pred_region
      _
    $region25: #{conv_tasnet_forward.5} parent=1 // pred_fallthru
      _
    // Predicated region
    $region26: #{conv_tasnet_forward.5} parent=1 // pred_check
      _
    $region27: #{conv_tasnet_forward.5} parent=1 // pred_check_branch
      %41 = sbr.rel (0) target = $region29
    $region28: #{conv_tasnet_forward.5} parent=1 // pred_region
      _
    $region29: #{conv_tasnet_forward.5} parent=1 // pred_fallthru
      _
    // Predicated region
    $region30: #{conv_tasnet_forward.5} parent=1 // pred_check
      _
    $region31: #{conv_tasnet_forward.5} parent=1 // pred_check_branch
      %43 = sbr.rel (0) target = $region33
    $region32: #{conv_tasnet_forward.5} parent=1 // pred_region
      _
    $region33: #{conv_tasnet_forward.5} parent=1 // pred_fallthru
      _
    // Predicated region
    $region34: #{conv_tasnet_forward.5} parent=1 // pred_check
      _
    $region35: #{conv_tasnet_forward.5} parent=1 // pred_check_branch
      %45 = sbr.rel (0) target = $region37
    $region36: #{conv_tasnet_forward.5} parent=1 // pred_region
      _
    $region37: #{conv_tasnet_forward.5} parent=1 // pred_fallthru
      _
    // Predicated region
    $region38: #{conv_tasnet_forward.5} parent=1 // pred_check
      _
    $region39: #{conv_tasnet_forward.5} parent=1 // pred_check_branch
      %47 = sbr.rel (0) target = $region41
    $region40: #{conv_tasnet_forward.5} parent=1 // pred_region
      _
    $region41: #{conv_tasnet_forward.5} parent=1 // pred_fallthru
      _
    // Predicated region
    $region42: #{conv_tasnet_forward.5} parent=1 // pred_check
      _
    $region43: #{conv_tasnet_forward.5} parent=1 // pred_check_branch
      %49 = sbr.rel (0) target = $region45
    $region44: #{conv_tasnet_forward.5} parent=1 // pred_region
      _
    $region45: #{conv_tasnet_forward.5} parent=1 // pred_fallthru
      _
    // Predicated region
    $region46: #{conv_tasnet_forward.5} parent=1 // pred_check
      _
    $region47: #{conv_tasnet_forward.5} parent=1 // pred_check_branch
      %51 = sbr.rel (0) target = $region49
    $region48: #{conv_tasnet_forward.5} parent=1 // pred_region
      _
    $region49: #{conv_tasnet_forward.5} parent=1 // pred_fallthru
      _
    // Predicated region
    $region50: #{conv_tasnet_forward.5} parent=1 // pred_check
      _
    $region51: #{conv_tasnet_forward.5} parent=1 // pred_check_branch
      %53 = sbr.rel (0) target = $region53
    $region52: #{conv_tasnet_forward.5} parent=1 // pred_region
      _
    $region53: #{conv_tasnet_forward.5} parent=1 // pred_fallthru
      _
    // Predicated region
    $region54: #{conv_tasnet_forward.5} parent=1 // pred_check
      _
    $region55: #{conv_tasnet_forward.5} parent=1 // pred_check_branch
      %55 = sbr.rel (0) target = $region57
    $region56: #{conv_tasnet_forward.5} parent=1 // pred_region
      _
    $region57: #{conv_tasnet_forward.5} parent=1 // pred_fallthru
      _
    // Predicated region
    $region58: #{conv_tasnet_forward.5} parent=1 // pred_check
      _
    $region59: #{conv_tasnet_forward.5} parent=1 // pred_check_branch
      %57 = sbr.rel (0) target = $region61
    $region60: #{conv_tasnet_forward.5} parent=1 // pred_region
      _
    $region61: #{conv_tasnet_forward.5} parent=1 // pred_fallthru
      _
    // Predicated region
    $region62: #{conv_tasnet_forward.5} parent=1 // pred_check
      _
    $region63: #{conv_tasnet_forward.5} parent=1 // pred_check_branch
      %59 = sbr.rel (0) target = $region65
    $region64: #{conv_tasnet_forward.5} parent=1 // pred_region
      _
    $region65: #{conv_tasnet_forward.5} parent=1 // pred_fallthru
      _
    // Predicated region
    $region66: #{conv_tasnet_forward.5} parent=1 // pred_check
      _
    $region67: #{conv_tasnet_forward.5} parent=1 // pred_check_branch
      %61 = sbr.rel (0) target = $region69
    $region68: #{conv_tasnet_forward.5} parent=1 // pred_region
      _
    $region69: #{conv_tasnet_forward.5} parent=1 // pred_fallthru
      _
    // Predicated region
    $region70: #{conv_tasnet_forward.5} parent=1 // pred_check
      _
    $region71: #{conv_tasnet_forward.5} parent=1 // pred_check_branch
      %63 = sbr.rel (0) target = $region73
    $region72: #{conv_tasnet_forward.5} parent=1 // pred_region
      _
    $region73: #{conv_tasnet_forward.5} parent=1 // pred_fallthru
      _
    // Predicated region
    $region74: #{conv_tasnet_forward.5} parent=1 // pred_check
      _
    $region75: #{conv_tasnet_forward.5} parent=1 // pred_check_branch
      %65 = sbr.rel (0) target = $region77
    $region76: #{conv_tasnet_forward.5} parent=1 // pred_region
      _
    $region77: #{conv_tasnet_forward.5} parent=1 // pred_fallthru
      _
    // Predicated region
    $region78: #{conv_tasnet_forward.5} parent=1 // pred_check
      _
    $region79: #{conv_tasnet_forward.5} parent=1 // pred_check_branch
      %67 = sbr.rel (0) target = $region81
    $region80: #{conv_tasnet_forward.5} parent=1 // pred_region
      %s69 = ssub.s32 16, 16
      %70 = vsyncadd [#allocation4], %s69
      %s72 = sshll.u32 %s19, 4
      %s73 = int_to_ptr.vmem [resolvable:$true] %s72
      %75 = dma.vmem_to_smem %s73, 16, [#allocation3], [#allocation4]
    $region81: #{conv_tasnet_forward.5} parent=1 // pred_fallthru
      _
    // Predicated region
    $region82: #{conv_tasnet_forward.5} parent=1 // pred_check
      _
    $region83: #{conv_tasnet_forward.5} parent=1 // pred_check_branch
      %77 = sbr.rel (0) target = $region85
    $region84: #{conv_tasnet_forward.5} parent=1 // pred_region
      _
    $region85: #{conv_tasnet_forward.5} parent=1 // pred_fallthru
      _
    // Predicated region
    $region86: #{conv_tasnet_forward.5} parent=1 // pred_check
      _
    $region87: #{conv_tasnet_forward.5} parent=1 // pred_check_branch
      %79 = sbr.rel (0) target = $region89
    $region88: #{conv_tasnet_forward.5} parent=1 // pred_region
      _
    $region89: #{conv_tasnet_forward.5} parent=1 // pred_fallthru
      _
    // Predicated region
    $region90: #{conv_tasnet_forward.5} parent=1 // pred_check
      _
    $region91: #{conv_tasnet_forward.5} parent=1 // pred_check_branch
      %81 = sbr.rel (0) target = $region93
    $region92: #{conv_tasnet_forward.5} parent=1 // pred_region
      %82 = dma.done [#allocation4], 16
    $region93: #{conv_tasnet_forward.5} parent=1 // pred_fallthru
      _
    %83 = sfence
    %85 = vst [vmem:[#allocation2] sm:$0xff] 0.0
    %86 = vst [vmem:[#allocation2 + $0x8] sm:$0xff] 0.0
    %vm87 = vcmask 261120
    %88 = vst.msk [vmem:[#allocation2 + $0x10] sm:$0xff] %vm87, 0.0
    %v89 = vld [vmem:[%s0] sm:$0x1]
    %vm90 = vcmask 253952
    %91 = vst.msk [vmem:[#allocation2 + $0x8] sm:$0x1] %vm90, %v89
    %v92 = vld [vmem:[#allocation2] sm:$0xff]
    %v93 = vld [vmem:[#allocation2 + $0x8] sm:$0xff]
    %v94 = vld [vmem:[%s2] sm:$0xff]
    %v95 = vld [vmem:[%s1] sm:$0xff]
    %97 = vset.pattern.permute.xlu0 0
    %98 = vperm.xlu0 %97, %v95
    %v99 = vpop.permute.xlu0 %98
    %v101 = vlaneseq
    %v102 = vshrl.u32 %v101, 7
    %v103 = vsub.s32 0, %v102
    %v104 = vrot.slane %v92, %v103
    %v105 = vlaneseq
    %v106 = vshrl.u32 %v105, 7
    %v107 = vsub.s32 0, %v106
    %v108 = vrot.slane %v93, %v107
    %v109 = vmul.f32 %v99, %v104
    %v110 = vmul.f32 %v99, %v108
    %112 = vset.pattern.permute.xlu0 0
    %113 = vperm.xlu0 %112, %v94
    %v114 = vpop.permute.xlu0 %113
    %v116 = vadd.f32 %v114, %v109
    %v117 = vadd.f32 %v114, %v110
    %s118 = scalar_lea.vmem %s1, 8
    %v119 = vld [vmem:[%s118] sm:$0xff]
    %121 = vset.pattern.permute.xlu0 0
    %122 = vperm.xlu0 %121, %v119
    %v123 = vpop.permute.xlu0 %122
    %v125 = vmul.f32 %v123, %v108
    %127 = vrot.lane.b32.xlu0 %v125, 127
    %v128 = vpop.permute.xlu0 %127
    %v130 = vadd.f32 %v116, %v128
    %v131 = vadd.f32 %v117, %v128
    %s132 = scalar_lea.vmem %s1, 16
    %v133 = vld [vmem:[%s132] sm:$0xff]
    %135 = vset.pattern.permute.xlu0 0
    %136 = vperm.xlu0 %135, %v133
    %v137 = vpop.permute.xlu0 %136
    %v139 = vmul.f32 %v137, %v108
    %141 = vrot.lane.b32.xlu0 %v139, 126
    %v142 = vpop.permute.xlu0 %141
    %v144 = vadd.f32 %v130, %v142
    %v145 = vadd.f32 %v131, %v142
    %148 = vrot.lane.b32.xlu0 %v144, 1
    %v149 = vpop.permute.xlu0 %148
    %150 = vrot.lane.b32.xlu0 %v145, 1
    %v151 = vpop.permute.xlu0 %150
    %vm152 = vcmask 7168
    %v153 = vsel %vm152, %v149, %v151
    %155 = vst.msk [vmem:[#allocation2 + $0x8] sm:$0xff] %vm87, %v153
    %v156 = vld [vmem:[#allocation2] sm:$0xff]
    %v157 = vld [vmem:[#allocation2 + $0x8] sm:$0xff]
    %v158 = vpack.c.bf16 %v156, %v156
    %v159 = vpack.c.bf16 %v157, %v157
    %v160 = vld [vmem:[%s4] sm:$0xff]
    %v161 = vld [vmem:[%s3] sm:$0xf]
    %164 = vrot.lane.b32.xlu0 %v158, 1
    %v165 = vpop.permute.xlu0 %164
    %166 = vrot.lane.b32.xlu0 %v159, 1
    %v167 = vpop.permute.xlu0 %166
    %vm168 = vcmask 7168
    %v169 = vsel %vm168, %v165, %v167
    %vm170 = vcmask 64512
    %v172 = vsel %vm170, %v161, 0
    %vm174 = vcmask 1043456
    %v176 = vsel %vm174, %v169, 0
    %178 = vmatprep.subr.bf16.mxu0 0
    %179 = vmatpush1.bf16.msra.mxu0 %v176
    %180 = vmatprep.subr.bf16.mxu0 0
    %181 = vmatpush1.bf16.msra.mxu0 0
    %182 = vmatprep.subr.bf16.mxu0 0
    %183 = vmatpush1.bf16.msra.mxu0 0
    %184 = vmatprep.subr.bf16.mxu0 0
    %185 = vmatpush1.bf16.msra.mxu0 0
    %186 = vmatprep.subr.bf16.mxu0 0
    %187 = vmatpush1.bf16.msra.mxu0 0
    %188 = vmatprep.subr.bf16.mxu0 0
    %189 = vmatpush1.bf16.msra.mxu0 0
    %190 = vmatprep.subr.bf16.mxu0 0
    %191 = vmatpush1.bf16.msra.mxu0 0
    %192 = vmatprep.subr.bf16.mxu0 0
    %193 = vmatpush1.bf16.msra.mxu0 0
    %194 = vmatprep.subr.bf16.mxu0 0
    %195 = vmatpush1.bf16.msra.mxu0 0
    %196 = vmatprep.subr.bf16.mxu0 0
    %197 = vmatpush1.bf16.msra.mxu0 0
    %198 = vmatprep.subr.bf16.mxu0 0
    %199 = vmatpush1.bf16.msra.mxu0 0
    %200 = vmatprep.subr.bf16.mxu0 0
    %201 = vmatpush1.bf16.msra.mxu0 0
    %202 = vmatprep.subr.bf16.mxu0 0
    %203 = vmatpush1.bf16.msra.mxu0 0
    %204 = vmatprep.subr.bf16.mxu0 0
    %205 = vmatpush1.bf16.msra.mxu0 0
    %206 = vmatprep.subr.bf16.mxu0 0
    %207 = vmatpush1.bf16.msra.mxu0 0
    %208 = vmatprep.subr.bf16.mxu0 0
    %209 = vmatpush1.bf16.msra.mxu0 0
    %210 = vmatprep.mubr.bf16.mxu0 0
    %211 = vmatmul.mubr.bf16.gmra.mrb[0].mxu0 %v172
    %v212 = vpop.f32.mrb[0].mxu0
    %v213 = vadd.f32 0.0, %v212
    %v214 = vpop.f32.mrb[0].mxu0
    %v215 = vpop.f32.mrb[0].mxu0
    %v216 = vpop.f32.mrb[0].mxu0
    %217 = vdwg.mxu0
    %219 = vset.pattern.permute.xlu0 0
    %220 = vperm.xlu0 %219, %v160
    %v221 = vpop.permute.xlu0 %220
    %v223 = vadd.f32 %v221, %v213
    %s224 = scalar_lea.vmem %s3, 4
    %v225 = vld [vmem:[%s224] sm:$0xf]
    %v227 = vsel %vm170, %v225, 0
    %v230 = vsel %vm174, %v159, 0
    %232 = vmatprep.subr.bf16.mxu0 0
    %233 = vmatpush1.bf16.msra.mxu0 %v230
    %234 = vmatprep.subr.bf16.mxu0 0
    %235 = vmatpush1.bf16.msra.mxu0 0
    %236 = vmatprep.subr.bf16.mxu0 0
    %237 = vmatpush1.bf16.msra.mxu0 0
    %238 = vmatprep.subr.bf16.mxu0 0
    %239 = vmatpush1.bf16.msra.mxu0 0
    %240 = vmatprep.subr.bf16.mxu0 0
    %241 = vmatpush1.bf16.msra.mxu0 0
    %242 = vmatprep.subr.bf16.mxu0 0
    %243 = vmatpush1.bf16.msra.mxu0 0
    %244 = vmatprep.subr.bf16.mxu0 0
    %245 = vmatpush1.bf16.msra.mxu0 0
    %246 = vmatprep.subr.bf16.mxu0 0
    %247 = vmatpush1.bf16.msra.mxu0 0
    %248 = vmatprep.subr.bf16.mxu0 0
    %249 = vmatpush1.bf16.msra.mxu0 0
    %250 = vmatprep.subr.bf16.mxu0 0
    %251 = vmatpush1.bf16.msra.mxu0 0
    %252 = vmatprep.subr.bf16.mxu0 0
    %253 = vmatpush1.bf16.msra.mxu0 0
    %254 = vmatprep.subr.bf16.mxu0 0
    %255 = vmatpush1.bf16.msra.mxu0 0
    %256 = vmatprep.subr.bf16.mxu0 0
    %257 = vmatpush1.bf16.msra.mxu0 0
    %258 = vmatprep.subr.bf16.mxu0 0
    %259 = vmatpush1.bf16.msra.mxu0 0
    %260 = vmatprep.subr.bf16.mxu0 0
    %261 = vmatpush1.bf16.msra.mxu0 0
    %262 = vmatprep.subr.bf16.mxu0 0
    %263 = vmatpush1.bf16.msra.mxu0 0
    %264 = vmatprep.mubr.bf16.mxu0 0
    %265 = vmatmul.mubr.bf16.gmra.mrb[0].mxu0 %v227
    %v266 = vpop.f32.mrb[0].mxu0
    %v267 = vadd.f32 0.0, %v266
    %v268 = vpop.f32.mrb[0].mxu0
    %v269 = vpop.f32.mrb[0].mxu0
    %v270 = vpop.f32.mrb[0].mxu0
    %271 = vdwg.mxu0
    %v272 = vadd.f32 %v223, %v267
    %s273 = scalar_lea.vmem %s3, 8
    %v274 = vld [vmem:[%s273] sm:$0xf]
    %275 = vrot.lane.b32.xlu0 %v159, 127
    %v276 = vpop.permute.xlu0 %275
    %v278 = vsel %vm170, %v274, 0
    %v281 = vsel %vm174, %v276, 0
    %283 = vmatprep.subr.bf16.mxu0 0
    %284 = vmatpush1.bf16.msra.mxu0 %v281
    %285 = vmatprep.subr.bf16.mxu0 0
    %286 = vmatpush1.bf16.msra.mxu0 0
    %287 = vmatprep.subr.bf16.mxu0 0
    %288 = vmatpush1.bf16.msra.mxu0 0
    %289 = vmatprep.subr.bf16.mxu0 0
    %290 = vmatpush1.bf16.msra.mxu0 0
    %291 = vmatprep.subr.bf16.mxu0 0
    %292 = vmatpush1.bf16.msra.mxu0 0
    %293 = vmatprep.subr.bf16.mxu0 0
    %294 = vmatpush1.bf16.msra.mxu0 0
    %295 = vmatprep.subr.bf16.mxu0 0
    %296 = vmatpush1.bf16.msra.mxu0 0
    %297 = vmatprep.subr.bf16.mxu0 0
    %298 = vmatpush1.bf16.msra.mxu0 0
    %299 = vmatprep.subr.bf16.mxu0 0
    %300 = vmatpush1.bf16.msra.mxu0 0
    %301 = vmatprep.subr.bf16.mxu0 0
    %302 = vmatpush1.bf16.msra.mxu0 0
    %303 = vmatprep.subr.bf16.mxu0 0
    %304 = vmatpush1.bf16.msra.mxu0 0
    %305 = vmatprep.subr.bf16.mxu0 0
    %306 = vmatpush1.bf16.msra.mxu0 0
    %307 = vmatprep.subr.bf16.mxu0 0
    %308 = vmatpush1.bf16.msra.mxu0 0
    %309 = vmatprep.subr.bf16.mxu0 0
    %310 = vmatpush1.bf16.msra.mxu0 0
    %311 = vmatprep.subr.bf16.mxu0 0
    %312 = vmatpush1.bf16.msra.mxu0 0
    %313 = vmatprep.subr.bf16.mxu0 0
    %314 = vmatpush1.bf16.msra.mxu0 0
    %315 = vmatprep.mubr.bf16.mxu0 0
    %316 = vmatmul.mubr.bf16.gmra.mrb[0].mxu0 %v278
    %v317 = vpop.f32.mrb[0].mxu0
    %v318 = vadd.f32 0.0, %v317
    %v319 = vpop.f32.mrb[0].mxu0
    %v320 = vpop.f32.mrb[0].mxu0
    %v321 = vpop.f32.mrb[0].mxu0
    %322 = vdwg.mxu0
    %v323 = vadd.f32 %v272, %v318
    %v324 = vsel %vm87, %v323, 0.0
    %325 = vadd.xlane.f32.xlu0 %v324
    %v326 = vpop.xlane.xlu0 %325
    %v327 = vmul.f32 %v323, %v323
    %v328 = vsel %vm87, %v327, 0.0
    %329 = vadd.xlane.f32.xlu0 %v328
    %v330 = vpop.xlane.xlu0 %329
    %v331 = vrcp.pop 32.0
    %v332 = vmul.f32 %v326, %v331
    %v333 = vmul.f32 %v330, %v331
    %v334 = vmul.f32 %v332, %v332
    %v335 = vsub.f32 %v333, %v334
    %v336 = vmax.f32 %v335, 0.0
    %v337 = vadd.f32 %v336, 1e-05
    %v338 = vrsqrt.pop %v337
    %v339 = vsub.f32 %v323, %v332
    %v340 = vmul.f32 %v339, %v338
    %v341 = vld [vmem:[%s13] sm:$0x1]
    %v343 = vlaneseq
    %v344 = vshrl.u32 %v343, 7
    %v345 = vsub.s32 0, %v344
    %v346 = vrot.slane %v341, %v345
    %v348 = vmul.f32 %v340, %v346
    %v349 = vld [vmem:[%s14] sm:$0x1]
    %v351 = vlaneseq
    %v352 = vshrl.u32 %v351, 7
    %v353 = vsub.s32 0, %v352
    %v354 = vrot.slane %v349, %v353
    %v356 = vadd.f32 %v348, %v354
    %s357 = sld [smem:[#allocation3]]
    %vm358 = vcmp.ge.f32.partialorder %v356, 0.0
    %v359 = vstv %s357
    %v360 = vmul.f32 %v359, %v356
    %v361 = vsel %vm358, %v356, %v360
    %362 = vst.msk [vmem:[#allocation2 + $0x8] sm:$0xff] %vm87, %v361
    %v363 = vld [vmem:[#allocation2] sm:$0xff]
    %v364 = vld [vmem:[#allocation2 + $0x8] sm:$0xff]
    %v365 = vpack.c.bf16 %v363, %v363
    %v366 = vpack.c.bf16 %v364, %v364
    %v367 = vld [vmem:[%s6] sm:$0xff]
    %v368 = vld [vmem:[%s5] sm:$0xf]
    %371 = vrot.lane.b32.xlu0 %v365, 1
    %v372 = vpop.permute.xlu0 %371
    %373 = vrot.lane.b32.xlu0 %v366, 1
    %v374 = vpop.permute.xlu0 %373
    %v375 = vsel %vm168, %v372, %v374
    %v377 = vsel %vm170, %v368, 0
    %v380 = vsel %vm174, %v375, 0
    %382 = vmatprep.subr.bf16.mxu0 0
    %383 = vmatpush1.bf16.msra.mxu0 %v380
    %384 = vmatprep.subr.bf16.mxu0 0
    %385 = vmatpush1.bf16.msra.mxu0 0
    %386 = vmatprep.subr.bf16.mxu0 0
    %387 = vmatpush1.bf16.msra.mxu0 0
    %388 = vmatprep.subr.bf16.mxu0 0
    %389 = vmatpush1.bf16.msra.mxu0 0
    %390 = vmatprep.subr.bf16.mxu0 0
    %391 = vmatpush1.bf16.msra.mxu0 0
    %392 = vmatprep.subr.bf16.mxu0 0
    %393 = vmatpush1.bf16.msra.mxu0 0
    %394 = vmatprep.subr.bf16.mxu0 0
    %395 = vmatpush1.bf16.msra.mxu0 0
    %396 = vmatprep.subr.bf16.mxu0 0
    %397 = vmatpush1.bf16.msra.mxu0 0
    %398 = vmatprep.subr.bf16.mxu0 0
    %399 = vmatpush1.bf16.msra.mxu0 0
    %400 = vmatprep.subr.bf16.mxu0 0
    %401 = vmatpush1.bf16.msra.mxu0 0
    %402 = vmatprep.subr.bf16.mxu0 0
    %403 = vmatpush1.bf16.msra.mxu0 0
    %404 = vmatprep.subr.bf16.mxu0 0
    %405 = vmatpush1.bf16.msra.mxu0 0
    %406 = vmatprep.subr.bf16.mxu0 0
    %407 = vmatpush1.bf16.msra.mxu0 0
    %408 = vmatprep.subr.bf16.mxu0 0
    %409 = vmatpush1.bf16.msra.mxu0 0
    %410 = vmatprep.subr.bf16.mxu0 0
    %411 = vmatpush1.bf16.msra.mxu0 0
    %412 = vmatprep.subr.bf16.mxu0 0
    %413 = vmatpush1.bf16.msra.mxu0 0
    %414 = vmatprep.mubr.bf16.mxu0 0
    %415 = vmatmul.mubr.bf16.gmra.mrb[0].mxu0 %v377
    %v416 = vpop.f32.mrb[0].mxu0
    %v417 = vadd.f32 0.0, %v416
    %v418 = vpop.f32.mrb[0].mxu0
    %v419 = vpop.f32.mrb[0].mxu0
    %v420 = vpop.f32.mrb[0].mxu0
    %421 = vdwg.mxu0
    %423 = vset.pattern.permute.xlu0 0
    %424 = vperm.xlu0 %423, %v367
    %v425 = vpop.permute.xlu0 %424
    %v427 = vadd.f32 %v425, %v417
    %s428 = scalar_lea.vmem %s5, 4
    %v429 = vld [vmem:[%s428] sm:$0xf]
    %v431 = vsel %vm170, %v429, 0
    %v434 = vsel %vm174, %v366, 0
    %436 = vmatprep.subr.bf16.mxu0 0
    %437 = vmatpush1.bf16.msra.mxu0 %v434
    %438 = vmatprep.subr.bf16.mxu0 0
    %439 = vmatpush1.bf16.msra.mxu0 0
    %440 = vmatprep.subr.bf16.mxu0 0
    %441 = vmatpush1.bf16.msra.mxu0 0
    %442 = vmatprep.subr.bf16.mxu0 0
    %443 = vmatpush1.bf16.msra.mxu0 0
    %444 = vmatprep.subr.bf16.mxu0 0
    %445 = vmatpush1.bf16.msra.mxu0 0
    %446 = vmatprep.subr.bf16.mxu0 0
    %447 = vmatpush1.bf16.msra.mxu0 0
    %448 = vmatprep.subr.bf16.mxu0 0
    %449 = vmatpush1.bf16.msra.mxu0 0
    %450 = vmatprep.subr.bf16.mxu0 0
    %451 = vmatpush1.bf16.msra.mxu0 0
    %452 = vmatprep.subr.bf16.mxu0 0
    %453 = vmatpush1.bf16.msra.mxu0 0
    %454 = vmatprep.subr.bf16.mxu0 0
    %455 = vmatpush1.bf16.msra.mxu0 0
    %456 = vmatprep.subr.bf16.mxu0 0
    %457 = vmatpush1.bf16.msra.mxu0 0
    %458 = vmatprep.subr.bf16.mxu0 0
    %459 = vmatpush1.bf16.msra.mxu0 0
    %460 = vmatprep.subr.bf16.mxu0 0
    %461 = vmatpush1.bf16.msra.mxu0 0
    %462 = vmatprep.subr.bf16.mxu0 0
    %463 = vmatpush1.bf16.msra.mxu0 0
    %464 = vmatprep.subr.bf16.mxu0 0
    %465 = vmatpush1.bf16.msra.mxu0 0
    %466 = vmatprep.subr.bf16.mxu0 0
    %467 = vmatpush1.bf16.msra.mxu0 0
    %468 = vmatprep.mubr.bf16.mxu0 0
    %469 = vmatmul.mubr.bf16.gmra.mrb[0].mxu0 %v431
    %v470 = vpop.f32.mrb[0].mxu0
    %v471 = vadd.f32 0.0, %v470
    %v472 = vpop.f32.mrb[0].mxu0
    %v473 = vpop.f32.mrb[0].mxu0
    %v474 = vpop.f32.mrb[0].mxu0
    %475 = vdwg.mxu0
    %v476 = vadd.f32 %v427, %v471
    %s477 = scalar_lea.vmem %s5, 8
    %v478 = vld [vmem:[%s477] sm:$0xf]
    %479 = vrot.lane.b32.xlu0 %v366, 127
    %v480 = vpop.permute.xlu0 %479
    %v482 = vsel %vm170, %v478, 0
    %v485 = vsel %vm174, %v480, 0
    %487 = vmatprep.subr.bf16.mxu0 0
    %488 = vmatpush1.bf16.msra.mxu0 %v485
    %489 = vmatprep.subr.bf16.mxu0 0
    %490 = vmatpush1.bf16.msra.mxu0 0
    %491 = vmatprep.subr.bf16.mxu0 0
    %492 = vmatpush1.bf16.msra.mxu0 0
    %493 = vmatprep.subr.bf16.mxu0 0
    %494 = vmatpush1.bf16.msra.mxu0 0
    %495 = vmatprep.subr.bf16.mxu0 0
    %496 = vmatpush1.bf16.msra.mxu0 0
    %497 = vmatprep.subr.bf16.mxu0 0
    %498 = vmatpush1.bf16.msra.mxu0 0
    %499 = vmatprep.subr.bf16.mxu0 0
    %500 = vmatpush1.bf16.msra.mxu0 0
    %501 = vmatprep.subr.bf16.mxu0 0
    %502 = vmatpush1.bf16.msra.mxu0 0
    %503 = vmatprep.subr.bf16.mxu0 0
    %504 = vmatpush1.bf16.msra.mxu0 0
    %505 = vmatprep.subr.bf16.mxu0 0
    %506 = vmatpush1.bf16.msra.mxu0 0
    %507 = vmatprep.subr.bf16.mxu0 0
    %508 = vmatpush1.bf16.msra.mxu0 0
    %509 = vmatprep.subr.bf16.mxu0 0
    %510 = vmatpush1.bf16.msra.mxu0 0
    %511 = vmatprep.subr.bf16.mxu0 0
    %512 = vmatpush1.bf16.msra.mxu0 0
    %513 = vmatprep.subr.bf16.mxu0 0
    %514 = vmatpush1.bf16.msra.mxu0 0
    %515 = vmatprep.subr.bf16.mxu0 0
    %516 = vmatpush1.bf16.msra.mxu0 0
    %517 = vmatprep.subr.bf16.mxu0 0
    %518 = vmatpush1.bf16.msra.mxu0 0
    %519 = vmatprep.mubr.bf16.mxu0 0
    %520 = vmatmul.mubr.bf16.gmra.mrb[0].mxu0 %v482
    %v521 = vpop.f32.mrb[0].mxu0
    %v522 = vadd.f32 0.0, %v521
    %v523 = vpop.f32.mrb[0].mxu0
    %v524 = vpop.f32.mrb[0].mxu0
    %v525 = vpop.f32.mrb[0].mxu0
    %526 = vdwg.mxu0
    %v527 = vadd.f32 %v476, %v522
    %v528 = vsel %vm87, %v527, 0.0
    %529 = vadd.xlane.f32.xlu0 %v528
    %v530 = vpop.xlane.xlu0 %529
    %v531 = vmul.f32 %v527, %v527
    %v532 = vsel %vm87, %v531, 0.0
    %533 = vadd.xlane.f32.xlu0 %v532
    %v534 = vpop.xlane.xlu0 %533
    %v535 = vmul.f32 %v530, %v331
    %v536 = vmul.f32 %v534, %v331
    %v537 = vmul.f32 %v535, %v535
    %v538 = vsub.f32 %v536, %v537
    %v539 = vmax.f32 %v538, 0.0
    %v540 = vadd.f32 %v539, 1e-05
    %v541 = vrsqrt.pop %v540
    %v542 = vsub.f32 %v527, %v535
    %v543 = vmul.f32 %v542, %v541
    %v544 = vld [vmem:[%s15] sm:$0x1]
    %v546 = vlaneseq
    %v547 = vshrl.u32 %v546, 7
    %v548 = vsub.s32 0, %v547
    %v549 = vrot.slane %v544, %v548
    %v551 = vmul.f32 %v543, %v549
    %v552 = vld [vmem:[%s16] sm:$0x1]
    %v554 = vlaneseq
    %v555 = vshrl.u32 %v554, 7
    %v556 = vsub.s32 0, %v555
    %v557 = vrot.slane %v552, %v556
    %v559 = vadd.f32 %v551, %v557
    %s560 = sld [smem:[#allocation3 + $0x1]]
    %vm561 = vcmp.ge.f32.partialorder %v559, 0.0
    %v562 = vstv %s560
    %v563 = vmul.f32 %v562, %v559
    %v564 = vsel %vm561, %v559, %v563
    %565 = vst.msk [vmem:[#allocation2 + $0x8] sm:$0xff] %vm87, %v564
    %v566 = vld [vmem:[#allocation2] sm:$0xff]
    %v567 = vld [vmem:[#allocation2 + $0x8] sm:$0xff]
    %v568 = vpack.c.bf16 %v566, %v566
    %v569 = vpack.c.bf16 %v567, %v567
    %v570 = vld [vmem:[%s8] sm:$0xff]
    %v571 = vld [vmem:[%s7] sm:$0xf]
    %574 = vrot.lane.b32.xlu0 %v568, 1
    %v575 = vpop.permute.xlu0 %574
    %576 = vrot.lane.b32.xlu0 %v569, 1
    %v577 = vpop.permute.xlu0 %576
    %v578 = vsel %vm168, %v575, %v577
    %v580 = vsel %vm170, %v571, 0
    %v583 = vsel %vm174, %v578, 0
    %585 = vmatprep.subr.bf16.mxu0 0
    %586 = vmatpush1.bf16.msra.mxu0 %v583
    %587 = vmatprep.subr.bf16.mxu0 0
    %588 = vmatpush1.bf16.msra.mxu0 0
    %589 = vmatprep.subr.bf16.mxu0 0
    %590 = vmatpush1.bf16.msra.mxu0 0
    %591 = vmatprep.subr.bf16.mxu0 0
    %592 = vmatpush1.bf16.msra.mxu0 0
    %593 = vmatprep.subr.bf16.mxu0 0
    %594 = vmatpush1.bf16.msra.mxu0 0
    %595 = vmatprep.subr.bf16.mxu0 0
    %596 = vmatpush1.bf16.msra.mxu0 0
    %597 = vmatprep.subr.bf16.mxu0 0
    %598 = vmatpush1.bf16.msra.mxu0 0
    %599 = vmatprep.subr.bf16.mxu0 0
    %600 = vmatpush1.bf16.msra.mxu0 0
    %601 = vmatprep.subr.bf16.mxu0 0
    %602 = vmatpush1.bf16.msra.mxu0 0
    %603 = vmatprep.subr.bf16.mxu0 0
    %604 = vmatpush1.bf16.msra.mxu0 0
    %605 = vmatprep.subr.bf16.mxu0 0
    %606 = vmatpush1.bf16.msra.mxu0 0
    %607 = vmatprep.subr.bf16.mxu0 0
    %608 = vmatpush1.bf16.msra.mxu0 0
    %609 = vmatprep.subr.bf16.mxu0 0
    %610 = vmatpush1.bf16.msra.mxu0 0
    %611 = vmatprep.subr.bf16.mxu0 0
    %612 = vmatpush1.bf16.msra.mxu0 0
    %613 = vmatprep.subr.bf16.mxu0 0
    %614 = vmatpush1.bf16.msra.mxu0 0
    %615 = vmatprep.subr.bf16.mxu0 0
    %616 = vmatpush1.bf16.msra.mxu0 0
    %617 = vmatprep.mubr.bf16.mxu0 0
    %618 = vmatmul.mubr.bf16.gmra.mrb[0].mxu0 %v580
    %v619 = vpop.f32.mrb[0].mxu0
    %v620 = vadd.f32 0.0, %v619
    %v621 = vpop.f32.mrb[0].mxu0
    %v622 = vpop.f32.mrb[0].mxu0
    %v623 = vpop.f32.mrb[0].mxu0
    %624 = vdwg.mxu0
    %626 = vset.pattern.permute.xlu0 0
    %627 = vperm.xlu0 %626, %v570
    %v628 = vpop.permute.xlu0 %627
    %v630 = vadd.f32 %v628, %v620
    %s631 = scalar_lea.vmem %s7, 4
    %v632 = vld [vmem:[%s631] sm:$0xf]
    %v634 = vsel %vm170, %v632, 0
    %v637 = vsel %vm174, %v569, 0
    %639 = vmatprep.subr.bf16.mxu0 0
    %640 = vmatpush1.bf16.msra.mxu0 %v637
    %641 = vmatprep.subr.bf16.mxu0 0
    %642 = vmatpush1.bf16.msra.mxu0 0
    %643 = vmatprep.subr.bf16.mxu0 0
    %644 = vmatpush1.bf16.msra.mxu0 0
    %645 = vmatprep.subr.bf16.mxu0 0
    %646 = vmatpush1.bf16.msra.mxu0 0
    %647 = vmatprep.subr.bf16.mxu0 0
    %648 = vmatpush1.bf16.msra.mxu0 0
    %649 = vmatprep.subr.bf16.mxu0 0
    %650 = vmatpush1.bf16.msra.mxu0 0
    %651 = vmatprep.subr.bf16.mxu0 0
    %652 = vmatpush1.bf16.msra.mxu0 0
    %653 = vmatprep.subr.bf16.mxu0 0
    %654 = vmatpush1.bf16.msra.mxu0 0
    %655 = vmatprep.subr.bf16.mxu0 0
    %656 = vmatpush1.bf16.msra.mxu0 0
    %657 = vmatprep.subr.bf16.mxu0 0
    %658 = vmatpush1.bf16.msra.mxu0 0
    %659 = vmatprep.subr.bf16.mxu0 0
    %660 = vmatpush1.bf16.msra.mxu0 0
    %661 = vmatprep.subr.bf16.mxu0 0
    %662 = vmatpush1.bf16.msra.mxu0 0
    %663 = vmatprep.subr.bf16.mxu0 0
    %664 = vmatpush1.bf16.msra.mxu0 0
    %665 = vmatprep.subr.bf16.mxu0 0
    %666 = vmatpush1.bf16.msra.mxu0 0
    %667 = vmatprep.subr.bf16.mxu0 0
    %668 = vmatpush1.bf16.msra.mxu0 0
    %669 = vmatprep.subr.bf16.mxu0 0
    %670 = vmatpush1.bf16.msra.mxu0 0
    %671 = vmatprep.mubr.bf16.mxu0 0
    %672 = vmatmul.mubr.bf16.gmra.mrb[0].mxu0 %v634
    %v673 = vpop.f32.mrb[0].mxu0
    %v674 = vadd.f32 0.0, %v673
    %v675 = vpop.f32.mrb[0].mxu0
    %v676 = vpop.f32.mrb[0].mxu0
    %v677 = vpop.f32.mrb[0].mxu0
    %678 = vdwg.mxu0
    %v679 = vadd.f32 %v630, %v674
    %s680 = scalar_lea.vmem %s7, 8
    %v681 = vld [vmem:[%s680] sm:$0xf]
    %682 = vrot.lane.b32.xlu0 %v569, 127
    %v683 = vpop.permute.xlu0 %682
    %v685 = vsel %vm170, %v681, 0
    %v688 = vsel %vm174, %v683, 0
    %690 = vmatprep.subr.bf16.mxu0 0
    %691 = vmatpush1.bf16.msra.mxu0 %v688
    %692 = vmatprep.subr.bf16.mxu0 0
    %693 = vmatpush1.bf16.msra.mxu0 0
    %694 = vmatprep.subr.bf16.mxu0 0
    %695 = vmatpush1.bf16.msra.mxu0 0
    %696 = vmatprep.subr.bf16.mxu0 0
    %697 = vmatpush1.bf16.msra.mxu0 0
    %698 = vmatprep.subr.bf16.mxu0 0
    %699 = vmatpush1.bf16.msra.mxu0 0
    %700 = vmatprep.subr.bf16.mxu0 0
    %701 = vmatpush1.bf16.msra.mxu0 0
    %702 = vmatprep.subr.bf16.mxu0 0
    %703 = vmatpush1.bf16.msra.mxu0 0
    %704 = vmatprep.subr.bf16.mxu0 0
    %705 = vmatpush1.bf16.msra.mxu0 0
    %706 = vmatprep.subr.bf16.mxu0 0
    %707 = vmatpush1.bf16.msra.mxu0 0
    %708 = vmatprep.subr.bf16.mxu0 0
    %709 = vmatpush1.bf16.msra.mxu0 0
    %710 = vmatprep.subr.bf16.mxu0 0
    %711 = vmatpush1.bf16.msra.mxu0 0
    %712 = vmatprep.subr.bf16.mxu0 0
    %713 = vmatpush1.bf16.msra.mxu0 0
    %714 = vmatprep.subr.bf16.mxu0 0
    %715 = vmatpush1.bf16.msra.mxu0 0
    %716 = vmatprep.subr.bf16.mxu0 0
    %717 = vmatpush1.bf16.msra.mxu0 0
    %718 = vmatprep.subr.bf16.mxu0 0
    %719 = vmatpush1.bf16.msra.mxu0 0
    %720 = vmatprep.subr.bf16.mxu0 0
    %721 = vmatpush1.bf16.msra.mxu0 0
    %722 = vmatprep.mubr.bf16.mxu0 0
    %723 = vmatmul.mubr.bf16.gmra.mrb[0].mxu0 %v685
    %v724 = vpop.f32.mrb[0].mxu0
    %v725 = vadd.f32 0.0, %v724
    %v726 = vpop.f32.mrb[0].mxu0
    %v727 = vpop.f32.mrb[0].mxu0
    %v728 = vpop.f32.mrb[0].mxu0
    %729 = vdwg.mxu0
    %v730 = vadd.f32 %v679, %v725
    %v731 = vsel %vm87, %v730, 0.0
    %732 = vadd.xlane.f32.xlu0 %v731
    %v733 = vpop.xlane.xlu0 %732
    %v734 = vmul.f32 %v730, %v730
    %v735 = vsel %vm87, %v734, 0.0
    %736 = vadd.xlane.f32.xlu0 %v735
    %v737 = vpop.xlane.xlu0 %736
    %v738 = vmul.f32 %v733, %v331
    %v739 = vmul.f32 %v737, %v331
    %v740 = vmul.f32 %v738, %v738
    %v741 = vsub.f32 %v739, %v740
    %v742 = vmax.f32 %v741, 0.0
    %v743 = vadd.f32 %v742, 1e-05
    %v744 = vrsqrt.pop %v743
    %v745 = vsub.f32 %v730, %v738
    %v746 = vmul.f32 %v745, %v744
    %v747 = vld [vmem:[%s17] sm:$0x1]
    %v749 = vlaneseq
    %v750 = vshrl.u32 %v749, 7
    %v751 = vsub.s32 0, %v750
    %v752 = vrot.slane %v747, %v751
    %v754 = vmul.f32 %v746, %v752
    %v755 = vld [vmem:[%s18] sm:$0x1]
    %v757 = vlaneseq
    %v758 = vshrl.u32 %v757, 7
    %v759 = vsub.s32 0, %v758
    %v760 = vrot.slane %v755, %v759
    %v762 = vadd.f32 %v754, %v760
    %s763 = sld [smem:[#allocation3 + $0x2]]
    %vm764 = vcmp.ge.f32.partialorder %v762, 0.0
    %v765 = vstv %s763
    %v766 = vmul.f32 %v765, %v762
    %v767 = vsel %vm764, %v762, %v766
    %768 = vst.msk [vmem:[#allocation2 + $0x8] sm:$0xff] %vm87, %v767
    %v769 = vld [vmem:[#allocation2] sm:$0xff]
    %v770 = vld [vmem:[#allocation2 + $0x8] sm:$0xff]
    %v771 = vpack.c.bf16 %v769, %v769
    %v772 = vpack.c.bf16 %v770, %v770
    %v773 = vld [vmem:[%s10] sm:$0xff]
    %v774 = vld [vmem:[%s9] sm:$0xf]
    %777 = vrot.lane.b32.xlu0 %v771, 1
    %v778 = vpop.permute.xlu0 %777
    %779 = vrot.lane.b32.xlu0 %v772, 1
    %v780 = vpop.permute.xlu0 %779
    %v781 = vsel %vm168, %v778, %v780
    %v783 = vsel %vm170, %v774, 0
    %v786 = vsel %vm174, %v781, 0
    %788 = vmatprep.subr.bf16.mxu0 0
    %789 = vmatpush1.bf16.msra.mxu0 %v786
    %790 = vmatprep.subr.bf16.mxu0 0
    %791 = vmatpush1.bf16.msra.mxu0 0
    %792 = vmatprep.subr.bf16.mxu0 0
    %793 = vmatpush1.bf16.msra.mxu0 0
    %794 = vmatprep.subr.bf16.mxu0 0
    %795 = vmatpush1.bf16.msra.mxu0 0
    %796 = vmatprep.subr.bf16.mxu0 0
    %797 = vmatpush1.bf16.msra.mxu0 0
    %798 = vmatprep.subr.bf16.mxu0 0
    %799 = vmatpush1.bf16.msra.mxu0 0
    %800 = vmatprep.subr.bf16.mxu0 0
    %801 = vmatpush1.bf16.msra.mxu0 0
    %802 = vmatprep.subr.bf16.mxu0 0
    %803 = vmatpush1.bf16.msra.mxu0 0
    %804 = vmatprep.subr.bf16.mxu0 0
    %805 = vmatpush1.bf16.msra.mxu0 0
    %806 = vmatprep.subr.bf16.mxu0 0
    %807 = vmatpush1.bf16.msra.mxu0 0
    %808 = vmatprep.subr.bf16.mxu0 0
    %809 = vmatpush1.bf16.msra.mxu0 0
    %810 = vmatprep.subr.bf16.mxu0 0
    %811 = vmatpush1.bf16.msra.mxu0 0
    %812 = vmatprep.subr.bf16.mxu0 0
    %813 = vmatpush1.bf16.msra.mxu0 0
    %814 = vmatprep.subr.bf16.mxu0 0
    %815 = vmatpush1.bf16.msra.mxu0 0
    %816 = vmatprep.subr.bf16.mxu0 0
    %817 = vmatpush1.bf16.msra.mxu0 0
    %818 = vmatprep.subr.bf16.mxu0 0
    %819 = vmatpush1.bf16.msra.mxu0 0
    %820 = vmatprep.mubr.bf16.mxu0 0
    %821 = vmatmul.mubr.bf16.gmra.mrb[0].mxu0 %v783
    %v822 = vpop.f32.mrb[0].mxu0
    %v823 = vadd.f32 0.0, %v822
    %v824 = vpop.f32.mrb[0].mxu0
    %v825 = vpop.f32.mrb[0].mxu0
    %v826 = vpop.f32.mrb[0].mxu0
    %827 = vdwg.mxu0
    %829 = vset.pattern.permute.xlu0 0
    %830 = vperm.xlu0 %829, %v773
    %v831 = vpop.permute.xlu0 %830
    %v833 = vadd.f32 %v831, %v823
    %s834 = scalar_lea.vmem %s9, 4
    %v835 = vld [vmem:[%s834] sm:$0xf]
    %v837 = vsel %vm170, %v835, 0
    %v840 = vsel %vm174, %v772, 0
    %842 = vmatprep.subr.bf16.mxu0 0
    %843 = vmatpush1.bf16.msra.mxu0 %v840
    %844 = vmatprep.subr.bf16.mxu0 0
    %845 = vmatpush1.bf16.msra.mxu0 0
    %846 = vmatprep.subr.bf16.mxu0 0
    %847 = vmatpush1.bf16.msra.mxu0 0
    %848 = vmatprep.subr.bf16.mxu0 0
    %849 = vmatpush1.bf16.msra.mxu0 0
    %850 = vmatprep.subr.bf16.mxu0 0
    %851 = vmatpush1.bf16.msra.mxu0 0
    %852 = vmatprep.subr.bf16.mxu0 0
    %853 = vmatpush1.bf16.msra.mxu0 0
    %854 = vmatprep.subr.bf16.mxu0 0
    %855 = vmatpush1.bf16.msra.mxu0 0
    %856 = vmatprep.subr.bf16.mxu0 0
    %857 = vmatpush1.bf16.msra.mxu0 0
    %858 = vmatprep.subr.bf16.mxu0 0
    %859 = vmatpush1.bf16.msra.mxu0 0
    %860 = vmatprep.subr.bf16.mxu0 0
    %861 = vmatpush1.bf16.msra.mxu0 0
    %862 = vmatprep.subr.bf16.mxu0 0
    %863 = vmatpush1.bf16.msra.mxu0 0
    %864 = vmatprep.subr.bf16.mxu0 0
    %865 = vmatpush1.bf16.msra.mxu0 0
    %866 = vmatprep.subr.bf16.mxu0 0
    %867 = vmatpush1.bf16.msra.mxu0 0
    %868 = vmatprep.subr.bf16.mxu0 0
    %869 = vmatpush1.bf16.msra.mxu0 0
    %870 = vmatprep.subr.bf16.mxu0 0
    %871 = vmatpush1.bf16.msra.mxu0 0
    %872 = vmatprep.subr.bf16.mxu0 0
    %873 = vmatpush1.bf16.msra.mxu0 0
    %874 = vmatprep.mubr.bf16.mxu0 0
    %875 = vmatmul.mubr.bf16.gmra.mrb[0].mxu0 %v837
    %v876 = vpop.f32.mrb[0].mxu0
    %v877 = vadd.f32 0.0, %v876
    %v878 = vpop.f32.mrb[0].mxu0
    %v879 = vpop.f32.mrb[0].mxu0
    %v880 = vpop.f32.mrb[0].mxu0
    %881 = vdwg.mxu0
    %v882 = vadd.f32 %v833, %v877
    %s883 = scalar_lea.vmem %s9, 8
    %v884 = vld [vmem:[%s883] sm:$0xf]
    %885 = vrot.lane.b32.xlu0 %v772, 127
    %v886 = vpop.permute.xlu0 %885
    %v888 = vsel %vm170, %v884, 0
    %v891 = vsel %vm174, %v886, 0
    %893 = vmatprep.subr.bf16.mxu0 0
    %894 = vmatpush1.bf16.msra.mxu0 %v891
    %895 = vmatprep.subr.bf16.mxu0 0
    %896 = vmatpush1.bf16.msra.mxu0 0
    %897 = vmatprep.subr.bf16.mxu0 0
    %898 = vmatpush1.bf16.msra.mxu0 0
    %899 = vmatprep.subr.bf16.mxu0 0
    %900 = vmatpush1.bf16.msra.mxu0 0
    %901 = vmatprep.subr.bf16.mxu0 0
    %902 = vmatpush1.bf16.msra.mxu0 0
    %903 = vmatprep.subr.bf16.mxu0 0
    %904 = vmatpush1.bf16.msra.mxu0 0
    %905 = vmatprep.subr.bf16.mxu0 0
    %906 = vmatpush1.bf16.msra.mxu0 0
    %907 = vmatprep.subr.bf16.mxu0 0
    %908 = vmatpush1.bf16.msra.mxu0 0
    %909 = vmatprep.subr.bf16.mxu0 0
    %910 = vmatpush1.bf16.msra.mxu0 0
    %911 = vmatprep.subr.bf16.mxu0 0
    %912 = vmatpush1.bf16.msra.mxu0 0
    %913 = vmatprep.subr.bf16.mxu0 0
    %914 = vmatpush1.bf16.msra.mxu0 0
    %915 = vmatprep.subr.bf16.mxu0 0
    %916 = vmatpush1.bf16.msra.mxu0 0
    %917 = vmatprep.subr.bf16.mxu0 0
    %918 = vmatpush1.bf16.msra.mxu0 0
    %919 = vmatprep.subr.bf16.mxu0 0
    %920 = vmatpush1.bf16.msra.mxu0 0
    %921 = vmatprep.subr.bf16.mxu0 0
    %922 = vmatpush1.bf16.msra.mxu0 0
    %923 = vmatprep.subr.bf16.mxu0 0
    %924 = vmatpush1.bf16.msra.mxu0 0
    %925 = vmatprep.mubr.bf16.mxu0 0
    %926 = vmatmul.mubr.bf16.gmra.mrb[0].mxu0 %v888
    %v927 = vpop.f32.mrb[0].mxu0
    %v928 = vadd.f32 0.0, %v927
    %v929 = vpop.f32.mrb[0].mxu0
    %v930 = vpop.f32.mrb[0].mxu0
    %v931 = vpop.f32.mrb[0].mxu0
    %932 = vdwg.mxu0
    %v933 = vadd.f32 %v882, %v928
    %s934 = sld [smem:[#allocation3 + $0x3]]
    %vm935 = vcmp.ge.f32.partialorder %v933, 0.0
    %v936 = vstv %s934
    %v937 = vmul.f32 %v936, %v933
    %v938 = vsel %vm935, %v933, %v937
    %939 = vst.msk [vmem:[#allocation2 + $0x8] sm:$0xff] %vm87, %v938
    %v940 = vld [vmem:[#allocation2] sm:$0xff]
    %v941 = vld [vmem:[#allocation2 + $0x8] sm:$0xff]
    %v942 = vpack.c.bf16 %v940, %v940
    %v943 = vpack.c.bf16 %v941, %v941
    %v944 = vld [vmem:[%s12] sm:$0xff]
    %v945 = vld [vmem:[%s11] sm:$0xf]
    %948 = vrot.lane.b32.xlu0 %v942, 1
    %v949 = vpop.permute.xlu0 %948
    %950 = vrot.lane.b32.xlu0 %v943, 1
    %v951 = vpop.permute.xlu0 %950
    %v952 = vsel %vm168, %v949, %v951
    %v954 = vsel %vm170, %v945, 0
    %v957 = vsel %vm174, %v952, 0
    %959 = vmatprep.subr.bf16.mxu0 0
    %960 = vmatpush1.bf16.msra.mxu0 %v957
    %961 = vmatprep.subr.bf16.mxu0 0
    %962 = vmatpush1.bf16.msra.mxu0 0
    %963 = vmatprep.subr.bf16.mxu0 0
    %964 = vmatpush1.bf16.msra.mxu0 0
    %965 = vmatprep.subr.bf16.mxu0 0
    %966 = vmatpush1.bf16.msra.mxu0 0
    %967 = vmatprep.subr.bf16.mxu0 0
    %968 = vmatpush1.bf16.msra.mxu0 0
    %969 = vmatprep.subr.bf16.mxu0 0
    %970 = vmatpush1.bf16.msra.mxu0 0
    %971 = vmatprep.subr.bf16.mxu0 0
    %972 = vmatpush1.bf16.msra.mxu0 0
    %973 = vmatprep.subr.bf16.mxu0 0
    %974 = vmatpush1.bf16.msra.mxu0 0
    %975 = vmatprep.subr.bf16.mxu0 0
    %976 = vmatpush1.bf16.msra.mxu0 0
    %977 = vmatprep.subr.bf16.mxu0 0
    %978 = vmatpush1.bf16.msra.mxu0 0
    %979 = vmatprep.subr.bf16.mxu0 0
    %980 = vmatpush1.bf16.msra.mxu0 0
    %981 = vmatprep.subr.bf16.mxu0 0
    %982 = vmatpush1.bf16.msra.mxu0 0
    %983 = vmatprep.subr.bf16.mxu0 0
    %984 = vmatpush1.bf16.msra.mxu0 0
    %985 = vmatprep.subr.bf16.mxu0 0
    %986 = vmatpush1.bf16.msra.mxu0 0
    %987 = vmatprep.subr.bf16.mxu0 0
    %988 = vmatpush1.bf16.msra.mxu0 0
    %989 = vmatprep.subr.bf16.mxu0 0
    %990 = vmatpush1.bf16.msra.mxu0 0
    %991 = vmatprep.mubr.bf16.mxu0 0
    %992 = vmatmul.mubr.bf16.gmra.mrb[0].mxu0 %v954
    %v993 = vpop.f32.mrb[0].mxu0
    %v994 = vadd.f32 0.0, %v993
    %v995 = vpop.f32.mrb[0].mxu0
    %v996 = vpop.f32.mrb[0].mxu0
    %v997 = vpop.f32.mrb[0].mxu0
    %998 = vdwg.mxu0
    %1000 = vset.pattern.permute.xlu0 0
    %1001 = vperm.xlu0 %1000, %v944
    %v1002 = vpop.permute.xlu0 %1001
    %v1004 = vadd.f32 %v1002, %v994
    %s1005 = scalar_lea.vmem %s11, 4
    %v1006 = vld [vmem:[%s1005] sm:$0xf]
    %v1008 = vsel %vm170, %v1006, 0
    %v1011 = vsel %vm174, %v943, 0
    %1013 = vmatprep.subr.bf16.mxu0 0
    %1014 = vmatpush1.bf16.msra.mxu0 %v1011
    %1015 = vmatprep.subr.bf16.mxu0 0
    %1016 = vmatpush1.bf16.msra.mxu0 0
    %1017 = vmatprep.subr.bf16.mxu0 0
    %1018 = vmatpush1.bf16.msra.mxu0 0
    %1019 = vmatprep.subr.bf16.mxu0 0
    %1020 = vmatpush1.bf16.msra.mxu0 0
    %1021 = vmatprep.subr.bf16.mxu0 0
    %1022 = vmatpush1.bf16.msra.mxu0 0
    %1023 = vmatprep.subr.bf16.mxu0 0
    %1024 = vmatpush1.bf16.msra.mxu0 0
    %1025 = vmatprep.subr.bf16.mxu0 0
    %1026 = vmatpush1.bf16.msra.mxu0 0
    %1027 = vmatprep.subr.bf16.mxu0 0
    %1028 = vmatpush1.bf16.msra.mxu0 0
    %1029 = vmatprep.subr.bf16.mxu0 0
    %1030 = vmatpush1.bf16.msra.mxu0 0
    %1031 = vmatprep.subr.bf16.mxu0 0
    %1032 = vmatpush1.bf16.msra.mxu0 0
    %1033 = vmatprep.subr.bf16.mxu0 0
    %1034 = vmatpush1.bf16.msra.mxu0 0
    %1035 = vmatprep.subr.bf16.mxu0 0
    %1036 = vmatpush1.bf16.msra.mxu0 0
    %1037 = vmatprep.subr.bf16.mxu0 0
    %1038 = vmatpush1.bf16.msra.mxu0 0
    %1039 = vmatprep.subr.bf16.mxu0 0
    %1040 = vmatpush1.bf16.msra.mxu0 0
    %1041 = vmatprep.subr.bf16.mxu0 0
    %1042 = vmatpush1.bf16.msra.mxu0 0
    %1043 = vmatprep.subr.bf16.mxu0 0
    %1044 = vmatpush1.bf16.msra.mxu0 0
    %1045 = vmatprep.mubr.bf16.mxu0 0
    %1046 = vmatmul.mubr.bf16.gmra.mrb[0].mxu0 %v1008
    %v1047 = vpop.f32.mrb[0].mxu0
    %v1048 = vadd.f32 0.0, %v1047
    %v1049 = vpop.f32.mrb[0].mxu0
    %v1050 = vpop.f32.mrb[0].mxu0
    %v1051 = vpop.f32.mrb[0].mxu0
    %1052 = vdwg.mxu0
    %v1053 = vadd.f32 %v1004, %v1048
    %s1054 = scalar_lea.vmem %s11, 8
    %v1055 = vld [vmem:[%s1054] sm:$0xf]
    %1056 = vrot.lane.b32.xlu0 %v943, 127
    %v1057 = vpop.permute.xlu0 %1056
    %v1059 = vsel %vm170, %v1055, 0
    %v1062 = vsel %vm174, %v1057, 0
    %1064 = vmatprep.subr.bf16.mxu0 0
    %1065 = vmatpush1.bf16.msra.mxu0 %v1062
    %1066 = vmatprep.subr.bf16.mxu0 0
    %1067 = vmatpush1.bf16.msra.mxu0 0
    %1068 = vmatprep.subr.bf16.mxu0 0
    %1069 = vmatpush1.bf16.msra.mxu0 0
    %1070 = vmatprep.subr.bf16.mxu0 0
    %1071 = vmatpush1.bf16.msra.mxu0 0
    %1072 = vmatprep.subr.bf16.mxu0 0
    %1073 = vmatpush1.bf16.msra.mxu0 0
    %1074 = vmatprep.subr.bf16.mxu0 0
    %1075 = vmatpush1.bf16.msra.mxu0 0
    %1076 = vmatprep.subr.bf16.mxu0 0
    %1077 = vmatpush1.bf16.msra.mxu0 0
    %1078 = vmatprep.subr.bf16.mxu0 0
    %1079 = vmatpush1.bf16.msra.mxu0 0
    %1080 = vmatprep.subr.bf16.mxu0 0
    %1081 = vmatpush1.bf16.msra.mxu0 0
    %1082 = vmatprep.subr.bf16.mxu0 0
    %1083 = vmatpush1.bf16.msra.mxu0 0
    %1084 = vmatprep.subr.bf16.mxu0 0
    %1085 = vmatpush1.bf16.msra.mxu0 0
    %1086 = vmatprep.subr.bf16.mxu0 0
    %1087 = vmatpush1.bf16.msra.mxu0 0
    %1088 = vmatprep.subr.bf16.mxu0 0
    %1089 = vmatpush1.bf16.msra.mxu0 0
    %1090 = vmatprep.subr.bf16.mxu0 0
    %1091 = vmatpush1.bf16.msra.mxu0 0
    %1092 = vmatprep.subr.bf16.mxu0 0
    %1093 = vmatpush1.bf16.msra.mxu0 0
    %1094 = vmatprep.subr.bf16.mxu0 0
    %1095 = vmatpush1.bf16.msra.mxu0 0
    %1096 = vmatprep.mubr.bf16.mxu0 0
    %1097 = vmatmul.mubr.bf16.gmra.mrb[0].mxu0 %v1059
    %v1098 = vpop.f32.mrb[0].mxu0
    %v1099 = vadd.f32 0.0, %v1098
    %v1100 = vpop.f32.mrb[0].mxu0
    %v1101 = vpop.f32.mrb[0].mxu0
    %v1102 = vpop.f32.mrb[0].mxu0
    %1103 = vdwg.mxu0
    %v1104 = vadd.f32 %v1053, %v1099
    %s1105 = sld [smem:[#allocation3 + $0x4]]
    %vm1106 = vcmp.ge.f32.partialorder %v1104, 0.0
    %v1107 = vstv %s1105
    %v1108 = vmul.f32 %v1107, %v1104
    %v1109 = vsel %vm1106, %v1104, %v1108
    %v1110 = vld [vmem:[%s20] sm:$0x3]
    %v1111 = vpack.c.bf16 %v1109, %v1109
    %v1112 = vld [vmem:[%s21] sm:$0xf]
    %1114 = vset.pattern.permute.xlu0 0
    %1115 = vperm.xlu0 %1114, %v1112
    %v1116 = vpop.permute.xlu0 %1115
    %v1119 = vsel %vm170, %v1110, 0
    %v1122 = vsel %vm174, %v1111, 0
    %1124 = vmatprep.subr.bf16.mxu0 0
    %1125 = vmatpush1.bf16.msra.mxu0 %v1122
    %1126 = vmatprep.subr.bf16.mxu0 0
    %1127 = vmatpush1.bf16.msra.mxu0 0
    %1128 = vmatprep.subr.bf16.mxu0 0
    %1129 = vmatpush1.bf16.msra.mxu0 0
    %1130 = vmatprep.subr.bf16.mxu0 0
    %1131 = vmatpush1.bf16.msra.mxu0 0
    %1132 = vmatprep.subr.bf16.mxu0 0
    %1133 = vmatpush1.bf16.msra.mxu0 0
    %1134 = vmatprep.subr.bf16.mxu0 0
    %1135 = vmatpush1.bf16.msra.mxu0 0
    %1136 = vmatprep.subr.bf16.mxu0 0
    %1137 = vmatpush1.bf16.msra.mxu0 0
    %1138 = vmatprep.subr.bf16.mxu0 0
    %1139 = vmatpush1.bf16.msra.mxu0 0
    %1140 = vmatprep.subr.bf16.mxu0 0
    %1141 = vmatpush1.bf16.msra.mxu0 0
    %1142 = vmatprep.subr.bf16.mxu0 0
    %1143 = vmatpush1.bf16.msra.mxu0 0
    %1144 = vmatprep.subr.bf16.mxu0 0
    %1145 = vmatpush1.bf16.msra.mxu0 0
    %1146 = vmatprep.subr.bf16.mxu0 0
    %1147 = vmatpush1.bf16.msra.mxu0 0
    %1148 = vmatprep.subr.bf16.mxu0 0
    %1149 = vmatpush1.bf16.msra.mxu0 0
    %1150 = vmatprep.subr.bf16.mxu0 0
    %1151 = vmatpush1.bf16.msra.mxu0 0
    %1152 = vmatprep.subr.bf16.mxu0 0
    %1153 = vmatpush1.bf16.msra.mxu0 0
    %1154 = vmatprep.subr.bf16.mxu0 0
    %1155 = vmatpush1.bf16.msra.mxu0 0
    %1156 = vmatprep.mubr.bf16.mxu0 0
    %1157 = vmatmul.mubr.bf16.gmra.mrb[0].mxu0 %v1119
    %v1158 = vpop.f32.mrb[0].mxu0
    %v1159 = vadd.f32 %v1116, %v1158
    %v1160 = vpop.f32.mrb[0].mxu0
    %v1161 = vpop.f32.mrb[0].mxu0
    %v1162 = vpop.f32.mrb[0].mxu0
    %1163 = vdwg.mxu0
    %v1164 = vxor.u32 %v1159, 2147483648
    %v1165 = vmul.f32 %v1164, 1.442695
    %v1166 = vpow.pop %v1165
    %v1167 = vadd.f32 %v1166, 1.0
    %v1168 = vrcp.pop %v1167
    %v1169 = vmul.f32 1.0, %v1168
    %vm1170 = vcmask 257024
    %1171 = vst.msk [vmem:[%s22] sm:$0xf] %vm1170, %v1169
    // Predicated region
    $region94: #{conv_tasnet_forward.5} parent=1 // pred_check
      _
    $region95: #{conv_tasnet_forward.5} parent=1 // pred_check_branch
      %1173 = sbr.rel (0) target = $region97
    $region96: #{conv_tasnet_forward.5} parent=1 // pred_region
      _
    $region97: #{conv_tasnet_forward.5} parent=1 // pred_fallthru
      _
    // Predicated region
    $region98: #{conv_tasnet_forward.5} parent=1 // pred_check
      _
    $region99: #{conv_tasnet_forward.5} parent=1 // pred_check_branch
      %1175 = sbr.rel (0) target = $region101
    $region100: #{conv_tasnet_forward.5} parent=1 // pred_region
      _
    $region101: #{conv_tasnet_forward.5} parent=1 // pred_fallthru
      _
    %1176 = vsyncpa [#allocation4], 1

// kernel: conv_tasnet_forward.7
$region0: #{conv_tasnet_forward.7}
  #allocation0 [shape = 'u32[]', space=smem, size = 0x4, offset = 0x4, fixed_abs, tag = 'smem constant byte address 0x4 - core index']
  #allocation1 [shape = 'u32[144,128]{1,0:T(1,128)}', space=vmem, size = 0x12000, scoped, tag = 'internal scratch']
  #allocation2 [shape = 'f32[16,288]{1,0:T(8,128)}', space=vmem, size = 0x6000, scoped, tag = 'scratch operand']
  %s0 = inlined_call_operand.vmem [shape: f32[8,32], index: 0, kind: input, shape index: {}]
  %s1 = inlined_call_operand.vmem [shape: f32[8,32], index: 1, kind: input, shape index: {}]
  %s2 = inlined_call_operand.vmem [shape: bf16[8,8], index: 2, kind: input, shape index: {}]
  %s3 = inlined_call_operand.vmem [shape: f32[8,1], index: 3, kind: input, shape index: {}]
  %s4 = inlined_call_operand.vmem [shape: bf16[3,16,8], index: 4, kind: input, shape index: {}]
  %s5 = inlined_call_operand.vmem [shape: f32[16,1], index: 5, kind: input, shape index: {}]
  %s6 = inlined_call_operand.vmem [shape: bf16[3,16,16], index: 6, kind: input, shape index: {}]
  %s7 = inlined_call_operand.vmem [shape: f32[16,1], index: 7, kind: input, shape index: {}]
  %s8 = inlined_call_operand.vmem [shape: bf16[3,16,16], index: 8, kind: input, shape index: {}]
  %s9 = inlined_call_operand.vmem [shape: f32[16,1], index: 9, kind: input, shape index: {}]
  %s10 = inlined_call_operand.vmem [shape: f32[3], index: 10, kind: input, shape index: {}]
  %s11 = inlined_call_operand.vmem [shape: bf16[16,16], index: 11, kind: input, shape index: {}]
  %s12 = inlined_call_operand.vmem [shape: f32[16,32], index: 12, kind: output, shape index: {}]
  %s13 = sld [smem:[#allocation0]]
  $region62: #{conv_tasnet_forward.7} parent=0
    _
  %s15 = ssub.s32 1, %s13
  %s16 = scalar_select 0, %s15, %s13
  $region1: #{conv_tasnet_forward.7} parent=0
    #allocation3 [shape = 'u8[512]{0}', space=smem, size = 0x200, scoped, tag = 'input window, operand 10, single buffered']
    #allocation4 [shape = 's32[1]{0}', space=sflag, size = 0x4, scoped, tag = 'scoped memory for conv_tasnet_forward.7']
    %17 = vsyncpa [#allocation4], 0
    // Predicated region
    $region2: #{conv_tasnet_forward.7} parent=1 // pred_check
      _
    $region3: #{conv_tasnet_forward.7} parent=1 // pred_check_branch
      %19 = sbr.rel (0) target = $region5
    $region4: #{conv_tasnet_forward.7} parent=1 // pred_region
      _
    $region5: #{conv_tasnet_forward.7} parent=1 // pred_fallthru
      _
    // Predicated region
    $region6: #{conv_tasnet_forward.7} parent=1 // pred_check
      _
    $region7: #{conv_tasnet_forward.7} parent=1 // pred_check_branch
      %21 = sbr.rel (0) target = $region9
    $region8: #{conv_tasnet_forward.7} parent=1 // pred_region
      _
    $region9: #{conv_tasnet_forward.7} parent=1 // pred_fallthru
      _
    // Predicated region
    $region10: #{conv_tasnet_forward.7} parent=1 // pred_check
      _
    $region11: #{conv_tasnet_forward.7} parent=1 // pred_check_branch
      %23 = sbr.rel (0) target = $region13
    $region12: #{conv_tasnet_forward.7} parent=1 // pred_region
      _
    $region13: #{conv_tasnet_forward.7} parent=1 // pred_fallthru
      _
    // Predicated region
    $region14: #{conv_tasnet_forward.7} parent=1 // pred_check
      _
    $region15: #{conv_tasnet_forward.7} parent=1 // pred_check_branch
      %25 = sbr.rel (0) target = $region17
    $region16: #{conv_tasnet_forward.7} parent=1 // pred_region
      _
    $region17: #{conv_tasnet_forward.7} parent=1 // pred_fallthru
      _
    // Predicated region
    $region18: #{conv_tasnet_forward.7} parent=1 // pred_check
      _
    $region19: #{conv_tasnet_forward.7} parent=1 // pred_check_branch
      %27 = sbr.rel (0) target = $region21
    $region20: #{conv_tasnet_forward.7} parent=1 // pred_region
      _
    $region21: #{conv_tasnet_forward.7} parent=1 // pred_fallthru
      _
    // Predicated region
    $region22: #{conv_tasnet_forward.7} parent=1 // pred_check
      _
    $region23: #{conv_tasnet_forward.7} parent=1 // pred_check_branch
      %29 = sbr.rel (0) target = $region25
    $region24: #{conv_tasnet_forward.7} parent=1 // pred_region
      _
    $region25: #{conv_tasnet_forward.7} parent=1 // pred_fallthru
      _
    // Predicated region
    $region26: #{conv_tasnet_forward.7} parent=1 // pred_check
      _
    $region27: #{conv_tasnet_forward.7} parent=1 // pred_check_branch
      %31 = sbr.rel (0) target = $region29
    $region28: #{conv_tasnet_forward.7} parent=1 // pred_region
      _
    $region29: #{conv_tasnet_forward.7} parent=1 // pred_fallthru
      _
    // Predicated region
    $region30: #{conv_tasnet_forward.7} parent=1 // pred_check
      _
    $region31: #{conv_tasnet_forward.7} parent=1 // pred_check_branch
      %33 = sbr.rel (0) target = $region33
    $region32: #{conv_tasnet_forward.7} parent=1 // pred_region
      _
    $region33: #{conv_tasnet_forward.7} parent=1 // pred_fallthru
      _
    // Predicated region
    $region34: #{conv_tasnet_forward.7} parent=1 // pred_check
      _
    $region35: #{conv_tasnet_forward.7} parent=1 // pred_check_branch
      %35 = sbr.rel (0) target = $region37
    $region36: #{conv_tasnet_forward.7} parent=1 // pred_region
      _
    $region37: #{conv_tasnet_forward.7} parent=1 // pred_fallthru
      _
    // Predicated region
    $region38: #{conv_tasnet_forward.7} parent=1 // pred_check
      _
    $region39: #{conv_tasnet_forward.7} parent=1 // pred_check_branch
      %37 = sbr.rel (0) target = $region41
    $region40: #{conv_tasnet_forward.7} parent=1 // pred_region
      _
    $region41: #{conv_tasnet_forward.7} parent=1 // pred_fallthru
      _
    // Predicated region
    $region42: #{conv_tasnet_forward.7} parent=1 // pred_check
      _
    $region43: #{conv_tasnet_forward.7} parent=1 // pred_check_branch
      %39 = sbr.rel (0) target = $region45
    $region44: #{conv_tasnet_forward.7} parent=1 // pred_region
      %s41 = ssub.s32 16, 16
      %42 = vsyncadd [#allocation4], %s41
      %s44 = sshll.u32 %s10, 4
      %s45 = int_to_ptr.vmem [resolvable:$true] %s44
      %47 = dma.vmem_to_smem %s45, 16, [#allocation3], [#allocation4]
    $region45: #{conv_tasnet_forward.7} parent=1 // pred_fallthru
      _
    // Predicated region
    $region46: #{conv_tasnet_forward.7} parent=1 // pred_check
      _
    $region47: #{conv_tasnet_forward.7} parent=1 // pred_check_branch
      %49 = sbr.rel (0) target = $region49
    $region48: #{conv_tasnet_forward.7} parent=1 // pred_region
      _
    $region49: #{conv_tasnet_forward.7} parent=1 // pred_fallthru
      _
    // Predicated region
    $region50: #{conv_tasnet_forward.7} parent=1 // pred_check
      _
    $region51: #{conv_tasnet_forward.7} parent=1 // pred_check_branch
      %51 = sbr.rel (0) target = $region53
    $region52: #{conv_tasnet_forward.7} parent=1 // pred_region
      %52 = dma.done [#allocation4], 16
    $region53: #{conv_tasnet_forward.7} parent=1 // pred_fallthru
      _
    %53 = sfence
    %v55 = vld [vmem:[%s2] sm:$0xf]
    %v56 = vld [vmem:[%s0] sm:$0xff]
    %v57 = vpack.c.bf16 %v56, %v56
    %v58 = vld [vmem:[%s3] sm:$0xff]
    %60 = vset.pattern.permute.xlu0 0
    %61 = vperm.xlu0 %60, %v58
    %v62 = vpop.permute.xlu0 %61
    %vm64 = vcmask 64512
    %v66 = vsel %vm64, %v55, 0
    %vm68 = vcmask 1043456
    %v70 = vsel %vm68, %v57, 0
    %72 = vmatprep.subr.bf16.mxu0 0
    %73 = vmatpush1.bf16.msra.mxu0 %v70
    %74 = vmatprep.subr.bf16.mxu0 0
    %75 = vmatpush1.bf16.msra.mxu0 0
    %76 = vmatprep.subr.bf16.mxu0 0
    %77 = vmatpush1.bf16.msra.mxu0 0
    %78 = vmatprep.subr.bf16.mxu0 0
    %79 = vmatpush1.bf16.msra.mxu0 0
    %80 = vmatprep.subr.bf16.mxu0 0
    %81 = vmatpush1.bf16.msra.mxu0 0
    %82 = vmatprep.subr.bf16.mxu0 0
    %83 = vmatpush1.bf16.msra.mxu0 0
    %84 = vmatprep.subr.bf16.mxu0 0
    %85 = vmatpush1.bf16.msra.mxu0 0
    %86 = vmatprep.subr.bf16.mxu0 0
    %87 = vmatpush1.bf16.msra.mxu0 0
    %88 = vmatprep.subr.bf16.mxu0 0
    %89 = vmatpush1.bf16.msra.mxu0 0
    %90 = vmatprep.subr.bf16.mxu0 0
    %91 = vmatpush1.bf16.msra.mxu0 0
    %92 = vmatprep.subr.bf16.mxu0 0
    %93 = vmatpush1.bf16.msra.mxu0 0
    %94 = vmatprep.subr.bf16.mxu0 0
    %95 = vmatpush1.bf16.msra.mxu0 0
    %96 = vmatprep.subr.bf16.mxu0 0
    %97 = vmatpush1.bf16.msra.mxu0 0
    %98 = vmatprep.subr.bf16.mxu0 0
    %99 = vmatpush1.bf16.msra.mxu0 0
    %100 = vmatprep.subr.bf16.mxu0 0
    %101 = vmatpush1.bf16.msra.mxu0 0
    %102 = vmatprep.subr.bf16.mxu0 0
    %103 = vmatpush1.bf16.msra.mxu0 0
    %104 = vmatprep.mubr.bf16.mxu0 0
    %105 = vmatmul.mubr.bf16.gmra.mrb[0].mxu0 %v66
    %v106 = vpop.f32.mrb[0].mxu0
    %v107 = vadd.f32 %v62, %v106
    %v108 = vpop.f32.mrb[0].mxu0
    %v109 = vpop.f32.mrb[0].mxu0
    %v110 = vpop.f32.mrb[0].mxu0
    %111 = vdwg.mxu0
    %v112 = vld [vmem:[%s1] sm:$0xff]
    %v113 = vmax.f32 %v107, 0.0
    %v114 = vmul.f32 %v112, %v113
    %115 = vst [vmem:[#allocation2] sm:$0xff] 0.0
    %116 = vst [vmem:[#allocation2 + $0x8] sm:$0xff] 0.0
    %vm117 = vcmask 261120
    %118 = vst.msk [vmem:[#allocation2 + $0x10] sm:$0xff] %vm117, 0.0
    %119 = vst [vmem:[#allocation2 + $0x18] sm:$0xff] 0.0
    %120 = vst [vmem:[#allocation2 + $0x20] sm:$0xff] 0.0
    %121 = vst.msk [vmem:[#allocation2 + $0x28] sm:$0xff] %vm117, 0.0
    %122 = vst.msk [vmem:[#allocation2 + $0x8] sm:$0xff] %vm117, %v114
    %v123 = vld [vmem:[#allocation2] sm:$0xff]
    %v124 = vld [vmem:[#allocation2 + $0x8] sm:$0xff]
    %v125 = vpack.c.bf16 %v123, %v123
    %v126 = vpack.c.bf16 %v124, %v124
    %v127 = vld [vmem:[%s5] sm:$0xff]
    %v128 = vld [vmem:[%s5 + $0x8] sm:$0xff]
    %v129 = vld [vmem:[%s4] sm:$0xf]
    %v130 = vld [vmem:[%s4 + $0x4] sm:$0xf]
    %v133 = vunpack.c.l.b16 %v129
    %v134 = vunpack.c.l.b16 %v130
    %v135 = vpack.c.b16 %v134, %v133
    %138 = vrot.lane.b32.xlu0 %v125, 1
    %v139 = vpop.permute.xlu0 %138
    %140 = vrot.lane.b32.xlu0 %v126, 1
    %v141 = vpop.permute.xlu0 %140
    %vm142 = vcmask 7168
    %v143 = vsel %vm142, %v139, %v141
    %v145 = vsel %vm64, %v135, 0
    %v148 = vsel %vm68, %v143, 0
    %150 = vmatprep.subr.bf16.mxu0 0
    %151 = vmatpush1.bf16.msra.mxu0 %v148
    %152 = vmatprep.subr.bf16.mxu0 0
    %153 = vmatpush1.bf16.msra.mxu0 0
    %154 = vmatprep.subr.bf16.mxu0 0
    %155 = vmatpush1.bf16.msra.mxu0 0
    %156 = vmatprep.subr.bf16.mxu0 0
    %157 = vmatpush1.bf16.msra.mxu0 0
    %158 = vmatprep.subr.bf16.mxu0 0
    %159 = vmatpush1.bf16.msra.mxu0 0
    %160 = vmatprep.subr.bf16.mxu0 0
    %161 = vmatpush1.bf16.msra.mxu0 0
    %162 = vmatprep.subr.bf16.mxu0 0
    %163 = vmatpush1.bf16.msra.mxu0 0
    %164 = vmatprep.subr.bf16.mxu0 0
    %165 = vmatpush1.bf16.msra.mxu0 0
    %166 = vmatprep.subr.bf16.mxu0 0
    %167 = vmatpush1.bf16.msra.mxu0 0
    %168 = vmatprep.subr.bf16.mxu0 0
    %169 = vmatpush1.bf16.msra.mxu0 0
    %170 = vmatprep.subr.bf16.mxu0 0
    %171 = vmatpush1.bf16.msra.mxu0 0
    %172 = vmatprep.subr.bf16.mxu0 0
    %173 = vmatpush1.bf16.msra.mxu0 0
    %174 = vmatprep.subr.bf16.mxu0 0
    %175 = vmatpush1.bf16.msra.mxu0 0
    %176 = vmatprep.subr.bf16.mxu0 0
    %177 = vmatpush1.bf16.msra.mxu0 0
    %178 = vmatprep.subr.bf16.mxu0 0
    %179 = vmatpush1.bf16.msra.mxu0 0
    %180 = vmatprep.subr.bf16.mxu0 0
    %181 = vmatpush1.bf16.msra.mxu0 0
    %182 = vmatprep.mubr.bf16.mxu0 0
    %183 = vmatmul.mubr.bf16.gmra.mrb[0].mxu0 %v145
    %v184 = vpop.f32.mrb[0].mxu0
    %v185 = vadd.f32 0.0, %v184
    %v186 = vpop.f32.mrb[0].mxu0
    %v187 = vpop.f32.mrb[0].mxu0
    %v188 = vadd.f32 0.0, %v187
    %v189 = vpop.f32.mrb[0].mxu0
    %190 = vdwg.mxu0
    %192 = vset.pattern.permute.xlu0 0
    %193 = vperm.xlu0 %192, %v127
    %v194 = vpop.permute.xlu0 %193
    %197 = vset.pattern.permute.xlu0 0
    %198 = vperm.xlu0 %197, %v128
    %v199 = vpop.permute.xlu0 %198
    %v201 = vadd.f32 %v194, %v185
    %v202 = vadd.f32 %v199, %v188
    %s203 = scalar_lea.vmem %s4, 8
    %v204 = vld [vmem:[%s203] sm:$0xf]
    %v205 = vld [vmem:[%s203 + $0x4] sm:$0xf]
    %v208 = vunpack.c.l.b16 %v204
    %v209 = vunpack.c.l.b16 %v205
    %v210 = vpack.c.b16 %v209, %v208
    %v212 = vsel %vm64, %v210, 0
    %v215 = vsel %vm68, %v126, 0
    %217 = vmatprep.subr.bf16.mxu0 0
    %218 = vmatpush1.bf16.msra.mxu0 %v215
    %219 = vmatprep.subr.bf16.mxu0 0
    %220 = vmatpush1.bf16.msra.mxu0 0
    %221 = vmatprep.subr.bf16.mxu0 0
    %222 = vmatpush1.bf16.msra.mxu0 0
    %223 = vmatprep.subr.bf16.mxu0 0
    %224 = vmatpush1.bf16.msra.mxu0 0
    %225 = vmatprep.subr.bf16.mxu0 0
    %226 = vmatpush1.bf16.msra.mxu0 0
    %227 = vmatprep.subr.bf16.mxu0 0
    %228 = vmatpush1.bf16.msra.mxu0 0
    %229 = vmatprep.subr.bf16.mxu0 0
    %230 = vmatpush1.bf16.msra.mxu0 0
    %231 = vmatprep.subr.bf16.mxu0 0
    %232 = vmatpush1.bf16.msra.mxu0 0
    %233 = vmatprep.subr.bf16.mxu0 0
    %234 = vmatpush1.bf16.msra.mxu0 0
    %235 = vmatprep.subr.bf16.mxu0 0
    %236 = vmatpush1.bf16.msra.mxu0 0
    %237 = vmatprep.subr.bf16.mxu0 0
    %238 = vmatpush1.bf16.msra.mxu0 0
    %239 = vmatprep.subr.bf16.mxu0 0
    %240 = vmatpush1.bf16.msra.mxu0 0
    %241 = vmatprep.subr.bf16.mxu0 0
    %242 = vmatpush1.bf16.msra.mxu0 0
    %243 = vmatprep.subr.bf16.mxu0 0
    %244 = vmatpush1.bf16.msra.mxu0 0
    %245 = vmatprep.subr.bf16.mxu0 0
    %246 = vmatpush1.bf16.msra.mxu0 0
    %247 = vmatprep.subr.bf16.mxu0 0
    %248 = vmatpush1.bf16.msra.mxu0 0
    %249 = vmatprep.mubr.bf16.mxu0 0
    %250 = vmatmul.mubr.bf16.gmra.mrb[0].mxu0 %v212
    %v251 = vpop.f32.mrb[0].mxu0
    %v252 = vadd.f32 0.0, %v251
    %v253 = vpop.f32.mrb[0].mxu0
    %v254 = vpop.f32.mrb[0].mxu0
    %v255 = vadd.f32 0.0, %v254
    %v256 = vpop.f32.mrb[0].mxu0
    %257 = vdwg.mxu0
    %v258 = vadd.f32 %v201, %v252
    %v259 = vadd.f32 %v202, %v255
    %s260 = scalar_lea.vmem %s4, 16
    %v261 = vld [vmem:[%s260] sm:$0xf]
    %v262 = vld [vmem:[%s260 + $0x4] sm:$0xf]
    %v265 = vunpack.c.l.b16 %v261
    %v266 = vunpack.c.l.b16 %v262
    %v267 = vpack.c.b16 %v266, %v265
    %268 = vrot.lane.b32.xlu0 %v126, 127
    %v269 = vpop.permute.xlu0 %268
    %v271 = vsel %vm64, %v267, 0
    %v274 = vsel %vm68, %v269, 0
    %276 = vmatprep.subr.bf16.mxu0 0
    %277 = vmatpush1.bf16.msra.mxu0 %v274
    %278 = vmatprep.subr.bf16.mxu0 0
    %279 = vmatpush1.bf16.msra.mxu0 0
    %280 = vmatprep.subr.bf16.mxu0 0
    %281 = vmatpush1.bf16.msra.mxu0 0
    %282 = vmatprep.subr.bf16.mxu0 0
    %283 = vmatpush1.bf16.msra.mxu0 0
    %284 = vmatprep.subr.bf16.mxu0 0
    %285 = vmatpush1.bf16.msra.mxu0 0
    %286 = vmatprep.subr.bf16.mxu0 0
    %287 = vmatpush1.bf16.msra.mxu0 0
    %288 = vmatprep.subr.bf16.mxu0 0
    %289 = vmatpush1.bf16.msra.mxu0 0
    %290 = vmatprep.subr.bf16.mxu0 0
    %291 = vmatpush1.bf16.msra.mxu0 0
    %292 = vmatprep.subr.bf16.mxu0 0
    %293 = vmatpush1.bf16.msra.mxu0 0
    %294 = vmatprep.subr.bf16.mxu0 0
    %295 = vmatpush1.bf16.msra.mxu0 0
    %296 = vmatprep.subr.bf16.mxu0 0
    %297 = vmatpush1.bf16.msra.mxu0 0
    %298 = vmatprep.subr.bf16.mxu0 0
    %299 = vmatpush1.bf16.msra.mxu0 0
    %300 = vmatprep.subr.bf16.mxu0 0
    %301 = vmatpush1.bf16.msra.mxu0 0
    %302 = vmatprep.subr.bf16.mxu0 0
    %303 = vmatpush1.bf16.msra.mxu0 0
    %304 = vmatprep.subr.bf16.mxu0 0
    %305 = vmatpush1.bf16.msra.mxu0 0
    %306 = vmatprep.subr.bf16.mxu0 0
    %307 = vmatpush1.bf16.msra.mxu0 0
    %308 = vmatprep.mubr.bf16.mxu0 0
    %309 = vmatmul.mubr.bf16.gmra.mrb[0].mxu0 %v271
    %v310 = vpop.f32.mrb[0].mxu0
    %v311 = vadd.f32 0.0, %v310
    %v312 = vpop.f32.mrb[0].mxu0
    %v313 = vpop.f32.mrb[0].mxu0
    %v314 = vadd.f32 0.0, %v313
    %v315 = vpop.f32.mrb[0].mxu0
    %316 = vdwg.mxu0
    %v317 = vadd.f32 %v258, %v311
    %v318 = vadd.f32 %v259, %v314
    %s319 = sld [smem:[#allocation3]]
    %vm320 = vcmp.ge.f32.partialorder %v317, 0.0
    %vm321 = vcmp.ge.f32.partialorder %v318, 0.0
    %v322 = vstv %s319
    %v323 = vmul.f32 %v322, %v317
    %v324 = vmul.f32 %v322, %v318
    %v325 = vsel %vm320, %v317, %v323
    %v326 = vsel %vm321, %v318, %v324
    %327 = vst.msk [vmem:[#allocation2 + $0x8] sm:$0xff] %vm117, %v325
    %328 = vst.msk [vmem:[#allocation2 + $0x20] sm:$0xff] %vm117, %v326
    %v329 = vld [vmem:[#allocation2] sm:$0xff]
    %v330 = vld [vmem:[#allocation2 + $0x8] sm:$0xff]
    %v331 = vld [vmem:[#allocation2 + $0x18] sm:$0xff]
    %v332 = vld [vmem:[#allocation2 + $0x20] sm:$0xff]
    %v333 = vpack.c.bf16 %v331, %v329
    %v334 = vpack.c.bf16 %v332, %v330
    %v335 = vld [vmem:[%s7] sm:$0xff]
    %v336 = vld [vmem:[%s7 + $0x8] sm:$0xff]
    %v337 = vld [vmem:[%s6] sm:$0xf]
    %v338 = vld [vmem:[%s6 + $0x4] sm:$0xf]
    %v341 = vunpack.c.l.b16 %v337
    %v342 = vunpack.c.l.b16 %v338
    %v343 = vpack.c.b16 %v342, %v341
    %346 = vrot.lane.b32.xlu0 %v333, 1
    %v347 = vpop.permute.xlu0 %346
    %348 = vrot.lane.b32.xlu0 %v334, 1
    %v349 = vpop.permute.xlu0 %348
    %v350 = vsel %vm142, %v347, %v349
    %vm352 = vcmask 130048
    %v354 = vsel %vm352, %v343, 0
    %356 = vmatprep.subr.bf16.mxu0 0
    %357 = vmatpush1.bf16.msra.mxu0 %v350
    %358 = vmatprep.subr.bf16.mxu0 0
    %359 = vmatpush1.bf16.msra.mxu0 0
    %360 = vmatprep.subr.bf16.mxu0 0
    %361 = vmatpush1.bf16.msra.mxu0 0
    %362 = vmatprep.subr.bf16.mxu0 0
    %363 = vmatpush1.bf16.msra.mxu0 0
    %364 = vmatprep.subr.bf16.mxu0 0
    %365 = vmatpush1.bf16.msra.mxu0 0
    %366 = vmatprep.subr.bf16.mxu0 0
    %367 = vmatpush1.bf16.msra.mxu0 0
    %368 = vmatprep.subr.bf16.mxu0 0
    %369 = vmatpush1.bf16.msra.mxu0 0
    %370 = vmatprep.subr.bf16.mxu0 0
    %371 = vmatpush1.bf16.msra.mxu0 0
    %372 = vmatprep.subr.bf16.mxu0 0
    %373 = vmatpush1.bf16.msra.mxu0 0
    %374 = vmatprep.subr.bf16.mxu0 0
    %375 = vmatpush1.bf16.msra.mxu0 0
    %376 = vmatprep.subr.bf16.mxu0 0
    %377 = vmatpush1.bf16.msra.mxu0 0
    %378 = vmatprep.subr.bf16.mxu0 0
    %379 = vmatpush1.bf16.msra.mxu0 0
    %380 = vmatprep.subr.bf16.mxu0 0
    %381 = vmatpush1.bf16.msra.mxu0 0
    %382 = vmatprep.subr.bf16.mxu0 0
    %383 = vmatpush1.bf16.msra.mxu0 0
    %384 = vmatprep.subr.bf16.mxu0 0
    %385 = vmatpush1.bf16.msra.mxu0 0
    %386 = vmatprep.subr.bf16.mxu0 0
    %387 = vmatpush1.bf16.msra.mxu0 0
    %388 = vmatprep.mubr.bf16.mxu0 0
    %389 = vmatmul.mubr.bf16.gmra.mrb[0].mxu0 %v354
    %v390 = vpop.f32.mrb[0].mxu0
    %v391 = vadd.f32 0.0, %v390
    %v392 = vpop.f32.mrb[0].mxu0
    %v393 = vpop.f32.mrb[0].mxu0
    %v394 = vadd.f32 0.0, %v393
    %v395 = vpop.f32.mrb[0].mxu0
    %396 = vdwg.mxu0
    %398 = vset.pattern.permute.xlu0 0
    %399 = vperm.xlu0 %398, %v335
    %v400 = vpop.permute.xlu0 %399
    %403 = vset.pattern.permute.xlu0 0
    %404 = vperm.xlu0 %403, %v336
    %v405 = vpop.permute.xlu0 %404
    %v407 = vadd.f32 %v400, %v391
    %v408 = vadd.f32 %v405, %v394
    %s409 = scalar_lea.vmem %s6, 8
    %v410 = vld [vmem:[%s409] sm:$0xf]
    %v411 = vld [vmem:[%s409 + $0x4] sm:$0xf]
    %v414 = vunpack.c.l.b16 %v410
    %v415 = vunpack.c.l.b16 %v411
    %v416 = vpack.c.b16 %v415, %v414
    %v418 = vsel %vm352, %v416, 0
    %420 = vmatprep.subr.bf16.mxu0 0
    %421 = vmatpush1.bf16.msra.mxu0 %v334
    %422 = vmatprep.subr.bf16.mxu0 0
    %423 = vmatpush1.bf16.msra.mxu0 0
    %424 = vmatprep.subr.bf16.mxu0 0
    %425 = vmatpush1.bf16.msra.mxu0 0
    %426 = vmatprep.subr.bf16.mxu0 0
    %427 = vmatpush1.bf16.msra.mxu0 0
    %428 = vmatprep.subr.bf16.mxu0 0
    %429 = vmatpush1.bf16.msra.mxu0 0
    %430 = vmatprep.subr.bf16.mxu0 0
    %431 = vmatpush1.bf16.msra.mxu0 0
    %432 = vmatprep.subr.bf16.mxu0 0
    %433 = vmatpush1.bf16.msra.mxu0 0
    %434 = vmatprep.subr.bf16.mxu0 0
    %435 = vmatpush1.bf16.msra.mxu0 0
    %436 = vmatprep.subr.bf16.mxu0 0
    %437 = vmatpush1.bf16.msra.mxu0 0
    %438 = vmatprep.subr.bf16.mxu0 0
    %439 = vmatpush1.bf16.msra.mxu0 0
    %440 = vmatprep.subr.bf16.mxu0 0
    %441 = vmatpush1.bf16.msra.mxu0 0
    %442 = vmatprep.subr.bf16.mxu0 0
    %443 = vmatpush1.bf16.msra.mxu0 0
    %444 = vmatprep.subr.bf16.mxu0 0
    %445 = vmatpush1.bf16.msra.mxu0 0
    %446 = vmatprep.subr.bf16.mxu0 0
    %447 = vmatpush1.bf16.msra.mxu0 0
    %448 = vmatprep.subr.bf16.mxu0 0
    %449 = vmatpush1.bf16.msra.mxu0 0
    %450 = vmatprep.subr.bf16.mxu0 0
    %451 = vmatpush1.bf16.msra.mxu0 0
    %452 = vmatprep.mubr.bf16.mxu0 0
    %453 = vmatmul.mubr.bf16.gmra.mrb[0].mxu0 %v418
    %v454 = vpop.f32.mrb[0].mxu0
    %v455 = vadd.f32 0.0, %v454
    %v456 = vpop.f32.mrb[0].mxu0
    %v457 = vpop.f32.mrb[0].mxu0
    %v458 = vadd.f32 0.0, %v457
    %v459 = vpop.f32.mrb[0].mxu0
    %460 = vdwg.mxu0
    %v461 = vadd.f32 %v407, %v455
    %v462 = vadd.f32 %v408, %v458
    %s463 = scalar_lea.vmem %s6, 16
    %v464 = vld [vmem:[%s463] sm:$0xf]
    %v465 = vld [vmem:[%s463 + $0x4] sm:$0xf]
    %v468 = vunpack.c.l.b16 %v464
    %v469 = vunpack.c.l.b16 %v465
    %v470 = vpack.c.b16 %v469, %v468
    %471 = vrot.lane.b32.xlu0 %v334, 127
    %v472 = vpop.permute.xlu0 %471
    %v475 = vsel %vm352, %v470, 0
    %477 = vmatprep.subr.bf16.mxu0 0
    %478 = vmatpush1.bf16.msra.mxu0 %v472
    %479 = vmatprep.subr.bf16.mxu0 0
    %480 = vmatpush1.bf16.msra.mxu0 0
    %481 = vmatprep.subr.bf16.mxu0 0
    %482 = vmatpush1.bf16.msra.mxu0 0
    %483 = vmatprep.subr.bf16.mxu0 0
    %484 = vmatpush1.bf16.msra.mxu0 0
    %485 = vmatprep.subr.bf16.mxu0 0
    %486 = vmatpush1.bf16.msra.mxu0 0
    %487 = vmatprep.subr.bf16.mxu0 0
    %488 = vmatpush1.bf16.msra.mxu0 0
    %489 = vmatprep.subr.bf16.mxu0 0
    %490 = vmatpush1.bf16.msra.mxu0 0
    %491 = vmatprep.subr.bf16.mxu0 0
    %492 = vmatpush1.bf16.msra.mxu0 0
    %493 = vmatprep.subr.bf16.mxu0 0
    %494 = vmatpush1.bf16.msra.mxu0 0
    %495 = vmatprep.subr.bf16.mxu0 0
    %496 = vmatpush1.bf16.msra.mxu0 0
    %497 = vmatprep.subr.bf16.mxu0 0
    %498 = vmatpush1.bf16.msra.mxu0 0
    %499 = vmatprep.subr.bf16.mxu0 0
    %500 = vmatpush1.bf16.msra.mxu0 0
    %501 = vmatprep.subr.bf16.mxu0 0
    %502 = vmatpush1.bf16.msra.mxu0 0
    %503 = vmatprep.subr.bf16.mxu0 0
    %504 = vmatpush1.bf16.msra.mxu0 0
    %505 = vmatprep.subr.bf16.mxu0 0
    %506 = vmatpush1.bf16.msra.mxu0 0
    %507 = vmatprep.subr.bf16.mxu0 0
    %508 = vmatpush1.bf16.msra.mxu0 0
    %509 = vmatprep.mubr.bf16.mxu0 0
    %510 = vmatmul.mubr.bf16.gmra.mrb[0].mxu0 %v475
    %v511 = vpop.f32.mrb[0].mxu0
    %v512 = vadd.f32 0.0, %v511
    %v513 = vpop.f32.mrb[0].mxu0
    %v514 = vpop.f32.mrb[0].mxu0
    %v515 = vadd.f32 0.0, %v514
    %v516 = vpop.f32.mrb[0].mxu0
    %517 = vdwg.mxu0
    %v518 = vadd.f32 %v461, %v512
    %v519 = vadd.f32 %v462, %v515
    %s520 = sld [smem:[#allocation3 + $0x1]]
    %vm521 = vcmp.ge.f32.partialorder %v518, 0.0
    %vm522 = vcmp.ge.f32.partialorder %v519, 0.0
    %v523 = vstv %s520
    %v524 = vmul.f32 %v523, %v518
    %v525 = vmul.f32 %v523, %v519
    %v526 = vsel %vm521, %v518, %v524
    %v527 = vsel %vm522, %v519, %v525
    %528 = vst.msk [vmem:[#allocation2 + $0x8] sm:$0xff] %vm117, %v526
    %529 = vst.msk [vmem:[#allocation2 + $0x20] sm:$0xff] %vm117, %v527
    %v530 = vld [vmem:[#allocation2] sm:$0xff]
    %v531 = vld [vmem:[#allocation2 + $0x8] sm:$0xff]
    %v532 = vld [vmem:[#allocation2 + $0x18] sm:$0xff]
    %v533 = vld [vmem:[#allocation2 + $0x20] sm:$0xff]
    %v534 = vpack.c.bf16 %v532, %v530
    %v535 = vpack.c.bf16 %v533, %v531
    %v536 = vld [vmem:[%s9] sm:$0xff]
    %v537 = vld [vmem:[%s9 + $0x8] sm:$0xff]
    %v538 = vld [vmem:[%s8] sm:$0xf]
    %v539 = vld [vmem:[%s8 + $0x4] sm:$0xf]
    %v542 = vunpack.c.l.b16 %v538
    %v543 = vunpack.c.l.b16 %v539
    %v544 = vpack.c.b16 %v543, %v542
    %547 = vrot.lane.b32.xlu0 %v534, 1
    %v548 = vpop.permute.xlu0 %547
    %549 = vrot.lane.b32.xlu0 %v535, 1
    %v550 = vpop.permute.xlu0 %549
    %v551 = vsel %vm142, %v548, %v550
    %v554 = vsel %vm352, %v544, 0
    %556 = vmatprep.subr.bf16.mxu0 0
    %557 = vmatpush1.bf16.msra.mxu0 %v551
    %558 = vmatprep.subr.bf16.mxu0 0
    %559 = vmatpush1.bf16.msra.mxu0 0
    %560 = vmatprep.subr.bf16.mxu0 0
    %561 = vmatpush1.bf16.msra.mxu0 0
    %562 = vmatprep.subr.bf16.mxu0 0
    %563 = vmatpush1.bf16.msra.mxu0 0
    %564 = vmatprep.subr.bf16.mxu0 0
    %565 = vmatpush1.bf16.msra.mxu0 0
    %566 = vmatprep.subr.bf16.mxu0 0
    %567 = vmatpush1.bf16.msra.mxu0 0
    %568 = vmatprep.subr.bf16.mxu0 0
    %569 = vmatpush1.bf16.msra.mxu0 0
    %570 = vmatprep.subr.bf16.mxu0 0
    %571 = vmatpush1.bf16.msra.mxu0 0
    %572 = vmatprep.subr.bf16.mxu0 0
    %573 = vmatpush1.bf16.msra.mxu0 0
    %574 = vmatprep.subr.bf16.mxu0 0
    %575 = vmatpush1.bf16.msra.mxu0 0
    %576 = vmatprep.subr.bf16.mxu0 0
    %577 = vmatpush1.bf16.msra.mxu0 0
    %578 = vmatprep.subr.bf16.mxu0 0
    %579 = vmatpush1.bf16.msra.mxu0 0
    %580 = vmatprep.subr.bf16.mxu0 0
    %581 = vmatpush1.bf16.msra.mxu0 0
    %582 = vmatprep.subr.bf16.mxu0 0
    %583 = vmatpush1.bf16.msra.mxu0 0
    %584 = vmatprep.subr.bf16.mxu0 0
    %585 = vmatpush1.bf16.msra.mxu0 0
    %586 = vmatprep.subr.bf16.mxu0 0
    %587 = vmatpush1.bf16.msra.mxu0 0
    %588 = vmatprep.mubr.bf16.mxu0 0
    %589 = vmatmul.mubr.bf16.gmra.mrb[0].mxu0 %v554
    %v590 = vpop.f32.mrb[0].mxu0
    %v591 = vadd.f32 0.0, %v590
    %v592 = vpop.f32.mrb[0].mxu0
    %v593 = vpop.f32.mrb[0].mxu0
    %v594 = vadd.f32 0.0, %v593
    %v595 = vpop.f32.mrb[0].mxu0
    %596 = vdwg.mxu0
    %598 = vset.pattern.permute.xlu0 0
    %599 = vperm.xlu0 %598, %v536
    %v600 = vpop.permute.xlu0 %599
    %603 = vset.pattern.permute.xlu0 0
    %604 = vperm.xlu0 %603, %v537
    %v605 = vpop.permute.xlu0 %604
    %v607 = vadd.f32 %v600, %v591
    %v608 = vadd.f32 %v605, %v594
    %s609 = scalar_lea.vmem %s8, 8
    %v610 = vld [vmem:[%s609] sm:$0xf]
    %v611 = vld [vmem:[%s609 + $0x4] sm:$0xf]
    %v614 = vunpack.c.l.b16 %v610
    %v615 = vunpack.c.l.b16 %v611
    %v616 = vpack.c.b16 %v615, %v614
    %v618 = vsel %vm352, %v616, 0
    %620 = vmatprep.subr.bf16.mxu0 0
    %621 = vmatpush1.bf16.msra.mxu0 %v535
    %622 = vmatprep.subr.bf16.mxu0 0
    %623 = vmatpush1.bf16.msra.mxu0 0
    %624 = vmatprep.subr.bf16.mxu0 0
    %625 = vmatpush1.bf16.msra.mxu0 0
    %626 = vmatprep.subr.bf16.mxu0 0
    %627 = vmatpush1.bf16.msra.mxu0 0
    %628 = vmatprep.subr.bf16.mxu0 0
    %629 = vmatpush1.bf16.msra.mxu0 0
    %630 = vmatprep.subr.bf16.mxu0 0
    %631 = vmatpush1.bf16.msra.mxu0 0
    %632 = vmatprep.subr.bf16.mxu0 0
    %633 = vmatpush1.bf16.msra.mxu0 0
    %634 = vmatprep.subr.bf16.mxu0 0
    %635 = vmatpush1.bf16.msra.mxu0 0
    %636 = vmatprep.subr.bf16.mxu0 0
    %637 = vmatpush1.bf16.msra.mxu0 0
    %638 = vmatprep.subr.bf16.mxu0 0
    %639 = vmatpush1.bf16.msra.mxu0 0
    %640 = vmatprep.subr.bf16.mxu0 0
    %641 = vmatpush1.bf16.msra.mxu0 0
    %642 = vmatprep.subr.bf16.mxu0 0
    %643 = vmatpush1.bf16.msra.mxu0 0
    %644 = vmatprep.subr.bf16.mxu0 0
    %645 = vmatpush1.bf16.msra.mxu0 0
    %646 = vmatprep.subr.bf16.mxu0 0
    %647 = vmatpush1.bf16.msra.mxu0 0
    %648 = vmatprep.subr.bf16.mxu0 0
    %649 = vmatpush1.bf16.msra.mxu0 0
    %650 = vmatprep.subr.bf16.mxu0 0
    %651 = vmatpush1.bf16.msra.mxu0 0
    %652 = vmatprep.mubr.bf16.mxu0 0
    %653 = vmatmul.mubr.bf16.gmra.mrb[0].mxu0 %v618
    %v654 = vpop.f32.mrb[0].mxu0
    %v655 = vadd.f32 0.0, %v654
    %v656 = vpop.f32.mrb[0].mxu0
    %v657 = vpop.f32.mrb[0].mxu0
    %v658 = vadd.f32 0.0, %v657
    %v659 = vpop.f32.mrb[0].mxu0
    %660 = vdwg.mxu0
    %v661 = vadd.f32 %v607, %v655
    %v662 = vadd.f32 %v608, %v658
    %s663 = scalar_lea.vmem %s8, 16
    %v664 = vld [vmem:[%s663] sm:$0xf]
    %v665 = vld [vmem:[%s663 + $0x4] sm:$0xf]
    %v668 = vunpack.c.l.b16 %v664
    %v669 = vunpack.c.l.b16 %v665
    %v670 = vpack.c.b16 %v669, %v668
    %671 = vrot.lane.b32.xlu0 %v535, 127
    %v672 = vpop.permute.xlu0 %671
    %v675 = vsel %vm352, %v670, 0
    %677 = vmatprep.subr.bf16.mxu0 0
    %678 = vmatpush1.bf16.msra.mxu0 %v672
    %679 = vmatprep.subr.bf16.mxu0 0
    %680 = vmatpush1.bf16.msra.mxu0 0
    %681 = vmatprep.subr.bf16.mxu0 0
    %682 = vmatpush1.bf16.msra.mxu0 0
    %683 = vmatprep.subr.bf16.mxu0 0
    %684 = vmatpush1.bf16.msra.mxu0 0
    %685 = vmatprep.subr.bf16.mxu0 0
    %686 = vmatpush1.bf16.msra.mxu0 0
    %687 = vmatprep.subr.bf16.mxu0 0
    %688 = vmatpush1.bf16.msra.mxu0 0
    %689 = vmatprep.subr.bf16.mxu0 0
    %690 = vmatpush1.bf16.msra.mxu0 0
    %691 = vmatprep.subr.bf16.mxu0 0
    %692 = vmatpush1.bf16.msra.mxu0 0
    %693 = vmatprep.subr.bf16.mxu0 0
    %694 = vmatpush1.bf16.msra.mxu0 0
    %695 = vmatprep.subr.bf16.mxu0 0
    %696 = vmatpush1.bf16.msra.mxu0 0
    %697 = vmatprep.subr.bf16.mxu0 0
    %698 = vmatpush1.bf16.msra.mxu0 0
    %699 = vmatprep.subr.bf16.mxu0 0
    %700 = vmatpush1.bf16.msra.mxu0 0
    %701 = vmatprep.subr.bf16.mxu0 0
    %702 = vmatpush1.bf16.msra.mxu0 0
    %703 = vmatprep.subr.bf16.mxu0 0
    %704 = vmatpush1.bf16.msra.mxu0 0
    %705 = vmatprep.subr.bf16.mxu0 0
    %706 = vmatpush1.bf16.msra.mxu0 0
    %707 = vmatprep.subr.bf16.mxu0 0
    %708 = vmatpush1.bf16.msra.mxu0 0
    %709 = vmatprep.mubr.bf16.mxu0 0
    %710 = vmatmul.mubr.bf16.gmra.mrb[0].mxu0 %v675
    %v711 = vpop.f32.mrb[0].mxu0
    %v712 = vadd.f32 0.0, %v711
    %v713 = vpop.f32.mrb[0].mxu0
    %v714 = vpop.f32.mrb[0].mxu0
    %v715 = vadd.f32 0.0, %v714
    %v716 = vpop.f32.mrb[0].mxu0
    %717 = vdwg.mxu0
    %v718 = vadd.f32 %v661, %v712
    %v719 = vadd.f32 %v662, %v715
    %s720 = sld [smem:[#allocation3 + $0x2]]
    %vm721 = vcmp.ge.f32.partialorder %v718, 0.0
    %vm722 = vcmp.ge.f32.partialorder %v719, 0.0
    %v723 = vstv %s720
    %v724 = vmul.f32 %v723, %v718
    %v725 = vmul.f32 %v723, %v719
    %v726 = vsel %vm721, %v718, %v724
    %v727 = vsel %vm722, %v719, %v725
    %v728 = vld [vmem:[%s11] sm:$0xf]
    %v729 = vld [vmem:[%s11 + $0x4] sm:$0xf]
    %v730 = vpack.c.bf16 %v727, %v726
    %v733 = vunpack.c.l.b16 %v728
    %v734 = vunpack.c.l.b16 %v729
    %v735 = vpack.c.b16 %v734, %v733
    %v737 = vsel %vm352, %v735, 0
    %739 = vmatprep.subr.bf16.mxu0 0
    %740 = vmatpush1.bf16.msra.mxu0 %v730
    %741 = vmatprep.subr.bf16.mxu0 0
    %742 = vmatpush1.bf16.msra.mxu0 0
    %743 = vmatprep.subr.bf16.mxu0 0
    %744 = vmatpush1.bf16.msra.mxu0 0
    %745 = vmatprep.subr.bf16.mxu0 0
    %746 = vmatpush1.bf16.msra.mxu0 0
    %747 = vmatprep.subr.bf16.mxu0 0
    %748 = vmatpush1.bf16.msra.mxu0 0
    %749 = vmatprep.subr.bf16.mxu0 0
    %750 = vmatpush1.bf16.msra.mxu0 0
    %751 = vmatprep.subr.bf16.mxu0 0
    %752 = vmatpush1.bf16.msra.mxu0 0
    %753 = vmatprep.subr.bf16.mxu0 0
    %754 = vmatpush1.bf16.msra.mxu0 0
    %755 = vmatprep.subr.bf16.mxu0 0
    %756 = vmatpush1.bf16.msra.mxu0 0
    %757 = vmatprep.subr.bf16.mxu0 0
    %758 = vmatpush1.bf16.msra.mxu0 0
    %759 = vmatprep.subr.bf16.mxu0 0
    %760 = vmatpush1.bf16.msra.mxu0 0
    %761 = vmatprep.subr.bf16.mxu0 0
    %762 = vmatpush1.bf16.msra.mxu0 0
    %763 = vmatprep.subr.bf16.mxu0 0
    %764 = vmatpush1.bf16.msra.mxu0 0
    %765 = vmatprep.subr.bf16.mxu0 0
    %766 = vmatpush1.bf16.msra.mxu0 0
    %767 = vmatprep.subr.bf16.mxu0 0
    %768 = vmatpush1.bf16.msra.mxu0 0
    %769 = vmatprep.subr.bf16.mxu0 0
    %770 = vmatpush1.bf16.msra.mxu0 0
    %771 = vmatprep.mubr.bf16.mxu0 0
    %772 = vmatmul.mubr.bf16.gmra.mrb[0].mxu0 %v737
    %v773 = vpop.f32.mrb[0].mxu0
    %v774 = vadd.f32 0.0, %v773
    %v775 = vpop.f32.mrb[0].mxu0
    %v776 = vpop.f32.mrb[0].mxu0
    %v777 = vadd.f32 0.0, %v776
    %v778 = vpop.f32.mrb[0].mxu0
    %779 = vdwg.mxu0
    %780 = vst.msk [vmem:[%s12] sm:$0xff] %vm117, %v774
    %781 = vst.msk [vmem:[%s12 + $0x8] sm:$0xff] %vm117, %v777
    // Predicated region
    $region54: #{conv_tasnet_forward.7} parent=1 // pred_check
      _
    $region55: #{conv_tasnet_forward.7} parent=1 // pred_check_branch
      %783 = sbr.rel (0) target = $region57
    $region56: #{conv_tasnet_forward.7} parent=1 // pred_region
      _
    $region57: #{conv_tasnet_forward.7} parent=1 // pred_fallthru
      _
    // Predicated region
    $region58: #{conv_tasnet_forward.7} parent=1 // pred_check
      _
    $region59: #{conv_tasnet_forward.7} parent=1 // pred_check_branch
      %785 = sbr.rel (0) target = $region61
    $region60: #{conv_tasnet_forward.7} parent=1 // pred_region
      _
    $region61: #{conv_tasnet_forward.7} parent=1 // pred_fallthru
      _
    %786 = vsyncpa [#allocation4], 1

</llo_original>
